<compile_context>
chip_gen: v7x
topology: tpu7x:2x2x1
jax: 0.10.0
libtpu: 0.0.40
codegen_flags: <defaults>
</compile_context>

<pallas_src>
import functools

import jax
import jax.numpy as jnp
from jax.experimental import pallas as pl
from jax.experimental.pallas import tpu as pltpu


# ------------------------------ small helpers ------------------------------

def _round_up(x, m):
    return (x + m - 1) // m * m


def _choose_tm(m):
    # Row tile: multiple of 8, capped at 512 (bigger tiles amortize the
    # ~0.35us per-grid-step overhead while staying well inside VMEM).
    return min(512, _round_up(m, 8))


# ----------------------------- Pallas kernels -------------------------------

def _matmul_kernel(a_ref, b_ref, o_ref, acc_ref, *, act):
    """K-tiled matmul with f32 accumulator and fused elementwise epilogue."""
    @pl.when(pl.program_id(1) == 0)
    def _():
        acc_ref[...] = jnp.zeros_like(acc_ref)

    acc_ref[...] += jnp.dot(a_ref[...], b_ref[...],
                            preferred_element_type=jnp.float32)

    @pl.when(pl.program_id(1) == pl.num_programs(1) - 1)
    def _():
        y = acc_ref[...]
        if act == "tanh":
            y = jnp.tanh(y)
        o_ref[...] = y.astype(o_ref.dtype)


def _affine_relu_kernel(x_ref, scale_ref, shift_ref, o_ref):
    o_ref[...] = jnp.maximum(x_ref[...] * scale_ref[...] + shift_ref[...], 0.0)


# ----------------------------- Pallas wrappers ------------------------------

def pallas_matmul(a, b, act="none"):
    """A @ B with bf16 operands, f32 accumulation, fused activation.

    Pads M up to a multiple of the row tile and N up to a multiple of 128
    (lane-dense output), then slices the result back.
    """
    m, k = a.shape
    k2, n = b.shape
    assert k == k2

    n_pad = _round_up(n, 128)
    if n_pad != n:
        b = jnp.pad(b, ((0, 0), (0, n_pad - n)))

    tm = _choose_tm(m)
    m_pad = _round_up(m, tm)
    if m_pad != m:
        a = jnp.pad(a, ((0, m_pad - m), (0, 0)))

    # K tile: keep whole when small; tile at 512 for large K (real DCGAN widths).
    if k > 1024 and k % 512 == 0:
        tk = 512
    else:
        tk = k

    a = a.astype(jnp.bfloat16)
    b = b.astype(jnp.bfloat16)

    kernel = functools.partial(_matmul_kernel, act=act)
    out = pl.pallas_call(
        kernel,
        out_shape=jax.ShapeDtypeStruct((m_pad, n_pad), jnp.float32),
        grid=(m_pad // tm, k // tk),
        in_specs=[
            pl.BlockSpec((tm, tk), lambda i, kk: (i, kk)),
            pl.BlockSpec((tk, n_pad), lambda i, kk: (kk, 0)),
        ],
        out_specs=pl.BlockSpec((tm, n_pad), lambda i, kk: (i, 0)),
        scratch_shapes=[pltpu.VMEM((tm, n_pad), jnp.float32)],
        compiler_params=pltpu.CompilerParams(
            dimension_semantics=("parallel", "arbitrary"),
            vmem_limit_bytes=48 * 1024 * 1024),
    )(a, b)
    return out[:m, :n]


def pallas_affine_relu(x, scale, shift):
    """y = relu(x * scale + shift), rows tiled, lane-dense last dim."""
    m, c = x.shape
    tm = _choose_tm(m)
    m_pad = _round_up(m, tm)
    if m_pad != m:
        x = jnp.pad(x, ((0, m_pad - m), (0, 0)))

    out = pl.pallas_call(
        _affine_relu_kernel,
        out_shape=jax.ShapeDtypeStruct((m_pad, c), jnp.float32),
        grid=(m_pad // tm,),
        in_specs=[
            pl.BlockSpec((tm, c), lambda i: (i, 0)),
            pl.BlockSpec((1, c), lambda i: (0, 0)),
            pl.BlockSpec((1, c), lambda i: (0, 0)),
        ],
        out_specs=pl.BlockSpec((tm, c), lambda i: (i, 0)),
        compiler_params=pltpu.CompilerParams(
            dimension_semantics=("parallel",)),
    )(x, scale, shift)
    return out[:m]


# ------------------------------ layer wrappers ------------------------------

def input_projection(z_flat, w0):
    """First ConvTranspose2d: 1x1 spatial, stride=1, pad=0, k=4.

    Exactly z (N, nz) @ W0 reshaped to (nz, 16*Cout) followed by a reshape
    to (N, 4, 4, Cout).
    """
    n, nz = z_flat.shape
    nz2, cout, k, _ = w0.shape
    assert nz == nz2 and k == 4
    wmat = jnp.transpose(w0, (0, 2, 3, 1)).reshape(nz, k * k * cout)
    y = pallas_matmul(z_flat, wmat)                    # (N, 16*Cout)
    return y.reshape(n, k, k, cout)


def subpixel_conv_transpose(x_nhwc, w, act="none"):
    """ConvTranspose2d(k=4, stride=2, pad=1, bias=False), PyTorch semantics.

    Sub-pixel decomposition: each output parity (py, px) only depends on a
    2x2 window of the (1-padded) input.  One matmul with K = 4*Cin and
    N = 4*Cout computes all four phases at every base position; the phases
    are then interleaved (depth-to-space with a phase-dependent shift).
    """
    n, h, wdt, cin = x_nhwc.shape
    cin2, cout, k, _ = w.shape
    assert cin == cin2 and k == 4

    xp = jnp.pad(x_nhwc, ((0, 0), (1, 1), (1, 1), (0, 0)))
    hp1, wp1 = h + 1, wdt + 1

    # 2x2 im2col over all (H+1)x(W+1) base positions; patch order (dy, dx, ci).
    cols = []
    for dy in range(2):
        for dx in range(2):
            cols.append(xp[:, dy:dy + hp1, dx:dx + wp1, :])
    patches = jnp.concatenate(cols, axis=-1).reshape(n * hp1 * wp1, 4 * cin)

    # Weight matrix (4*Cin, 4*Cout): rows ordered (dy, dx, ci),
    # columns ordered (py, px, co).  Tap (dy, dx) of phase (py, px) uses
    # kernel element (3 - py - 2*dy, 3 - px - 2*dx).
    row_blocks = []
    for dy in range(2):
        for dx in range(2):
            col_blocks = []
            for py in range(2):
                for px in range(2):
                    col_blocks.append(w[:, :, 3 - py - 2 * dy, 3 - px - 2 * dx])
            row_blocks.append(jnp.concatenate(col_blocks, axis=1))
    wmat = jnp.concatenate(row_blocks, axis=0)         # (4*Cin, 4*Cout)

    y = pallas_matmul(patches, wmat, act=act)          # (N*(H+1)*(W+1), 4*Cout)
    y = y.reshape(n, hp1, wp1, 2, 2, cout)

    # out[2j+py, 2l+px] = y[j+py, l+px, py, px]
    p00 = y[:, :h, :wdt, 0, 0, :]
    p01 = y[:, :h, 1:, 0, 1, :]
    p10 = y[:, 1:, :wdt, 1, 0, :]
    p11 = y[:, 1:, 1:, 1, 1, :]
    st = jnp.stack([p00, p01, p10, p11], axis=3)       # (N, H, W, 4, Cout)
    st = st.reshape(n, h, wdt, 2, 2, cout)
    out = jnp.transpose(st, (0, 1, 3, 2, 4, 5)).reshape(n, 2 * h, 2 * wdt, cout)
    return out


def batchnorm_relu(x_nhwc, gamma, beta, eps=1e-5):
    """BatchNorm2d (training-mode batch stats, biased var) + ReLU."""
    n, h, w, c = x_nhwc.shape
    cnt = n * h * w
    xf = x_nhwc.reshape(cnt, c)
    # Single fused pass for sum and sum-of-squares (XLA fuses these reads).
    s1 = jnp.sum(xf, axis=0)
    s2 = jnp.sum(xf * xf, axis=0)
    mean = s1 / cnt
    var = jnp.maximum(s2 / cnt - mean * mean, 0.0)     # biased, as PyTorch BN
    scale = gamma * jax.lax.rsqrt(var + eps)
    shift = beta - mean * scale

    # Lane-dense layout: rows = N*H, lanes = W*C (>= 256 here), so the
    # Pallas affine/ReLU store path is never a narrow masked store.
    x2 = x_nhwc.reshape(n * h, w * c)
    scale_t = jnp.tile(scale, (w,)).reshape(1, w * c)
    shift_t = jnp.tile(shift, (w,)).reshape(1, w * c)
    y = pallas_affine_relu(x2, scale_t, shift_t)
    return y.reshape(n, h, w, c)


# ------------------------------ the generator -------------------------------

def init_generator_params(key, nc, nz, ngf):
    """DCGAN-style init (conv weights ~ N(0, 0.02), BN gamma ~ N(1, 0.02))."""
    ks = jax.random.split(key, 9)
    p = {}
    chans = [(nz, ngf * 8), (ngf * 8, ngf * 4), (ngf * 4, ngf * 2),
             (ngf * 2, ngf), (ngf, nc)]
    for i, (ci, co) in enumerate(chans):
        p[f"w{i}"] = 0.02 * jax.random.normal(ks[i], (ci, co, 4, 4), jnp.float32)
    bn_chans = [ngf * 8, ngf * 4, ngf * 2, ngf]
    for i, c in enumerate(bn_chans):
        p[f"gamma{i}"] = 1.0 + 0.02 * jax.random.normal(ks[5 + i], (c,), jnp.float32)
        p[f"beta{i}"] = jnp.zeros((c,), jnp.float32)
    return p


def generator_forward(params, x_nchw):
    """Forward pass of _Generator. Input NCHW (N, nz, 1, 1); output NCHW (N, nc, 64, 64)."""
    # TODO(synk): ngpu/data_parallel dispatch has no Pallas equivalent; single-device path only.
    n, nz = x_nchw.shape[0], x_nchw.shape[1]
    z = x_nchw.reshape(n, nz).astype(jnp.float32)      # 1x1 spatial -> flat latent

    x = input_projection(z, params["w0"])                          # (N, 4, 4, ngf*8)
    x = batchnorm_relu(x, params["gamma0"], params["beta0"])

    x = subpixel_conv_transpose(x, params["w1"])                   # (N, 8, 8, ngf*4)
    x = batchnorm_relu(x, params["gamma1"], params["beta1"])

    x = subpixel_conv_transpose(x, params["w2"])                   # (N, 16, 16, ngf*2)
    x = batchnorm_relu(x, params["gamma2"], params["beta2"])

    x = subpixel_conv_transpose(x, params["w3"])                   # (N, 32, 32, ngf)
    x = batchnorm_relu(x, params["gamma3"], params["beta3"])

    x = subpixel_conv_transpose(x, params["w4"], act="tanh")       # (N, 64, 64, nc), tanh fused
    return jnp.transpose(x, (0, 3, 1, 2))                          # -> NCHW


if __name__ == "__main__":
    # small, module-consistent shapes
    batch, nz, ngf, nc = 2, 8, 8, 3

    key = jax.random.PRNGKey(0)
    k_params, k_x = jax.random.split(key)
    params = init_generator_params(k_params, nc=nc, nz=nz, ngf=ngf)
    z = jax.random.normal(k_x, (batch, nz, 1, 1), jnp.float32)

    out = jax.jit(generator_forward)(params, z)
    out = jax.block_until_ready(out)

    assert out.shape == (batch, nc, 64, 64), out.shape
    assert bool(jnp.all(jnp.isfinite(out)))
    assert bool(jnp.all(jnp.abs(out) <= 1.0 + 1e-6))  # tanh range
    print("KERNEL_OK")
</pallas_src>

<mosaic_0001>
module attributes {stable_mosaic.version = 11 : i64} {
  func.func @_affine_relu_kernel(%arg0: i32, %arg1: memref<8x256xf32, #tpu.memory_space<vmem>>, %arg2: memref<1x256xf32, #tpu.memory_space<vmem>>, %arg3: memref<1x256xf32, #tpu.memory_space<vmem>>, %arg4: memref<8x256xf32, #tpu.memory_space<vmem>>) attributes {dimension_semantics = [#tpu.dimension_semantics<parallel>], iteration_bounds = array<i64: 1>, scalar_prefetch = 0 : i64, scratch_operands = 0 : i64, tpu.core_type = #tpu.core_type<tc>, window_params = [{transform_indices = @transform_0, window_bounds = array<i64: 8, 256>}, {pipeline_mode = #tpu.pipeline_mode<synchronous>, transform_indices = @transform_1, window_bounds = array<i64: 1, 256>}, {pipeline_mode = #tpu.pipeline_mode<synchronous>, transform_indices = @transform_2, window_bounds = array<i64: 1, 256>}, {transform_indices = @transform_3, window_bounds = array<i64: 8, 256>}]} {
    %c0 = arith.constant 0 : index
    %c0_0 = arith.constant 0 : index
    %0 = vector.load %arg1[%c0, %c0_0] : memref<8x256xf32, #tpu.memory_space<vmem>>, vector<8x256xf32>
    %c0_1 = arith.constant 0 : index
    %c0_2 = arith.constant 0 : index
    %1 = vector.load %arg2[%c0_1, %c0_2] : memref<1x256xf32, #tpu.memory_space<vmem>>, vector<1x256xf32>
    %2 = vector.broadcast %1 : vector<1x256xf32> to vector<8x256xf32>
    %3 = arith.mulf %0, %2 : vector<8x256xf32>
    %c0_3 = arith.constant 0 : index
    %c0_4 = arith.constant 0 : index
    %4 = vector.load %arg3[%c0_3, %c0_4] : memref<1x256xf32, #tpu.memory_space<vmem>>, vector<1x256xf32>
    %5 = vector.broadcast %4 : vector<1x256xf32> to vector<8x256xf32>
    %6 = arith.addf %3, %5 : vector<8x256xf32>
    %cst = arith.constant 0.000000e+00 : f32
    %7 = vector.broadcast %cst : f32 to vector<8x256xf32>
    %8 = arith.maximumf %6, %7 : vector<8x256xf32>
    %c0_5 = arith.constant 0 : index
    %c0_6 = arith.constant 0 : index
    %9 = vector.load %arg4[%c0_5, %c0_6] : memref<8x256xf32, #tpu.memory_space<vmem>>, vector<8x256xf32>
    tpu.vector_store %arg4[%c0_5, %c0_6], %8 {strides = array<i32>} : memref<8x256xf32, #tpu.memory_space<vmem>>, vector<8x256xf32>,
    return
  }
  func.func @transform_0(%arg0: i32) -> (i32, i32) {
    %c0_i32 = arith.constant 0 : i32
    %c0_i32_0 = arith.constant 0 : i32
    return %arg0, %c0_i32 : i32, i32
  }
  func.func @transform_1(%arg0: i32) -> (i32, i32) {
    %c0_i32 = arith.constant 0 : i32
    %c0_i32_0 = arith.constant 0 : i32
    %c0_i32_1 = arith.constant 0 : i32
    return %c0_i32, %c0_i32_0 : i32, i32
  }
  func.func @transform_2(%arg0: i32) -> (i32, i32) {
    %c0_i32 = arith.constant 0 : i32
    %c0_i32_0 = arith.constant 0 : i32
    %c0_i32_1 = arith.constant 0 : i32
    return %c0_i32, %c0_i32_0 : i32, i32
  }
  func.func @transform_3(%arg0: i32) -> (i32, i32) {
    %c0_i32 = arith.constant 0 : i32
    %c0_i32_0 = arith.constant 0 : i32
    return %arg0, %c0_i32 : i32, i32
  }
}

module attributes {stable_mosaic.version = 11 : i64} {
  func.func @_matmul_kernel(%arg0: i32, %arg1: i32, %arg2: memref<8x8xbf16, #tpu.memory_space<vmem>>, %arg3: memref<8x1024xbf16, #tpu.memory_space<vmem>>, %arg4: memref<8x1024xf32, #tpu.memory_space<vmem>>, %arg5: memref<8x1024xf32, #tpu.memory_space<vmem>>) attributes {dimension_semantics = [#tpu.dimension_semantics<parallel>, #tpu.dimension_semantics<arbitrary>], iteration_bounds = array<i64: 1, 1>, scalar_prefetch = 0 : i64, scratch_operands = 1 : i64, tpu.core_type = #tpu.core_type<tc>, window_params = [{transform_indices = @transform_0, window_bounds = array<i64: 8, 8>}, {transform_indices = @transform_1, window_bounds = array<i64: 8, 1024>}, {transform_indices = @transform_2, window_bounds = array<i64: 8, 1024>}]} {
    %c0_i32 = arith.constant 0 : i32
    %0 = arith.cmpi eq, %arg1, %c0_i32 : i32
    %1 = arith.extui %0 : i1 to i32
    %c0_i32_0 = arith.constant 0 : i32
    %2 = arith.cmpi ne, %1, %c0_i32_0 : i32
    scf.if %2 {
      %cst_10 = arith.constant 0.000000e+00 : f32
      %12 = vector.broadcast %cst_10 : f32 to vector<8x1024xf32>
      %c0_11 = arith.constant 0 : index
      %c0_12 = arith.constant 0 : index
      %13 = vector.load %arg5[%c0_11, %c0_12] : memref<8x1024xf32, #tpu.memory_space<vmem>>, vector<8x1024xf32>
      tpu.vector_store %arg5[%c0_11, %c0_12], %12 {strides = array<i32>} : memref<8x1024xf32, #tpu.memory_space<vmem>>, vector<8x1024xf32>,
    } else {
    }
    %c0 = arith.constant 0 : index
    %c0_1 = arith.constant 0 : index
    %3 = vector.load %arg5[%c0, %c0_1] : memref<8x1024xf32, #tpu.memory_space<vmem>>, vector<8x1024xf32>
    %c0_2 = arith.constant 0 : index
    %c0_3 = arith.constant 0 : index
    %4 = vector.load %arg2[%c0_2, %c0_3] : memref<8x8xbf16, #tpu.memory_space<vmem>>, vector<8x8xbf16>
    %c0_4 = arith.constant 0 : index
    %c0_5 = arith.constant 0 : index
    %5 = vector.load %arg3[%c0_4, %c0_5] : memref<8x1024xbf16, #tpu.memory_space<vmem>>, vector<8x1024xbf16>
    %cst = arith.constant dense<0.000000e+00> : vector<8x1024xf32>
    %6 = tpu.matmul %4, %5, %cst {dimension_numbers = #tpu.dot_dimension_numbers<[1], [0], [0], [1], [0, 0, 1, 1], [], []>} : vector<8x8xbf16>, vector<8x1024xbf16>, vector<8x1024xf32> -> vector<8x1024xf32>
    %7 = arith.addf %3, %6 : vector<8x1024xf32>
    %c0_6 = arith.constant 0 : index
    %c0_7 = arith.constant 0 : index
    %8 = vector.load %arg5[%c0_6, %c0_7] : memref<8x1024xf32, #tpu.memory_space<vmem>>, vector<8x1024xf32>
    tpu.vector_store %arg5[%c0_6, %c0_7], %7 {strides = array<i32>} : memref<8x1024xf32, #tpu.memory_space<vmem>>, vector<8x1024xf32>,
    %c0_i32_8 = arith.constant 0 : i32
    %9 = arith.cmpi eq, %arg1, %c0_i32_8 : i32
    %10 = arith.extui %9 : i1 to i32
    %c0_i32_9 = arith.constant 0 : i32
    %11 = arith.cmpi ne, %10, %c0_i32_9 : i32
    scf.if %11 {
      %c0_10 = arith.constant 0 : index
      %c0_11 = arith.constant 0 : index
      %12 = vector.load %arg5[%c0_10, %c0_11] : memref<8x1024xf32, #tpu.memory_space<vmem>>, vector<8x1024xf32>
      %c0_12 = arith.constant 0 : index
      %c0_13 = arith.constant 0 : index
      %13 = vector.load %arg4[%c0_12, %c0_13] : memref<8x1024xf32, #tpu.memory_space<vmem>>, vector<8x1024xf32>
      tpu.vector_store %arg4[%c0_12, %c0_13], %12 {strides = array<i32>} : memref<8x1024xf32, #tpu.memory_space<vmem>>, vector<8x1024xf32>,
    } else {
    }
    return
  }
  func.func @transform_0(%arg0: i32, %arg1: i32) -> (i32, i32) {
    %c0_i32 = arith.constant 0 : i32
    return %arg0, %arg1 : i32, i32
  }
  func.func @transform_1(%arg0: i32, %arg1: i32) -> (i32, i32) {
    %c0_i32 = arith.constant 0 : i32
    %c0_i32_0 = arith.constant 0 : i32
    return %arg1, %c0_i32 : i32, i32
  }
  func.func @transform_2(%arg0: i32, %arg1: i32) -> (i32, i32) {
    %c0_i32 = arith.constant 0 : i32
    %c0_i32_0 = arith.constant 0 : i32
    return %arg0, %c0_i32 : i32, i32
  }
}

module attributes {stable_mosaic.version = 11 : i64} {
  func.func @_matmul_kernel(%arg0: i32, %arg1: i32, %arg2: memref<56x256xbf16, #tpu.memory_space<vmem>>, %arg3: memref<256x128xbf16, #tpu.memory_space<vmem>>, %arg4: memref<56x128xf32, #tpu.memory_space<vmem>>, %arg5: memref<56x128xf32, #tpu.memory_space<vmem>>) attributes {dimension_semantics = [#tpu.dimension_semantics<parallel>, #tpu.dimension_semantics<arbitrary>], iteration_bounds = array<i64: 1, 1>, scalar_prefetch = 0 : i64, scratch_operands = 1 : i64, tpu.core_type = #tpu.core_type<tc>, window_params = [{transform_indices = @transform_0, window_bounds = array<i64: 56, 256>}, {transform_indices = @transform_1, window_bounds = array<i64: 256, 128>}, {transform_indices = @transform_2, window_bounds = array<i64: 56, 128>}]} {
    %c0_i32 = arith.constant 0 : i32
    %0 = arith.cmpi eq, %arg1, %c0_i32 : i32
    %1 = arith.extui %0 : i1 to i32
    %c0_i32_0 = arith.constant 0 : i32
    %2 = arith.cmpi ne, %1, %c0_i32_0 : i32
    scf.if %2 {
      %cst_10 = arith.constant 0.000000e+00 : f32
      %12 = vector.broadcast %cst_10 : f32 to vector<56x128xf32>
      %c0_11 = arith.constant 0 : index
      %c0_12 = arith.constant 0 : index
      %13 = vector.load %arg5[%c0_11, %c0_12] : memref<56x128xf32, #tpu.memory_space<vmem>>, vector<56x128xf32>
      tpu.vector_store %arg5[%c0_11, %c0_12], %12 {strides = array<i32>} : memref<56x128xf32, #tpu.memory_space<vmem>>, vector<56x128xf32>,
    } else {
    }
    %c0 = arith.constant 0 : index
    %c0_1 = arith.constant 0 : index
    %3 = vector.load %arg5[%c0, %c0_1] : memref<56x128xf32, #tpu.memory_space<vmem>>, vector<56x128xf32>
    %c0_2 = arith.constant 0 : index
    %c0_3 = arith.constant 0 : index
    %4 = vector.load %arg2[%c0_2, %c0_3] : memref<56x256xbf16, #tpu.memory_space<vmem>>, vector<56x256xbf16>
    %c0_4 = arith.constant 0 : index
    %c0_5 = arith.constant 0 : index
    %5 = vector.load %arg3[%c0_4, %c0_5] : memref<256x128xbf16, #tpu.memory_space<vmem>>, vector<256x128xbf16>
    %cst = arith.constant dense<0.000000e+00> : vector<56x128xf32>
    %6 = tpu.matmul %4, %5, %cst {dimension_numbers = #tpu.dot_dimension_numbers<[1], [0], [0], [1], [0, 0, 1, 1], [], []>} : vector<56x256xbf16>, vector<256x128xbf16>, vector<56x128xf32> -> vector<56x128xf32>
    %7 = arith.addf %3, %6 : vector<56x128xf32>
    %c0_6 = arith.constant 0 : index
    %c0_7 = arith.constant 0 : index
    %8 = vector.load %arg5[%c0_6, %c0_7] : memref<56x128xf32, #tpu.memory_space<vmem>>, vector<56x128xf32>
    tpu.vector_store %arg5[%c0_6, %c0_7], %7 {strides = array<i32>} : memref<56x128xf32, #tpu.memory_space<vmem>>, vector<56x128xf32>,
    %c0_i32_8 = arith.constant 0 : i32
    %9 = arith.cmpi eq, %arg1, %c0_i32_8 : i32
    %10 = arith.extui %9 : i1 to i32
    %c0_i32_9 = arith.constant 0 : i32
    %11 = arith.cmpi ne, %10, %c0_i32_9 : i32
    scf.if %11 {
      %c0_10 = arith.constant 0 : index
      %c0_11 = arith.constant 0 : index
      %12 = vector.load %arg5[%c0_10, %c0_11] : memref<56x128xf32, #tpu.memory_space<vmem>>, vector<56x128xf32>
      %c0_12 = arith.constant 0 : index
      %c0_13 = arith.constant 0 : index
      %13 = vector.load %arg4[%c0_12, %c0_13] : memref<56x128xf32, #tpu.memory_space<vmem>>, vector<56x128xf32>
      tpu.vector_store %arg4[%c0_12, %c0_13], %12 {strides = array<i32>} : memref<56x128xf32, #tpu.memory_space<vmem>>, vector<56x128xf32>,
    } else {
    }
    return
  }
  func.func @transform_0(%arg0: i32, %arg1: i32) -> (i32, i32) {
    %c0_i32 = arith.constant 0 : i32
    return %arg0, %arg1 : i32, i32
  }
  func.func @transform_1(%arg0: i32, %arg1: i32) -> (i32, i32) {
    %c0_i32 = arith.constant 0 : i32
    %c0_i32_0 = arith.constant 0 : i32
    return %arg1, %c0_i32 : i32, i32
  }
  func.func @transform_2(%arg0: i32, %arg1: i32) -> (i32, i32) {
    %c0_i32 = arith.constant 0 : i32
    %c0_i32_0 = arith.constant 0 : i32
    return %arg0, %c0_i32 : i32, i32
  }
}

module attributes {stable_mosaic.version = 11 : i64} {
  func.func @_affine_relu_kernel(%arg0: i32, %arg1: memref<16x256xf32, #tpu.memory_space<vmem>>, %arg2: memref<1x256xf32, #tpu.memory_space<vmem>>, %arg3: memref<1x256xf32, #tpu.memory_space<vmem>>, %arg4: memref<16x256xf32, #tpu.memory_space<vmem>>) attributes {dimension_semantics = [#tpu.dimension_semantics<parallel>], iteration_bounds = array<i64: 1>, scalar_prefetch = 0 : i64, scratch_operands = 0 : i64, tpu.core_type = #tpu.core_type<tc>, window_params = [{transform_indices = @transform_0, window_bounds = array<i64: 16, 256>}, {pipeline_mode = #tpu.pipeline_mode<synchronous>, transform_indices = @transform_1, window_bounds = array<i64: 1, 256>}, {pipeline_mode = #tpu.pipeline_mode<synchronous>, transform_indices = @transform_2, window_bounds = array<i64: 1, 256>}, {transform_indices = @transform_3, window_bounds = array<i64: 16, 256>}]} {
    %c0 = arith.constant 0 : index
    %c0_0 = arith.constant 0 : index
    %0 = vector.load %arg1[%c0, %c0_0] : memref<16x256xf32, #tpu.memory_space<vmem>>, vector<16x256xf32>
    %c0_1 = arith.constant 0 : index
    %c0_2 = arith.constant 0 : index
    %1 = vector.load %arg2[%c0_1, %c0_2] : memref<1x256xf32, #tpu.memory_space<vmem>>, vector<1x256xf32>
    %2 = vector.broadcast %1 : vector<1x256xf32> to vector<16x256xf32>
    %3 = arith.mulf %0, %2 : vector<16x256xf32>
    %c0_3 = arith.constant 0 : index
    %c0_4 = arith.constant 0 : index
    %4 = vector.load %arg3[%c0_3, %c0_4] : memref<1x256xf32, #tpu.memory_space<vmem>>, vector<1x256xf32>
    %5 = vector.broadcast %4 : vector<1x256xf32> to vector<16x256xf32>
    %6 = arith.addf %3, %5 : vector<16x256xf32>
    %cst = arith.constant 0.000000e+00 : f32
    %7 = vector.broadcast %cst : f32 to vector<16x256xf32>
    %8 = arith.maximumf %6, %7 : vector<16x256xf32>
    %c0_5 = arith.constant 0 : index
    %c0_6 = arith.constant 0 : index
    %9 = vector.load %arg4[%c0_5, %c0_6] : memref<16x256xf32, #tpu.memory_space<vmem>>, vector<16x256xf32>
    tpu.vector_store %arg4[%c0_5, %c0_6], %8 {strides = array<i32>} : memref<16x256xf32, #tpu.memory_space<vmem>>, vector<16x256xf32>,
    return
  }
  func.func @transform_0(%arg0: i32) -> (i32, i32) {
    %c0_i32 = arith.constant 0 : i32
    %c0_i32_0 = arith.constant 0 : i32
    return %arg0, %c0_i32 : i32, i32
  }
  func.func @transform_1(%arg0: i32) -> (i32, i32) {
    %c0_i32 = arith.constant 0 : i32
    %c0_i32_0 = arith.constant 0 : i32
    %c0_i32_1 = arith.constant 0 : i32
    return %c0_i32, %c0_i32_0 : i32, i32
  }
  func.func @transform_2(%arg0: i32) -> (i32, i32) {
    %c0_i32 = arith.constant 0 : i32
    %c0_i32_0 = arith.constant 0 : i32
    %c0_i32_1 = arith.constant 0 : i32
    return %c0_i32, %c0_i32_0 : i32, i32
  }
  func.func @transform_3(%arg0: i32) -> (i32, i32) {
    %c0_i32 = arith.constant 0 : i32
    %c0_i32_0 = arith.constant 0 : i32
    return %arg0, %c0_i32 : i32, i32
  }
}

module attributes {stable_mosaic.version = 11 : i64} {
  func.func @_matmul_kernel(%arg0: i32, %arg1: i32, %arg2: memref<168x128xbf16, #tpu.memory_space<vmem>>, %arg3: memref<128x128xbf16, #tpu.memory_space<vmem>>, %arg4: memref<168x128xf32, #tpu.memory_space<vmem>>, %arg5: memref<168x128xf32, #tpu.memory_space<vmem>>) attributes {dimension_semantics = [#tpu.dimension_semantics<parallel>, #tpu.dimension_semantics<arbitrary>], iteration_bounds = array<i64: 1, 1>, scalar_prefetch = 0 : i64, scratch_operands = 1 : i64, tpu.core_type = #tpu.core_type<tc>, window_params = [{transform_indices = @transform_0, window_bounds = array<i64: 168, 128>}, {transform_indices = @transform_1, window_bounds = array<i64: 128, 128>}, {transform_indices = @transform_2, window_bounds = array<i64: 168, 128>}]} {
    %c0_i32 = arith.constant 0 : i32
    %0 = arith.cmpi eq, %arg1, %c0_i32 : i32
    %1 = arith.extui %0 : i1 to i32
    %c0_i32_0 = arith.constant 0 : i32
    %2 = arith.cmpi ne, %1, %c0_i32_0 : i32
    scf.if %2 {
      %cst_10 = arith.constant 0.000000e+00 : f32
      %12 = vector.broadcast %cst_10 : f32 to vector<168x128xf32>
      %c0_11 = arith.constant 0 : index
      %c0_12 = arith.constant 0 : index
      %13 = vector.load %arg5[%c0_11, %c0_12] : memref<168x128xf32, #tpu.memory_space<vmem>>, vector<168x128xf32>
      tpu.vector_store %arg5[%c0_11, %c0_12], %12 {strides = array<i32>} : memref<168x128xf32, #tpu.memory_space<vmem>>, vector<168x128xf32>,
    } else {
    }
    %c0 = arith.constant 0 : index
    %c0_1 = arith.constant 0 : index
    %3 = vector.load %arg5[%c0, %c0_1] : memref<168x128xf32, #tpu.memory_space<vmem>>, vector<168x128xf32>
    %c0_2 = arith.constant 0 : index
    %c0_3 = arith.constant 0 : index
    %4 = vector.load %arg2[%c0_2, %c0_3] : memref<168x128xbf16, #tpu.memory_space<vmem>>, vector<168x128xbf16>
    %c0_4 = arith.constant 0 : index
    %c0_5 = arith.constant 0 : index
    %5 = vector.load %arg3[%c0_4, %c0_5] : memref<128x128xbf16, #tpu.memory_space<vmem>>, vector<128x128xbf16>
    %cst = arith.constant dense<0.000000e+00> : vector<168x128xf32>
    %6 = tpu.matmul %4, %5, %cst {dimension_numbers = #tpu.dot_dimension_numbers<[1], [0], [0], [1], [0, 0, 1, 1], [], []>} : vector<168x128xbf16>, vector<128x128xbf16>, vector<168x128xf32> -> vector<168x128xf32>
    %7 = arith.addf %3, %6 : vector<168x128xf32>
    %c0_6 = arith.constant 0 : index
    %c0_7 = arith.constant 0 : index
    %8 = vector.load %arg5[%c0_6, %c0_7] : memref<168x128xf32, #tpu.memory_space<vmem>>, vector<168x128xf32>
    tpu.vector_store %arg5[%c0_6, %c0_7], %7 {strides = array<i32>} : memref<168x128xf32, #tpu.memory_space<vmem>>, vector<168x128xf32>,
    %c0_i32_8 = arith.constant 0 : i32
    %9 = arith.cmpi eq, %arg1, %c0_i32_8 : i32
    %10 = arith.extui %9 : i1 to i32
    %c0_i32_9 = arith.constant 0 : i32
    %11 = arith.cmpi ne, %10, %c0_i32_9 : i32
    scf.if %11 {
      %c0_10 = arith.constant 0 : index
      %c0_11 = arith.constant 0 : index
      %12 = vector.load %arg5[%c0_10, %c0_11] : memref<168x128xf32, #tpu.memory_space<vmem>>, vector<168x128xf32>
      %c0_12 = arith.constant 0 : index
      %c0_13 = arith.constant 0 : index
      %13 = vector.load %arg4[%c0_12, %c0_13] : memref<168x128xf32, #tpu.memory_space<vmem>>, vector<168x128xf32>
      tpu.vector_store %arg4[%c0_12, %c0_13], %12 {strides = array<i32>} : memref<168x128xf32, #tpu.memory_space<vmem>>, vector<168x128xf32>,
    } else {
    }
    return
  }
  func.func @transform_0(%arg0: i32, %arg1: i32) -> (i32, i32) {
    %c0_i32 = arith.constant 0 : i32
    return %arg0, %arg1 : i32, i32
  }
  func.func @transform_1(%arg0: i32, %arg1: i32) -> (i32, i32) {
    %c0_i32 = arith.constant 0 : i32
    %c0_i32_0 = arith.constant 0 : i32
    return %arg1, %c0_i32 : i32, i32
  }
  func.func @transform_2(%arg0: i32, %arg1: i32) -> (i32, i32) {
    %c0_i32 = arith.constant 0 : i32
    %c0_i32_0 = arith.constant 0 : i32
    return %arg0, %c0_i32 : i32, i32
  }
}

module attributes {stable_mosaic.version = 11 : i64} {
  func.func @_affine_relu_kernel(%arg0: i32, %arg1: memref<32x256xf32, #tpu.memory_space<vmem>>, %arg2: memref<1x256xf32, #tpu.memory_space<vmem>>, %arg3: memref<1x256xf32, #tpu.memory_space<vmem>>, %arg4: memref<32x256xf32, #tpu.memory_space<vmem>>) attributes {dimension_semantics = [#tpu.dimension_semantics<parallel>], iteration_bounds = array<i64: 1>, scalar_prefetch = 0 : i64, scratch_operands = 0 : i64, tpu.core_type = #tpu.core_type<tc>, window_params = [{transform_indices = @transform_0, window_bounds = array<i64: 32, 256>}, {pipeline_mode = #tpu.pipeline_mode<synchronous>, transform_indices = @transform_1, window_bounds = array<i64: 1, 256>}, {pipeline_mode = #tpu.pipeline_mode<synchronous>, transform_indices = @transform_2, window_bounds = array<i64: 1, 256>}, {transform_indices = @transform_3, window_bounds = array<i64: 32, 256>}]} {
    %c0 = arith.constant 0 : index
    %c0_0 = arith.constant 0 : index
    %0 = vector.load %arg1[%c0, %c0_0] : memref<32x256xf32, #tpu.memory_space<vmem>>, vector<32x256xf32>
    %c0_1 = arith.constant 0 : index
    %c0_2 = arith.constant 0 : index
    %1 = vector.load %arg2[%c0_1, %c0_2] : memref<1x256xf32, #tpu.memory_space<vmem>>, vector<1x256xf32>
    %2 = vector.broadcast %1 : vector<1x256xf32> to vector<32x256xf32>
    %3 = arith.mulf %0, %2 : vector<32x256xf32>
    %c0_3 = arith.constant 0 : index
    %c0_4 = arith.constant 0 : index
    %4 = vector.load %arg3[%c0_3, %c0_4] : memref<1x256xf32, #tpu.memory_space<vmem>>, vector<1x256xf32>
    %5 = vector.broadcast %4 : vector<1x256xf32> to vector<32x256xf32>
    %6 = arith.addf %3, %5 : vector<32x256xf32>
    %cst = arith.constant 0.000000e+00 : f32
    %7 = vector.broadcast %cst : f32 to vector<32x256xf32>
    %8 = arith.maximumf %6, %7 : vector<32x256xf32>
    %c0_5 = arith.constant 0 : index
    %c0_6 = arith.constant 0 : index
    %9 = vector.load %arg4[%c0_5, %c0_6] : memref<32x256xf32, #tpu.memory_space<vmem>>, vector<32x256xf32>
    tpu.vector_store %arg4[%c0_5, %c0_6], %8 {strides = array<i32>} : memref<32x256xf32, #tpu.memory_space<vmem>>, vector<32x256xf32>,
    return
  }
  func.func @transform_0(%arg0: i32) -> (i32, i32) {
    %c0_i32 = arith.constant 0 : i32
    %c0_i32_0 = arith.constant 0 : i32
    return %arg0, %c0_i32 : i32, i32
  }
  func.func @transform_1(%arg0: i32) -> (i32, i32) {
    %c0_i32 = arith.constant 0 : i32
    %c0_i32_0 = arith.constant 0 : i32
    %c0_i32_1 = arith.constant 0 : i32
    return %c0_i32, %c0_i32_0 : i32, i32
  }
  func.func @transform_2(%arg0: i32) -> (i32, i32) {
    %c0_i32 = arith.constant 0 : i32
    %c0_i32_0 = arith.constant 0 : i32
    %c0_i32_1 = arith.constant 0 : i32
    return %c0_i32, %c0_i32_0 : i32, i32
  }
  func.func @transform_3(%arg0: i32) -> (i32, i32) {
    %c0_i32 = arith.constant 0 : i32
    %c0_i32_0 = arith.constant 0 : i32
    return %arg0, %c0_i32 : i32, i32
  }
}

module attributes {stable_mosaic.version = 11 : i64} {
  func.func @_matmul_kernel(%arg0: i32, %arg1: i32, %arg2: memref<512x64xbf16, #tpu.memory_space<vmem>>, %arg3: memref<64x128xbf16, #tpu.memory_space<vmem>>, %arg4: memref<512x128xf32, #tpu.memory_space<vmem>>, %arg5: memref<512x128xf32, #tpu.memory_space<vmem>>) attributes {dimension_semantics = [#tpu.dimension_semantics<parallel>, #tpu.dimension_semantics<arbitrary>], iteration_bounds = array<i64: 2, 1>, scalar_prefetch = 0 : i64, scratch_operands = 1 : i64, tpu.core_type = #tpu.core_type<tc>, window_params = [{transform_indices = @transform_0, window_bounds = array<i64: 512, 64>}, {transform_indices = @transform_1, window_bounds = array<i64: 64, 128>}, {transform_indices = @transform_2, window_bounds = array<i64: 512, 128>}]} {
    %c0_i32 = arith.constant 0 : i32
    %0 = arith.cmpi eq, %arg1, %c0_i32 : i32
    %1 = arith.extui %0 : i1 to i32
    %c0_i32_0 = arith.constant 0 : i32
    %2 = arith.cmpi ne, %1, %c0_i32_0 : i32
    scf.if %2 {
      %cst_10 = arith.constant 0.000000e+00 : f32
      %12 = vector.broadcast %cst_10 : f32 to vector<512x128xf32>
      %c0_11 = arith.constant 0 : index
      %c0_12 = arith.constant 0 : index
      %13 = vector.load %arg5[%c0_11, %c0_12] : memref<512x128xf32, #tpu.memory_space<vmem>>, vector<512x128xf32>
      tpu.vector_store %arg5[%c0_11, %c0_12], %12 {strides = array<i32>} : memref<512x128xf32, #tpu.memory_space<vmem>>, vector<512x128xf32>,
    } else {
    }
    %c0 = arith.constant 0 : index
    %c0_1 = arith.constant 0 : index
    %3 = vector.load %arg5[%c0, %c0_1] : memref<512x128xf32, #tpu.memory_space<vmem>>, vector<512x128xf32>
    %c0_2 = arith.constant 0 : index
    %c0_3 = arith.constant 0 : index
    %4 = vector.load %arg2[%c0_2, %c0_3] : memref<512x64xbf16, #tpu.memory_space<vmem>>, vector<512x64xbf16>
    %c0_4 = arith.constant 0 : index
    %c0_5 = arith.constant 0 : index
    %5 = vector.load %arg3[%c0_4, %c0_5] : memref<64x128xbf16, #tpu.memory_space<vmem>>, vector<64x128xbf16>
    %cst = arith.constant dense<0.000000e+00> : vector<512x128xf32>
    %6 = tpu.matmul %4, %5, %cst {dimension_numbers = #tpu.dot_dimension_numbers<[1], [0], [0], [1], [0, 0, 1, 1], [], []>} : vector<512x64xbf16>, vector<64x128xbf16>, vector<512x128xf32> -> vector<512x128xf32>
    %7 = arith.addf %3, %6 : vector<512x128xf32>
    %c0_6 = arith.constant 0 : index
    %c0_7 = arith.constant 0 : index
    %8 = vector.load %arg5[%c0_6, %c0_7] : memref<512x128xf32, #tpu.memory_space<vmem>>, vector<512x128xf32>
    tpu.vector_store %arg5[%c0_6, %c0_7], %7 {strides = array<i32>} : memref<512x128xf32, #tpu.memory_space<vmem>>, vector<512x128xf32>,
    %c0_i32_8 = arith.constant 0 : i32
    %9 = arith.cmpi eq, %arg1, %c0_i32_8 : i32
    %10 = arith.extui %9 : i1 to i32
    %c0_i32_9 = arith.constant 0 : i32
    %11 = arith.cmpi ne, %10, %c0_i32_9 : i32
    scf.if %11 {
      %c0_10 = arith.constant 0 : index
      %c0_11 = arith.constant 0 : index
      %12 = vector.load %arg5[%c0_10, %c0_11] : memref<512x128xf32, #tpu.memory_space<vmem>>, vector<512x128xf32>
      %c0_12 = arith.constant 0 : index
      %c0_13 = arith.constant 0 : index
      %13 = vector.load %arg4[%c0_12, %c0_13] : memref<512x128xf32, #tpu.memory_space<vmem>>, vector<512x128xf32>
      tpu.vector_store %arg4[%c0_12, %c0_13], %12 {strides = array<i32>} : memref<512x128xf32, #tpu.memory_space<vmem>>, vector<512x128xf32>,
    } else {
    }
    return
  }
  func.func @transform_0(%arg0: i32, %arg1: i32) -> (i32, i32) {
    %c0_i32 = arith.constant 0 : i32
    return %arg0, %arg1 : i32, i32
  }
  func.func @transform_1(%arg0: i32, %arg1: i32) -> (i32, i32) {
    %c0_i32 = arith.constant 0 : i32
    %c0_i32_0 = arith.constant 0 : i32
    return %arg1, %c0_i32 : i32, i32
  }
  func.func @transform_2(%arg0: i32, %arg1: i32) -> (i32, i32) {
    %c0_i32 = arith.constant 0 : i32
    %c0_i32_0 = arith.constant 0 : i32
    return %arg0, %c0_i32 : i32, i32
  }
}

module attributes {stable_mosaic.version = 11 : i64} {
  func.func @_affine_relu_kernel(%arg0: i32, %arg1: memref<64x256xf32, #tpu.memory_space<vmem>>, %arg2: memref<1x256xf32, #tpu.memory_space<vmem>>, %arg3: memref<1x256xf32, #tpu.memory_space<vmem>>, %arg4: memref<64x256xf32, #tpu.memory_space<vmem>>) attributes {dimension_semantics = [#tpu.dimension_semantics<parallel>], iteration_bounds = array<i64: 1>, scalar_prefetch = 0 : i64, scratch_operands = 0 : i64, tpu.core_type = #tpu.core_type<tc>, window_params = [{transform_indices = @transform_0, window_bounds = array<i64: 64, 256>}, {pipeline_mode = #tpu.pipeline_mode<synchronous>, transform_indices = @transform_1, window_bounds = array<i64: 1, 256>}, {pipeline_mode = #tpu.pipeline_mode<synchronous>, transform_indices = @transform_2, window_bounds = array<i64: 1, 256>}, {transform_indices = @transform_3, window_bounds = array<i64: 64, 256>}]} {
    %c0 = arith.constant 0 : index
    %c0_0 = arith.constant 0 : index
    %0 = vector.load %arg1[%c0, %c0_0] : memref<64x256xf32, #tpu.memory_space<vmem>>, vector<64x256xf32>
    %c0_1 = arith.constant 0 : index
    %c0_2 = arith.constant 0 : index
    %1 = vector.load %arg2[%c0_1, %c0_2] : memref<1x256xf32, #tpu.memory_space<vmem>>, vector<1x256xf32>
    %2 = vector.broadcast %1 : vector<1x256xf32> to vector<64x256xf32>
    %3 = arith.mulf %0, %2 : vector<64x256xf32>
    %c0_3 = arith.constant 0 : index
    %c0_4 = arith.constant 0 : index
    %4 = vector.load %arg3[%c0_3, %c0_4] : memref<1x256xf32, #tpu.memory_space<vmem>>, vector<1x256xf32>
    %5 = vector.broadcast %4 : vector<1x256xf32> to vector<64x256xf32>
    %6 = arith.addf %3, %5 : vector<64x256xf32>
    %cst = arith.constant 0.000000e+00 : f32
    %7 = vector.broadcast %cst : f32 to vector<64x256xf32>
    %8 = arith.maximumf %6, %7 : vector<64x256xf32>
    %c0_5 = arith.constant 0 : index
    %c0_6 = arith.constant 0 : index
    %9 = vector.load %arg4[%c0_5, %c0_6] : memref<64x256xf32, #tpu.memory_space<vmem>>, vector<64x256xf32>
    tpu.vector_store %arg4[%c0_5, %c0_6], %8 {strides = array<i32>} : memref<64x256xf32, #tpu.memory_space<vmem>>, vector<64x256xf32>,
    return
  }
  func.func @transform_0(%arg0: i32) -> (i32, i32) {
    %c0_i32 = arith.constant 0 : i32
    %c0_i32_0 = arith.constant 0 : i32
    return %arg0, %c0_i32 : i32, i32
  }
  func.func @transform_1(%arg0: i32) -> (i32, i32) {
    %c0_i32 = arith.constant 0 : i32
    %c0_i32_0 = arith.constant 0 : i32
    %c0_i32_1 = arith.constant 0 : i32
    return %c0_i32, %c0_i32_0 : i32, i32
  }
  func.func @transform_2(%arg0: i32) -> (i32, i32) {
    %c0_i32 = arith.constant 0 : i32
    %c0_i32_0 = arith.constant 0 : i32
    %c0_i32_1 = arith.constant 0 : i32
    return %c0_i32, %c0_i32_0 : i32, i32
  }
  func.func @transform_3(%arg0: i32) -> (i32, i32) {
    %c0_i32 = arith.constant 0 : i32
    %c0_i32_0 = arith.constant 0 : i32
    return %arg0, %c0_i32 : i32, i32
  }
}

module attributes {stable_mosaic.version = 11 : i64} {
  func.func @_matmul_kernel(%arg0: i32, %arg1: i32, %arg2: memref<512x32xbf16, #tpu.memory_space<vmem>>, %arg3: memref<32x128xbf16, #tpu.memory_space<vmem>>, %arg4: memref<512x128xf32, #tpu.memory_space<vmem>>, %arg5: memref<512x128xf32, #tpu.memory_space<vmem>>) attributes {dimension_semantics = [#tpu.dimension_semantics<parallel>, #tpu.dimension_semantics<arbitrary>], iteration_bounds = array<i64: 5, 1>, scalar_prefetch = 0 : i64, scratch_operands = 1 : i64, tpu.core_type = #tpu.core_type<tc>, window_params = [{transform_indices = @transform_0, window_bounds = array<i64: 512, 32>}, {transform_indices = @transform_1, window_bounds = array<i64: 32, 128>}, {transform_indices = @transform_2, window_bounds = array<i64: 512, 128>}]} {
    %c0_i32 = arith.constant 0 : i32
    %0 = arith.cmpi eq, %arg1, %c0_i32 : i32
    %1 = arith.extui %0 : i1 to i32
    %c0_i32_0 = arith.constant 0 : i32
    %2 = arith.cmpi ne, %1, %c0_i32_0 : i32
    scf.if %2 {
      %cst_10 = arith.constant 0.000000e+00 : f32
      %12 = vector.broadcast %cst_10 : f32 to vector<512x128xf32>
      %c0_11 = arith.constant 0 : index
      %c0_12 = arith.constant 0 : index
      %13 = vector.load %arg5[%c0_11, %c0_12] : memref<512x128xf32, #tpu.memory_space<vmem>>, vector<512x128xf32>
      tpu.vector_store %arg5[%c0_11, %c0_12], %12 {strides = array<i32>} : memref<512x128xf32, #tpu.memory_space<vmem>>, vector<512x128xf32>,
    } else {
    }
    %c0 = arith.constant 0 : index
    %c0_1 = arith.constant 0 : index
    %3 = vector.load %arg5[%c0, %c0_1] : memref<512x128xf32, #tpu.memory_space<vmem>>, vector<512x128xf32>
    %c0_2 = arith.constant 0 : index
    %c0_3 = arith.constant 0 : index
    %4 = vector.load %arg2[%c0_2, %c0_3] : memref<512x32xbf16, #tpu.memory_space<vmem>>, vector<512x32xbf16>
    %c0_4 = arith.constant 0 : index
    %c0_5 = arith.constant 0 : index
    %5 = vector.load %arg3[%c0_4, %c0_5] : memref<32x128xbf16, #tpu.memory_space<vmem>>, vector<32x128xbf16>
    %cst = arith.constant dense<0.000000e+00> : vector<512x128xf32>
    %6 = tpu.matmul %4, %5, %cst {dimension_numbers = #tpu.dot_dimension_numbers<[1], [0], [0], [1], [0, 0, 1, 1], [], []>} : vector<512x32xbf16>, vector<32x128xbf16>, vector<512x128xf32> -> vector<512x128xf32>
    %7 = arith.addf %3, %6 : vector<512x128xf32>
    %c0_6 = arith.constant 0 : index
    %c0_7 = arith.constant 0 : index
    %8 = vector.load %arg5[%c0_6, %c0_7] : memref<512x128xf32, #tpu.memory_space<vmem>>, vector<512x128xf32>
    tpu.vector_store %arg5[%c0_6, %c0_7], %7 {strides = array<i32>} : memref<512x128xf32, #tpu.memory_space<vmem>>, vector<512x128xf32>,
    %c0_i32_8 = arith.constant 0 : i32
    %9 = arith.cmpi eq, %arg1, %c0_i32_8 : i32
    %10 = arith.extui %9 : i1 to i32
    %c0_i32_9 = arith.constant 0 : i32
    %11 = arith.cmpi ne, %10, %c0_i32_9 : i32
    scf.if %11 {
      %c0_10 = arith.constant 0 : index
      %c0_11 = arith.constant 0 : index
      %12 = vector.load %arg5[%c0_10, %c0_11] : memref<512x128xf32, #tpu.memory_space<vmem>>, vector<512x128xf32>
      %13 = math.tanh %12 : vector<512x128xf32>
      %c0_12 = arith.constant 0 : index
      %c0_13 = arith.constant 0 : index
      %14 = vector.load %arg4[%c0_12, %c0_13] : memref<512x128xf32, #tpu.memory_space<vmem>>, vector<512x128xf32>
      tpu.vector_store %arg4[%c0_12, %c0_13], %13 {strides = array<i32>} : memref<512x128xf32, #tpu.memory_space<vmem>>, vector<512x128xf32>,
    } else {
    }
    return
  }
  func.func @transform_0(%arg0: i32, %arg1: i32) -> (i32, i32) {
    %c0_i32 = arith.constant 0 : i32
    return %arg0, %arg1 : i32, i32
  }
  func.func @transform_1(%arg0: i32, %arg1: i32) -> (i32, i32) {
    %c0_i32 = arith.constant 0 : i32
    %c0_i32_0 = arith.constant 0 : i32
    return %arg1, %c0_i32 : i32, i32
  }
  func.func @transform_2(%arg0: i32, %arg1: i32) -> (i32, i32) {
    %c0_i32 = arith.constant 0 : i32
    %c0_i32_0 = arith.constant 0 : i32
    return %arg0, %c0_i32 : i32, i32
  }
}

</mosaic_0001>

<llo_original>
// kernel: tile.48
$region0: #{tile.48}
  #allocation0 [shape = 's32[1]{0}', space=sflag, size = 0x4, scoped, tag = 'scoped memory for tile.48']
  %s0 = inlined_call_operand.vmem [shape: f32[64], index: 0, kind: input, shape index: {}]
  %s1 = inlined_call_operand.vmem [shape: f32[4,64], index: 1, kind: output, shape index: {}]
  // Predicated region
  $region2: #{tile.48} parent=0 // pred_check
    _
  $region3: #{tile.48} parent=0 // pred_check_branch
    %3 = sbr.rel (0) target = $region5
  $region4: #{tile.48} parent=0 // pred_region
    _
  $region5: #{tile.48} parent=0 // pred_fallthru
    _
  %v4 = vld [vmem:[%s0] ss:$0 sm:$0xff]
  %5 = vst [vmem:[%s1] sm:$0xf] %v4

// kernel: tile.49
$region0: #{tile.49}
  %s0 = inlined_call_operand.vmem [shape: f32[4,64], index: 0, kind: input, shape index: {}]
  %s1 = inlined_call_operand.vmem [shape: f32[1,256], index: 1, kind: output, shape index: {}]
  $region1: #{tile.49} parent=0
    #allocation0 [shape = 'u8[8192]{0}', space=vmem, size = 0x2000, scoped, tag = 'scoped mem for output reshape']
    #allocation1 [shape = 'u8[4096]{0}', space=vmem, size = 0x1000, scoped, tag = 'scoped mem for input reshape']
    %s3 = sshllo.u32 0, 4
    %v4 = vld [vmem:[%s0] sm:%s3]
    %5 = vst [vmem:[#allocation1] sm:%s3] %v4
    %s6 = smov 3
    %v7 = vld [vmem:[#allocation1] ss:$2 sm:%s6]
    %vm8 = vcmask 523264
    %9 = vst.msk [vmem:[#allocation0] ss:$8 sm:$0x3] %vm8, %v7
    %s10 = scalar_lea.vmem [#allocation1], 1
    %s11 = smov 3
    %v12 = vld [vmem:[%s10] ss:$2 sm:%s11]
    %13 = vrot.lane.b32.xlu0 %v12, 64
    %v14 = vpop.permute.xlu0 %13
    %vm15 = vcmask 1048064
    %16 = vst.msk [vmem:[#allocation0] ss:$8 sm:$0x3] %vm15, %v14
    %s18 = sshllo.u32 0, 1
    %v20 = vld [vmem:[#allocation0] sm:%s18]
    %s21 = sshllo.u32 0, 1
    %22 = vst [vmem:[%s1] sm:%s21] %v20
    %s23 = scalar_lea.vmem [#allocation0], 8
    %v24 = vld [vmem:[%s23] sm:%s18]
    %s25 = sshllo.u32 0, 1
    %s26 = scalar_lea.vmem %s1, 1
    %27 = vst [vmem:[%s26] sm:%s25] %v24

// kernel: generator_forward.10
$region0: #{generator_forward.10}
  #allocation0 [shape = 'u32[]', space=smem, size = 0x4, offset = 0x4, fixed_abs, tag = 'smem constant byte address 0x4 - core index']
  #allocation1 [shape = 'u32[144,128]{1,0:T(1,128)}', space=vmem, size = 0x12000, scoped, tag = 'internal scratch']
  %s0 = inlined_call_operand.vmem [shape: f32[8,256], index: 0, kind: input, shape index: {}]
  %s1 = inlined_call_operand.vmem [shape: f32[1,256], index: 1, kind: input, shape index: {}]
  %s2 = inlined_call_operand.vmem [shape: f32[1,256], index: 2, kind: input, shape index: {}]
  %s3 = inlined_call_operand.vmem [shape: f32[8,256], index: 3, kind: output, shape index: {}]
  %s4 = sld [smem:[#allocation0]]
  $region22: #{generator_forward.10} parent=0
    _
  %s6 = ssub.s32 1, %s4
  %s7 = scalar_select 0, %s6, %s4
  // Predicated region
  $region2: #{generator_forward.10} parent=0 // pred_check
    _
  $region3: #{generator_forward.10} parent=0 // pred_check_branch
    %9 = sbr.rel (0) target = $region5
  $region4: #{generator_forward.10} parent=0 // pred_region
    _
  $region5: #{generator_forward.10} parent=0 // pred_fallthru
    _
  // Predicated region
  $region6: #{generator_forward.10} parent=0 // pred_check
    _
  $region7: #{generator_forward.10} parent=0 // pred_check_branch
    %11 = sbr.rel (0) target = $region9
  $region8: #{generator_forward.10} parent=0 // pred_region
    _
  $region9: #{generator_forward.10} parent=0 // pred_fallthru
    _
  // Predicated region
  $region10: #{generator_forward.10} parent=0 // pred_check
    _
  $region11: #{generator_forward.10} parent=0 // pred_check_branch
    %13 = sbr.rel (0) target = $region13
  $region12: #{generator_forward.10} parent=0 // pred_region
    _
  $region13: #{generator_forward.10} parent=0 // pred_fallthru
    _
  %v14 = vld [vmem:[%s0] sm:$0xff]
  %v15 = vld [vmem:[%s0 + $0x8] sm:$0xff]
  %v16 = vld [vmem:[%s1] sm:$0x3]
  %v18 = vlaneseq
  %v19 = vshrl.u32 %v18, 7
  %v20 = vsub.s32 0, %v19
  %v21 = vrot.slane %v16, %v20
  %v22 = vlaneseq
  %v23 = vshrl.u32 %v22, 7
  %v24 = vsub.s32 1, %v23
  %v25 = vrot.slane %v16, %v24
  %v28 = vmul.f32 %v14, %v21
  %v29 = vmul.f32 %v15, %v25
  %v30 = vld [vmem:[%s2] sm:$0x3]
  %v32 = vlaneseq
  %v33 = vshrl.u32 %v32, 7
  %v34 = vsub.s32 0, %v33
  %v35 = vrot.slane %v30, %v34
  %v36 = vlaneseq
  %v37 = vshrl.u32 %v36, 7
  %v38 = vsub.s32 1, %v37
  %v39 = vrot.slane %v30, %v38
  %v42 = vadd.f32 %v28, %v35
  %v43 = vadd.f32 %v29, %v39
  %v44 = vmax.f32 %v42, 0.0
  %v45 = vmax.f32 %v43, 0.0
  %46 = vst [vmem:[%s3] sm:$0xff] %v44
  %47 = vst [vmem:[%s3 + $0x8] sm:$0xff] %v45
  // Predicated region
  $region14: #{generator_forward.10} parent=0 // pred_check
    _
  $region15: #{generator_forward.10} parent=0 // pred_check_branch
    %49 = sbr.rel (0) target = $region17
  $region16: #{generator_forward.10} parent=0 // pred_region
    _
  $region17: #{generator_forward.10} parent=0 // pred_fallthru
    _
  // Predicated region
  $region18: #{generator_forward.10} parent=0 // pred_check
    _
  $region19: #{generator_forward.10} parent=0 // pred_check_branch
    %51 = sbr.rel (0) target = $region21
  $region20: #{generator_forward.10} parent=0 // pred_region
    _
  $region21: #{generator_forward.10} parent=0 // pred_fallthru
    _

// kernel: generator_forward.9
$region0: #{generator_forward.9}
  #allocation0 [shape = 'u32[]', space=smem, size = 0x4, offset = 0x4, fixed_abs, tag = 'smem constant byte address 0x4 - core index']
  #allocation1 [shape = 'u32[144,128]{1,0:T(1,128)}', space=vmem, size = 0x12000, scoped, tag = 'internal scratch']
  #allocation2 [shape = 'f32[8,1024]{1,0:T(8,128)}', space=vmem, size = 0x8000, scoped, tag = 'scratch operand']
  %s0 = inlined_call_operand.vmem [shape: bf16[8,8], index: 0, kind: input, shape index: {}]
  %s1 = inlined_call_operand.vmem [shape: bf16[8,1024], index: 1, kind: input, shape index: {}]
  %s2 = inlined_call_operand.vmem [shape: f32[8,1024], index: 2, kind: output, shape index: {}]
  %s3 = sld [smem:[#allocation0]]
  $region26: #{generator_forward.9} parent=0
    _
  %s5 = ssub.s32 1, %s3
  %s6 = scalar_select 0, %s5, %s3
  // Predicated region
  $region2: #{generator_forward.9} parent=0 // pred_check
    _
  $region3: #{generator_forward.9} parent=0 // pred_check_branch
    %8 = sbr.rel (0) target = $region5
  $region4: #{generator_forward.9} parent=0 // pred_region
    _
  $region5: #{generator_forward.9} parent=0 // pred_fallthru
    _
  // Predicated region
  $region6: #{generator_forward.9} parent=0 // pred_check
    _
  $region7: #{generator_forward.9} parent=0 // pred_check_branch
    %10 = sbr.rel (0) target = $region9
  $region8: #{generator_forward.9} parent=0 // pred_region
    _
  $region9: #{generator_forward.9} parent=0 // pred_fallthru
    _
  %p12 = scmp.eq.s32.totalorder 0, 0
  // Predicated region
  $region10: #{generator_forward.9} parent=0 // pred_check
    %p13 = pneg %p12
  $region11: #{generator_forward.9} parent=0 // pred_check_branch
    %15 = sbr.rel (%p13) target = $region13
  $region12: #{generator_forward.9} parent=0 // pred_region
    %16 = vst [vmem:[#allocation2] sm:$0xff] 0.0
    %17 = vst [vmem:[#allocation2 + $0x8] sm:$0xff] 0.0
    %18 = vst [vmem:[#allocation2 + $0x10] sm:$0xff] 0.0
    %19 = vst [vmem:[#allocation2 + $0x18] sm:$0xff] 0.0
    %20 = vst [vmem:[#allocation2 + $0x20] sm:$0xff] 0.0
    %21 = vst [vmem:[#allocation2 + $0x28] sm:$0xff] 0.0
    %22 = vst [vmem:[#allocation2 + $0x30] sm:$0xff] 0.0
    %23 = vst [vmem:[#allocation2 + $0x38] sm:$0xff] 0.0
  $region13: #{generator_forward.9} parent=0 // pred_fallthru
    _
  %v24 = vld [vmem:[#allocation2] sm:$0xff]
  %v25 = vld [vmem:[#allocation2 + $0x8] sm:$0xff]
  %v26 = vld [vmem:[#allocation2 + $0x10] sm:$0xff]
  %v27 = vld [vmem:[#allocation2 + $0x18] sm:$0xff]
  %v28 = vld [vmem:[#allocation2 + $0x20] sm:$0xff]
  %v29 = vld [vmem:[#allocation2 + $0x28] sm:$0xff]
  %v30 = vld [vmem:[#allocation2 + $0x30] sm:$0xff]
  %v31 = vld [vmem:[#allocation2 + $0x38] sm:$0xff]
  %v32 = vld [vmem:[%s0] sm:$0xf]
  %v33 = vld [vmem:[%s1] sm:$0xff]
  %v34 = vld [vmem:[%s1 + $0x8] sm:$0xff]
  %v35 = vld [vmem:[%s1 + $0x10] sm:$0xff]
  %v36 = vld [vmem:[%s1 + $0x18] sm:$0xff]
  %v41 = vunpack.c.l.b16 %v33
  %v42 = vunpack.c.h.b16 %v33
  %v43 = vunpack.c.l.b16 %v34
  %v44 = vunpack.c.h.b16 %v34
  %v45 = vunpack.c.l.b16 %v35
  %v46 = vunpack.c.h.b16 %v35
  %v47 = vunpack.c.l.b16 %v36
  %v48 = vunpack.c.h.b16 %v36
  %v49 = vpack.c.b16 %v41, %v41
  %v50 = vpack.c.b16 %v42, %v42
  %v51 = vpack.c.b16 %v43, %v43
  %v52 = vpack.c.b16 %v44, %v44
  %v53 = vpack.c.b16 %v45, %v45
  %v54 = vpack.c.b16 %v46, %v46
  %v55 = vpack.c.b16 %v47, %v47
  %v56 = vpack.c.b16 %v48, %v48
  %vm57 = vcmask 64512
  %v59 = vsel %vm57, %v32, 0
  %vm61 = vcmask 1043456
  %v63 = vsel %vm61, %v49, 0
  %v66 = vsel %vm61, %v50, 0
  %v69 = vsel %vm61, %v51, 0
  %v72 = vsel %vm61, %v52, 0
  %v75 = vsel %vm61, %v53, 0
  %v78 = vsel %vm61, %v54, 0
  %v81 = vsel %vm61, %v55, 0
  %v84 = vsel %vm61, %v56, 0
  %86 = vmatprep.subr.bf16.mxu0 %v66
  %87 = vmatpush1.bf16.msra.mxu0 %v63
  %88 = vmatprep.subr.bf16.mxu0 0
  %89 = vmatpush1.bf16.msra.mxu0 0
  %90 = vmatprep.subr.bf16.mxu0 0
  %91 = vmatpush1.bf16.msra.mxu0 0
  %92 = vmatprep.subr.bf16.mxu0 0
  %93 = vmatpush1.bf16.msra.mxu0 0
  %94 = vmatprep.subr.bf16.mxu0 0
  %95 = vmatpush1.bf16.msra.mxu0 0
  %96 = vmatprep.subr.bf16.mxu0 0
  %97 = vmatpush1.bf16.msra.mxu0 0
  %98 = vmatprep.subr.bf16.mxu0 0
  %99 = vmatpush1.bf16.msra.mxu0 0
  %100 = vmatprep.subr.bf16.mxu0 0
  %101 = vmatpush1.bf16.msra.mxu0 0
  %102 = vmatprep.subr.bf16.mxu0 0
  %103 = vmatpush1.bf16.msra.mxu0 0
  %104 = vmatprep.subr.bf16.mxu0 0
  %105 = vmatpush1.bf16.msra.mxu0 0
  %106 = vmatprep.subr.bf16.mxu0 0
  %107 = vmatpush1.bf16.msra.mxu0 0
  %108 = vmatprep.subr.bf16.mxu0 0
  %109 = vmatpush1.bf16.msra.mxu0 0
  %110 = vmatprep.subr.bf16.mxu0 0
  %111 = vmatpush1.bf16.msra.mxu0 0
  %112 = vmatprep.subr.bf16.mxu0 0
  %113 = vmatpush1.bf16.msra.mxu0 0
  %114 = vmatprep.subr.bf16.mxu0 0
  %115 = vmatpush1.bf16.msra.mxu0 0
  %116 = vmatprep.subr.bf16.mxu0 0
  %117 = vmatpush1.bf16.msra.mxu0 0
  %118 = vmatprep.mubr.bf16.mxu0 0
  %119 = vmatmul.mubr.bf16.gmra.mrb[0].mxu0 %v59
  %v120 = vpop.f32.mrb[0].mxu0
  %v121 = vadd.f32 0.0, %v120
  %v122 = vpop.f32.mrb[0].mxu0
  %v123 = vadd.f32 0.0, %v122
  %v124 = vpop.f32.mrb[0].mxu0
  %v125 = vpop.f32.mrb[0].mxu0
  %126 = vdwg.mxu0
  %127 = vmatprep.subr.bf16.mxu0 %v72
  %128 = vmatpush1.bf16.msra.mxu0 %v69
  %129 = vmatprep.subr.bf16.mxu0 0
  %130 = vmatpush1.bf16.msra.mxu0 0
  %131 = vmatprep.subr.bf16.mxu0 0
  %132 = vmatpush1.bf16.msra.mxu0 0
  %133 = vmatprep.subr.bf16.mxu0 0
  %134 = vmatpush1.bf16.msra.mxu0 0
  %135 = vmatprep.subr.bf16.mxu0 0
  %136 = vmatpush1.bf16.msra.mxu0 0
  %137 = vmatprep.subr.bf16.mxu0 0
  %138 = vmatpush1.bf16.msra.mxu0 0
  %139 = vmatprep.subr.bf16.mxu0 0
  %140 = vmatpush1.bf16.msra.mxu0 0
  %141 = vmatprep.subr.bf16.mxu0 0
  %142 = vmatpush1.bf16.msra.mxu0 0
  %143 = vmatprep.subr.bf16.mxu0 0
  %144 = vmatpush1.bf16.msra.mxu0 0
  %145 = vmatprep.subr.bf16.mxu0 0
  %146 = vmatpush1.bf16.msra.mxu0 0
  %147 = vmatprep.subr.bf16.mxu0 0
  %148 = vmatpush1.bf16.msra.mxu0 0
  %149 = vmatprep.subr.bf16.mxu0 0
  %150 = vmatpush1.bf16.msra.mxu0 0
  %151 = vmatprep.subr.bf16.mxu0 0
  %152 = vmatpush1.bf16.msra.mxu0 0
  %153 = vmatprep.subr.bf16.mxu0 0
  %154 = vmatpush1.bf16.msra.mxu0 0
  %155 = vmatprep.subr.bf16.mxu0 0
  %156 = vmatpush1.bf16.msra.mxu0 0
  %157 = vmatprep.subr.bf16.mxu0 0
  %158 = vmatpush1.bf16.msra.mxu0 0
  %159 = vmatprep.mubr.bf16.mxu0 0
  %160 = vmatmul.mubr.bf16.gmra.mrb[0].mxu0 %v59
  %v161 = vpop.f32.mrb[0].mxu0
  %v162 = vadd.f32 0.0, %v161
  %v163 = vpop.f32.mrb[0].mxu0
  %v164 = vadd.f32 0.0, %v163
  %v165 = vpop.f32.mrb[0].mxu0
  %v166 = vpop.f32.mrb[0].mxu0
  %167 = vdwg.mxu0
  %168 = vmatprep.subr.bf16.mxu0 %v78
  %169 = vmatpush1.bf16.msra.mxu0 %v75
  %170 = vmatprep.subr.bf16.mxu0 0
  %171 = vmatpush1.bf16.msra.mxu0 0
  %172 = vmatprep.subr.bf16.mxu0 0
  %173 = vmatpush1.bf16.msra.mxu0 0
  %174 = vmatprep.subr.bf16.mxu0 0
  %175 = vmatpush1.bf16.msra.mxu0 0
  %176 = vmatprep.subr.bf16.mxu0 0
  %177 = vmatpush1.bf16.msra.mxu0 0
  %178 = vmatprep.subr.bf16.mxu0 0
  %179 = vmatpush1.bf16.msra.mxu0 0
  %180 = vmatprep.subr.bf16.mxu0 0
  %181 = vmatpush1.bf16.msra.mxu0 0
  %182 = vmatprep.subr.bf16.mxu0 0
  %183 = vmatpush1.bf16.msra.mxu0 0
  %184 = vmatprep.subr.bf16.mxu0 0
  %185 = vmatpush1.bf16.msra.mxu0 0
  %186 = vmatprep.subr.bf16.mxu0 0
  %187 = vmatpush1.bf16.msra.mxu0 0
  %188 = vmatprep.subr.bf16.mxu0 0
  %189 = vmatpush1.bf16.msra.mxu0 0
  %190 = vmatprep.subr.bf16.mxu0 0
  %191 = vmatpush1.bf16.msra.mxu0 0
  %192 = vmatprep.subr.bf16.mxu0 0
  %193 = vmatpush1.bf16.msra.mxu0 0
  %194 = vmatprep.subr.bf16.mxu0 0
  %195 = vmatpush1.bf16.msra.mxu0 0
  %196 = vmatprep.subr.bf16.mxu0 0
  %197 = vmatpush1.bf16.msra.mxu0 0
  %198 = vmatprep.subr.bf16.mxu0 0
  %199 = vmatpush1.bf16.msra.mxu0 0
  %200 = vmatprep.mubr.bf16.mxu0 0
  %201 = vmatmul.mubr.bf16.gmra.mrb[0].mxu0 %v59
  %v202 = vpop.f32.mrb[0].mxu0
  %v203 = vadd.f32 0.0, %v202
  %v204 = vpop.f32.mrb[0].mxu0
  %v205 = vadd.f32 0.0, %v204
  %v206 = vpop.f32.mrb[0].mxu0
  %v207 = vpop.f32.mrb[0].mxu0
  %208 = vdwg.mxu0
  %209 = vmatprep.subr.bf16.mxu0 %v84
  %210 = vmatpush1.bf16.msra.mxu0 %v81
  %211 = vmatprep.subr.bf16.mxu0 0
  %212 = vmatpush1.bf16.msra.mxu0 0
  %213 = vmatprep.subr.bf16.mxu0 0
  %214 = vmatpush1.bf16.msra.mxu0 0
  %215 = vmatprep.subr.bf16.mxu0 0
  %216 = vmatpush1.bf16.msra.mxu0 0
  %217 = vmatprep.subr.bf16.mxu0 0
  %218 = vmatpush1.bf16.msra.mxu0 0
  %219 = vmatprep.subr.bf16.mxu0 0
  %220 = vmatpush1.bf16.msra.mxu0 0
  %221 = vmatprep.subr.bf16.mxu0 0
  %222 = vmatpush1.bf16.msra.mxu0 0
  %223 = vmatprep.subr.bf16.mxu0 0
  %224 = vmatpush1.bf16.msra.mxu0 0
  %225 = vmatprep.subr.bf16.mxu0 0
  %226 = vmatpush1.bf16.msra.mxu0 0
  %227 = vmatprep.subr.bf16.mxu0 0
  %228 = vmatpush1.bf16.msra.mxu0 0
  %229 = vmatprep.subr.bf16.mxu0 0
  %230 = vmatpush1.bf16.msra.mxu0 0
  %231 = vmatprep.subr.bf16.mxu0 0
  %232 = vmatpush1.bf16.msra.mxu0 0
  %233 = vmatprep.subr.bf16.mxu0 0
  %234 = vmatpush1.bf16.msra.mxu0 0
  %235 = vmatprep.subr.bf16.mxu0 0
  %236 = vmatpush1.bf16.msra.mxu0 0
  %237 = vmatprep.subr.bf16.mxu0 0
  %238 = vmatpush1.bf16.msra.mxu0 0
  %239 = vmatprep.subr.bf16.mxu0 0
  %240 = vmatpush1.bf16.msra.mxu0 0
  %241 = vmatprep.mubr.bf16.mxu0 0
  %242 = vmatmul.mubr.bf16.gmra.mrb[0].mxu0 %v59
  %v243 = vpop.f32.mrb[0].mxu0
  %v244 = vadd.f32 0.0, %v243
  %v245 = vpop.f32.mrb[0].mxu0
  %v246 = vadd.f32 0.0, %v245
  %v247 = vpop.f32.mrb[0].mxu0
  %v248 = vpop.f32.mrb[0].mxu0
  %249 = vdwg.mxu0
  %v250 = vadd.f32 %v24, %v121
  %v251 = vadd.f32 %v25, %v123
  %v252 = vadd.f32 %v26, %v162
  %v253 = vadd.f32 %v27, %v164
  %v254 = vadd.f32 %v28, %v203
  %v255 = vadd.f32 %v29, %v205
  %v256 = vadd.f32 %v30, %v244
  %v257 = vadd.f32 %v31, %v246
  %258 = vst [vmem:[#allocation2] sm:$0xff] %v250
  %259 = vst [vmem:[#allocation2 + $0x8] sm:$0xff] %v251
  %260 = vst [vmem:[#allocation2 + $0x10] sm:$0xff] %v252
  %261 = vst [vmem:[#allocation2 + $0x18] sm:$0xff] %v253
  %262 = vst [vmem:[#allocation2 + $0x20] sm:$0xff] %v254
  %263 = vst [vmem:[#allocation2 + $0x28] sm:$0xff] %v255
  %264 = vst [vmem:[#allocation2 + $0x30] sm:$0xff] %v256
  %265 = vst [vmem:[#allocation2 + $0x38] sm:$0xff] %v257
  // Predicated region
  $region14: #{generator_forward.9} parent=0 // pred_check
    %p266 = pneg %p12
  $region15: #{generator_forward.9} parent=0 // pred_check_branch
    %268 = sbr.rel (%p266) target = $region17
  $region16: #{generator_forward.9} parent=0 // pred_region
    %v269 = vld [vmem:[#allocation2] sm:$0xff]
    %v270 = vld [vmem:[#allocation2 + $0x8] sm:$0xff]
    %v271 = vld [vmem:[#allocation2 + $0x10] sm:$0xff]
    %v272 = vld [vmem:[#allocation2 + $0x18] sm:$0xff]
    %v273 = vld [vmem:[#allocation2 + $0x20] sm:$0xff]
    %v274 = vld [vmem:[#allocation2 + $0x28] sm:$0xff]
    %v275 = vld [vmem:[#allocation2 + $0x30] sm:$0xff]
    %v276 = vld [vmem:[#allocation2 + $0x38] sm:$0xff]
    %277 = vst [vmem:[%s2] sm:$0xff] %v269
    %278 = vst [vmem:[%s2 + $0x8] sm:$0xff] %v270
    %279 = vst [vmem:[%s2 + $0x10] sm:$0xff] %v271
    %280 = vst [vmem:[%s2 + $0x18] sm:$0xff] %v272
    %281 = vst [vmem:[%s2 + $0x20] sm:$0xff] %v273
    %282 = vst [vmem:[%s2 + $0x28] sm:$0xff] %v274
    %283 = vst [vmem:[%s2 + $0x30] sm:$0xff] %v275
    %284 = vst [vmem:[%s2 + $0x38] sm:$0xff] %v276
  $region17: #{generator_forward.9} parent=0 // pred_fallthru
    _
  // Predicated region
  $region18: #{generator_forward.9} parent=0 // pred_check
    _
  $region19: #{generator_forward.9} parent=0 // pred_check_branch
    %286 = sbr.rel (0) target = $region21
  $region20: #{generator_forward.9} parent=0 // pred_region
    _
  $region21: #{generator_forward.9} parent=0 // pred_fallthru
    _
  // Predicated region
  $region22: #{generator_forward.9} parent=0 // pred_check
    _
  $region23: #{generator_forward.9} parent=0 // pred_check_branch
    %288 = sbr.rel (0) target = $region25
  $region24: #{generator_forward.9} parent=0 // pred_region
    _
  $region25: #{generator_forward.9} parent=0 // pred_fallthru
    _

// kernel: generator_forward.11
$region0: #{generator_forward.11}
  #allocation0 [shape = 'u32[]', space=smem, size = 0x4, offset = 0x4, fixed_abs, tag = 'smem constant byte address 0x4 - core index']
  #allocation1 [shape = 'u32[144,128]{1,0:T(1,128)}', space=vmem, size = 0x12000, scoped, tag = 'internal scratch']
  #allocation2 [shape = 'f32[56,128]{1,0:T(8,128)}', space=vmem, size = 0x7000, scoped, tag = 'scratch operand']
  %s0 = inlined_call_operand.vmem [shape: bf16[56,256], index: 0, kind: input, shape index: {}]
  %s1 = inlined_call_operand.vmem [shape: bf16[256,128], index: 1, kind: input, shape index: {}]
  %s2 = inlined_call_operand.vmem [shape: f32[56,128], index: 2, kind: output, shape index: {}]
  %s3 = sld [smem:[#allocation0]]
  $region26: #{generator_forward.11} parent=0
    _
  %s5 = ssub.s32 1, %s3
  %s6 = scalar_select 0, %s5, %s3
  // Predicated region
  $region2: #{generator_forward.11} parent=0 // pred_check
    _
  $region3: #{generator_forward.11} parent=0 // pred_check_branch
    %8 = sbr.rel (0) target = $region5
  $region4: #{generator_forward.11} parent=0 // pred_region
    _
  $region5: #{generator_forward.11} parent=0 // pred_fallthru
    _
  // Predicated region
  $region6: #{generator_forward.11} parent=0 // pred_check
    _
  $region7: #{generator_forward.11} parent=0 // pred_check_branch
    %10 = sbr.rel (0) target = $region9
  $region8: #{generator_forward.11} parent=0 // pred_region
    _
  $region9: #{generator_forward.11} parent=0 // pred_fallthru
    _
  %p12 = scmp.eq.s32.totalorder 0, 0
  // Predicated region
  $region10: #{generator_forward.11} parent=0 // pred_check
    %p13 = pneg %p12
  $region11: #{generator_forward.11} parent=0 // pred_check_branch
    %15 = sbr.rel (%p13) target = $region13
  $region12: #{generator_forward.11} parent=0 // pred_region
    %16 = vst [vmem:[#allocation2] sm:$0xff] 0.0
    %17 = vst [vmem:[#allocation2 + $0x8] sm:$0xff] 0.0
    %18 = vst [vmem:[#allocation2 + $0x10] sm:$0xff] 0.0
    %19 = vst [vmem:[#allocation2 + $0x18] sm:$0xff] 0.0
    %20 = vst [vmem:[#allocation2 + $0x20] sm:$0xff] 0.0
    %21 = vst [vmem:[#allocation2 + $0x28] sm:$0xff] 0.0
    %22 = vst [vmem:[#allocation2 + $0x30] sm:$0xff] 0.0
  $region13: #{generator_forward.11} parent=0 // pred_fallthru
    _
  %v23 = vld [vmem:[#allocation2] sm:$0xff]
  %v24 = vld [vmem:[#allocation2 + $0x8] sm:$0xff]
  %v25 = vld [vmem:[#allocation2 + $0x10] sm:$0xff]
  %v26 = vld [vmem:[#allocation2 + $0x18] sm:$0xff]
  %v27 = vld [vmem:[#allocation2 + $0x20] sm:$0xff]
  %v28 = vld [vmem:[#allocation2 + $0x28] sm:$0xff]
  %v29 = vld [vmem:[#allocation2 + $0x30] sm:$0xff]
  %v30 = vld [vmem:[%s0] sm:$0xff]
  %v31 = vld [vmem:[%s0 + $0x8] sm:$0xff]
  %v32 = vld [vmem:[%s0 + $0x10] sm:$0xff]
  %v33 = vld [vmem:[%s0 + $0x18] sm:$0xff]
  %v34 = vld [vmem:[%s0 + $0x20] sm:$0xff]
  %v35 = vld [vmem:[%s0 + $0x28] sm:$0xff]
  %v36 = vld [vmem:[%s0 + $0x30] sm:$0xff]
  %v37 = vld [vmem:[%s1] sm:$0xf]
  %v38 = vld [vmem:[%s1 + $0x4] sm:$0xf]
  %v39 = vld [vmem:[%s1 + $0x8] sm:$0xf]
  %v40 = vld [vmem:[%s1 + $0xc] sm:$0xf]
  %v41 = vld [vmem:[%s1 + $0x10] sm:$0xf]
  %v42 = vld [vmem:[%s1 + $0x14] sm:$0xf]
  %v43 = vld [vmem:[%s1 + $0x18] sm:$0xf]
  %v44 = vld [vmem:[%s1 + $0x1c] sm:$0xf]
  %v45 = vld [vmem:[%s1 + $0x20] sm:$0xf]
  %v46 = vld [vmem:[%s1 + $0x24] sm:$0xf]
  %v47 = vld [vmem:[%s1 + $0x28] sm:$0xf]
  %v48 = vld [vmem:[%s1 + $0x2c] sm:$0xf]
  %v49 = vld [vmem:[%s1 + $0x30] sm:$0xf]
  %v50 = vld [vmem:[%s1 + $0x34] sm:$0xf]
  %v51 = vld [vmem:[%s1 + $0x38] sm:$0xf]
  %v52 = vld [vmem:[%s1 + $0x3c] sm:$0xf]
  %v53 = vld [vmem:[%s1 + $0x40] sm:$0xf]
  %v54 = vld [vmem:[%s1 + $0x44] sm:$0xf]
  %v55 = vld [vmem:[%s1 + $0x48] sm:$0xf]
  %v56 = vld [vmem:[%s1 + $0x4c] sm:$0xf]
  %v57 = vld [vmem:[%s1 + $0x50] sm:$0xf]
  %v58 = vld [vmem:[%s1 + $0x54] sm:$0xf]
  %v59 = vld [vmem:[%s1 + $0x58] sm:$0xf]
  %v60 = vld [vmem:[%s1 + $0x5c] sm:$0xf]
  %v61 = vld [vmem:[%s1 + $0x60] sm:$0xf]
  %v62 = vld [vmem:[%s1 + $0x64] sm:$0xf]
  %v63 = vld [vmem:[%s1 + $0x68] sm:$0xf]
  %v64 = vld [vmem:[%s1 + $0x6c] sm:$0xf]
  %v65 = vld [vmem:[%s1 + $0x70] sm:$0xf]
  %v66 = vld [vmem:[%s1 + $0x74] sm:$0xf]
  %v67 = vld [vmem:[%s1 + $0x78] sm:$0xf]
  %v68 = vld [vmem:[%s1 + $0x7c] sm:$0xf]
  %v76 = vunpack.c.l.b16 %v30
  %v77 = vunpack.c.h.b16 %v30
  %v78 = vunpack.c.l.b16 %v31
  %v79 = vunpack.c.h.b16 %v31
  %v80 = vunpack.c.l.b16 %v32
  %v81 = vunpack.c.h.b16 %v32
  %v82 = vunpack.c.l.b16 %v33
  %v83 = vunpack.c.h.b16 %v33
  %v84 = vunpack.c.l.b16 %v34
  %v85 = vunpack.c.h.b16 %v34
  %v86 = vunpack.c.l.b16 %v35
  %v87 = vunpack.c.h.b16 %v35
  %v88 = vunpack.c.l.b16 %v36
  %v89 = vunpack.c.h.b16 %v36
  %v90 = vpack.c.b16 %v78, %v76
  %v91 = vpack.c.b16 %v79, %v77
  %v92 = vpack.c.b16 %v82, %v80
  %v93 = vpack.c.b16 %v83, %v81
  %v94 = vpack.c.b16 %v86, %v84
  %v95 = vpack.c.b16 %v87, %v85
  %v96 = vpack.c.b16 %v88, %v88
  %v97 = vpack.c.b16 %v89, %v89
  %v138 = vunpack.c.l.b16 %v37
  %v139 = vunpack.c.l.b16 %v38
  %v140 = vunpack.c.l.b16 %v39
  %v141 = vunpack.c.l.b16 %v40
  %v142 = vunpack.c.l.b16 %v41
  %v143 = vunpack.c.l.b16 %v42
  %v144 = vunpack.c.l.b16 %v43
  %v145 = vunpack.c.l.b16 %v44
  %v146 = vunpack.c.l.b16 %v45
  %v147 = vunpack.c.l.b16 %v46
  %v148 = vunpack.c.l.b16 %v47
  %v149 = vunpack.c.l.b16 %v48
  %v150 = vunpack.c.l.b16 %v49
  %v151 = vunpack.c.l.b16 %v50
  %v152 = vunpack.c.l.b16 %v51
  %v153 = vunpack.c.l.b16 %v52
  %v154 = vunpack.c.l.b16 %v53
  %v155 = vunpack.c.l.b16 %v54
  %v156 = vunpack.c.l.b16 %v55
  %v157 = vunpack.c.l.b16 %v56
  %v158 = vunpack.c.l.b16 %v57
  %v159 = vunpack.c.l.b16 %v58
  %v160 = vunpack.c.l.b16 %v59
  %v161 = vunpack.c.l.b16 %v60
  %v162 = vunpack.c.l.b16 %v61
  %v163 = vunpack.c.l.b16 %v62
  %v164 = vunpack.c.l.b16 %v63
  %v165 = vunpack.c.l.b16 %v64
  %v166 = vunpack.c.l.b16 %v65
  %v167 = vunpack.c.l.b16 %v66
  %v168 = vunpack.c.l.b16 %v67
  %v169 = vunpack.c.l.b16 %v68
  %v170 = vpack.c.b16 %v139, %v138
  %v171 = vpack.c.b16 %v141, %v140
  %v172 = vpack.c.b16 %v143, %v142
  %v173 = vpack.c.b16 %v145, %v144
  %v174 = vpack.c.b16 %v147, %v146
  %v175 = vpack.c.b16 %v149, %v148
  %v176 = vpack.c.b16 %v151, %v150
  %v177 = vpack.c.b16 %v153, %v152
  %v178 = vpack.c.b16 %v155, %v154
  %v179 = vpack.c.b16 %v157, %v156
  %v180 = vpack.c.b16 %v159, %v158
  %v181 = vpack.c.b16 %v161, %v160
  %v182 = vpack.c.b16 %v163, %v162
  %v183 = vpack.c.b16 %v165, %v164
  %v184 = vpack.c.b16 %v167, %v166
  %v185 = vpack.c.b16 %v169, %v168
  %202 = vmatprep.subr.bf16.mxu0 0
  %203 = vmatpush1.bf16.msra.mxu0 %v170
  %204 = vmatprep.subr.bf16.mxu0 0
  %205 = vmatpush1.bf16.msra.mxu0 %v171
  %206 = vmatprep.subr.bf16.mxu0 0
  %207 = vmatpush1.bf16.msra.mxu0 %v172
  %208 = vmatprep.subr.bf16.mxu0 0
  %209 = vmatpush1.bf16.msra.mxu0 %v173
  %210 = vmatprep.subr.bf16.mxu0 0
  %211 = vmatpush1.bf16.msra.mxu0 %v174
  %212 = vmatprep.subr.bf16.mxu0 0
  %213 = vmatpush1.bf16.msra.mxu0 %v175
  %214 = vmatprep.subr.bf16.mxu0 0
  %215 = vmatpush1.bf16.msra.mxu0 %v176
  %216 = vmatprep.subr.bf16.mxu0 0
  %217 = vmatpush1.bf16.msra.mxu0 %v177
  %218 = vmatprep.subr.bf16.mxu0 0
  %219 = vmatpush1.bf16.msra.mxu0 %v178
  %220 = vmatprep.subr.bf16.mxu0 0
  %221 = vmatpush1.bf16.msra.mxu0 %v179
  %222 = vmatprep.subr.bf16.mxu0 0
  %223 = vmatpush1.bf16.msra.mxu0 %v180
  %224 = vmatprep.subr.bf16.mxu0 0
  %225 = vmatpush1.bf16.msra.mxu0 %v181
  %226 = vmatprep.subr.bf16.mxu0 0
  %227 = vmatpush1.bf16.msra.mxu0 %v182
  %228 = vmatprep.subr.bf16.mxu0 0
  %229 = vmatpush1.bf16.msra.mxu0 %v183
  %230 = vmatprep.subr.bf16.mxu0 0
  %231 = vmatpush1.bf16.msra.mxu0 %v184
  %232 = vmatprep.subr.bf16.mxu0 0
  %233 = vmatpush1.bf16.msra.mxu0 %v185
  %234 = vmatprep.mubr.bf16.mxu0 %v91
  %235 = vmatmul.mubr.bf16.gmra.mrb[0].mxu0 %v90
  %v236 = vpop.f32.mrb[0].mxu0
  %v237 = vadd.f32 0.0, %v236
  %v238 = vpop.f32.mrb[0].mxu0
  %v239 = vpop.f32.mrb[0].mxu0
  %v240 = vadd.f32 0.0, %v239
  %v241 = vpop.f32.mrb[0].mxu0
  %242 = vmatprep.mubr.bf16.mxu0 %v93
  %243 = vmatmul.mubr.bf16.gmra.mrb[0].mxu0 %v92
  %v244 = vpop.f32.mrb[0].mxu0
  %v245 = vadd.f32 0.0, %v244
  %v246 = vpop.f32.mrb[0].mxu0
  %v247 = vpop.f32.mrb[0].mxu0
  %v248 = vadd.f32 0.0, %v247
  %v249 = vpop.f32.mrb[0].mxu0
  %250 = vmatprep.mubr.bf16.mxu0 %v95
  %251 = vmatmul.mubr.bf16.gmra.mrb[0].mxu0 %v94
  %v252 = vpop.f32.mrb[0].mxu0
  %v253 = vadd.f32 0.0, %v252
  %v254 = vpop.f32.mrb[0].mxu0
  %v255 = vpop.f32.mrb[0].mxu0
  %v256 = vadd.f32 0.0, %v255
  %v257 = vpop.f32.mrb[0].mxu0
  %258 = vmatprep.mubr.bf16.mxu0 %v97
  %259 = vmatmul.mubr.bf16.gmra.mrb[0].mxu0 %v96
  %v260 = vpop.f32.mrb[0].mxu0
  %v261 = vadd.f32 0.0, %v260
  %v262 = vpop.f32.mrb[0].mxu0
  %v263 = vpop.f32.mrb[0].mxu0
  %v264 = vpop.f32.mrb[0].mxu0
  %265 = vdwg.mxu0
  %v266 = vadd.f32 %v23, %v237
  %v267 = vadd.f32 %v24, %v240
  %v268 = vadd.f32 %v25, %v245
  %v269 = vadd.f32 %v26, %v248
  %v270 = vadd.f32 %v27, %v253
  %v271 = vadd.f32 %v28, %v256
  %v272 = vadd.f32 %v29, %v261
  %273 = vst [vmem:[#allocation2] sm:$0xff] %v266
  %274 = vst [vmem:[#allocation2 + $0x8] sm:$0xff] %v267
  %275 = vst [vmem:[#allocation2 + $0x10] sm:$0xff] %v268
  %276 = vst [vmem:[#allocation2 + $0x18] sm:$0xff] %v269
  %277 = vst [vmem:[#allocation2 + $0x20] sm:$0xff] %v270
  %278 = vst [vmem:[#allocation2 + $0x28] sm:$0xff] %v271
  %279 = vst [vmem:[#allocation2 + $0x30] sm:$0xff] %v272
  // Predicated region
  $region14: #{generator_forward.11} parent=0 // pred_check
    %p280 = pneg %p12
  $region15: #{generator_forward.11} parent=0 // pred_check_branch
    %282 = sbr.rel (%p280) target = $region17
  $region16: #{generator_forward.11} parent=0 // pred_region
    %v283 = vld [vmem:[#allocation2] sm:$0xff]
    %v284 = vld [vmem:[#allocation2 + $0x8] sm:$0xff]
    %v285 = vld [vmem:[#allocation2 + $0x10] sm:$0xff]
    %v286 = vld [vmem:[#allocation2 + $0x18] sm:$0xff]
    %v287 = vld [vmem:[#allocation2 + $0x20] sm:$0xff]
    %v288 = vld [vmem:[#allocation2 + $0x28] sm:$0xff]
    %v289 = vld [vmem:[#allocation2 + $0x30] sm:$0xff]
    %290 = vst [vmem:[%s2] sm:$0xff] %v283
    %291 = vst [vmem:[%s2 + $0x8] sm:$0xff] %v284
    %292 = vst [vmem:[%s2 + $0x10] sm:$0xff] %v285
    %293 = vst [vmem:[%s2 + $0x18] sm:$0xff] %v286
    %294 = vst [vmem:[%s2 + $0x20] sm:$0xff] %v287
    %295 = vst [vmem:[%s2 + $0x28] sm:$0xff] %v288
    %296 = vst [vmem:[%s2 + $0x30] sm:$0xff] %v289
  $region17: #{generator_forward.11} parent=0 // pred_fallthru
    _
  // Predicated region
  $region18: #{generator_forward.11} parent=0 // pred_check
    _
  $region19: #{generator_forward.11} parent=0 // pred_check_branch
    %298 = sbr.rel (0) target = $region21
  $region20: #{generator_forward.11} parent=0 // pred_region
    _
  $region21: #{generator_forward.11} parent=0 // pred_fallthru
    _
  // Predicated region
  $region22: #{generator_forward.11} parent=0 // pred_check
    _
  $region23: #{generator_forward.11} parent=0 // pred_check_branch
    %300 = sbr.rel (0) target = $region25
  $region24: #{generator_forward.11} parent=0 // pred_region
    _
  $region25: #{generator_forward.11} parent=0 // pred_fallthru
    _

// kernel: tile.58
$region0: #{tile.58}
  #allocation0 [shape = 's32[1]{0}', space=sflag, size = 0x4, scoped, tag = 'scoped memory for tile.58']
  %s0 = inlined_call_operand.vmem [shape: f32[32], index: 0, kind: input, shape index: {}]
  %s1 = inlined_call_operand.vmem [shape: f32[8,32], index: 1, kind: output, shape index: {}]
  // Predicated region
  $region2: #{tile.58} parent=0 // pred_check
    _
  $region3: #{tile.58} parent=0 // pred_check_branch
    %3 = sbr.rel (0) target = $region5
  $region4: #{tile.58} parent=0 // pred_region
    _
  $region5: #{tile.58} parent=0 // pred_fallthru
    _
  %v4 = vld [vmem:[%s0] ss:$0 sm:$0xff]
  %5 = vst [vmem:[%s1] sm:$0xff] %v4

// kernel: tile.59
$region0: #{tile.59}
  %s0 = inlined_call_operand.vmem [shape: f32[8,32], index: 0, kind: input, shape index: {}]
  %s1 = inlined_call_operand.vmem [shape: f32[1,256], index: 1, kind: output, shape index: {}]
  $region1: #{tile.59} parent=0
    #allocation0 [shape = 'u8[8192]{0}', space=vmem, size = 0x2000, scoped, tag = 'scoped mem for output reshape']
    %s2 = smov 3
    %v3 = vld [vmem:[%s0] ss:$4 sm:%s2]
    %vm4 = vcmask 261120
    %5 = vst.msk [vmem:[#allocation0] ss:$8 sm:$0x3] %vm4, %v3
    %s6 = scalar_lea.vmem %s0, 3
    %s7 = smov 3
    %v8 = vld [vmem:[%s6] ss:$4 sm:%s7]
    %9 = vrot.lane.b32.xlu0 %v8, 96
    %v10 = vpop.permute.xlu0 %9
    %vm11 = vcmask 1048320
    %12 = vst.msk [vmem:[#allocation0] ss:$8 sm:$0x3] %vm11, %v10
    %s13 = scalar_lea.vmem %s0, 2
    %s14 = smov 3
    %v15 = vld [vmem:[%s13] ss:$4 sm:%s14]
    %16 = vrot.lane.b32.xlu0 %v15, 64
    %v17 = vpop.permute.xlu0 %16
    %vm18 = vcmask 785920
    %19 = vst.msk [vmem:[#allocation0] ss:$8 sm:$0x3] %vm18, %v17
    %s20 = scalar_lea.vmem %s0, 1
    %s21 = smov 3
    %v22 = vld [vmem:[%s20] ss:$4 sm:%s21]
    %23 = vrot.lane.b32.xlu0 %v22, 32
    %v24 = vpop.permute.xlu0 %23
    %vm25 = vcmask 523520
    %26 = vst.msk [vmem:[#allocation0] ss:$8 sm:$0x3] %vm25, %v24
    %s28 = sshllo.u32 0, 1
    %v30 = vld [vmem:[#allocation0] sm:%s28]
    %s31 = sshllo.u32 0, 1
    %32 = vst [vmem:[%s1] sm:%s31] %v30
    %s33 = scalar_lea.vmem [#allocation0], 8
    %v34 = vld [vmem:[%s33] sm:%s28]
    %s35 = sshllo.u32 0, 1
    %s36 = scalar_lea.vmem %s1, 1
    %37 = vst [vmem:[%s36] sm:%s35] %v34

// kernel: generator_forward.12
$region0: #{generator_forward.12}
  #allocation0 [shape = 'u32[]', space=smem, size = 0x4, offset = 0x4, fixed_abs, tag = 'smem constant byte address 0x4 - core index']
  #allocation1 [shape = 'u32[144,128]{1,0:T(1,128)}', space=vmem, size = 0x12000, scoped, tag = 'internal scratch']
  %s0 = inlined_call_operand.vmem [shape: f32[16,256], index: 0, kind: input, shape index: {}]
  %s1 = inlined_call_operand.vmem [shape: f32[1,256], index: 1, kind: input, shape index: {}]
  %s2 = inlined_call_operand.vmem [shape: f32[1,256], index: 2, kind: input, shape index: {}]
  %s3 = inlined_call_operand.vmem [shape: f32[16,256], index: 3, kind: output, shape index: {}]
  %s4 = sld [smem:[#allocation0]]
  $region22: #{generator_forward.12} parent=0
    _
  %s6 = ssub.s32 1, %s4
  %s7 = scalar_select 0, %s6, %s4
  // Predicated region
  $region2: #{generator_forward.12} parent=0 // pred_check
    _
  $region3: #{generator_forward.12} parent=0 // pred_check_branch
    %9 = sbr.rel (0) target = $region5
  $region4: #{generator_forward.12} parent=0 // pred_region
    _
  $region5: #{generator_forward.12} parent=0 // pred_fallthru
    _
  // Predicated region
  $region6: #{generator_forward.12} parent=0 // pred_check
    _
  $region7: #{generator_forward.12} parent=0 // pred_check_branch
    %11 = sbr.rel (0) target = $region9
  $region8: #{generator_forward.12} parent=0 // pred_region
    _
  $region9: #{generator_forward.12} parent=0 // pred_fallthru
    _
  // Predicated region
  $region10: #{generator_forward.12} parent=0 // pred_check
    _
  $region11: #{generator_forward.12} parent=0 // pred_check_branch
    %13 = sbr.rel (0) target = $region13
  $region12: #{generator_forward.12} parent=0 // pred_region
    _
  $region13: #{generator_forward.12} parent=0 // pred_fallthru
    _
  %v14 = vld [vmem:[%s0] sm:$0xff]
  %v15 = vld [vmem:[%s0 + $0x8] sm:$0xff]
  %v16 = vld [vmem:[%s0 + $0x10] sm:$0xff]
  %v17 = vld [vmem:[%s0 + $0x18] sm:$0xff]
  %v18 = vld [vmem:[%s1] sm:$0x3]
  %v20 = vlaneseq
  %v21 = vshrl.u32 %v20, 7
  %v22 = vsub.s32 0, %v21
  %v23 = vrot.slane %v18, %v22
  %v24 = vlaneseq
  %v25 = vshrl.u32 %v24, 7
  %v26 = vsub.s32 1, %v25
  %v27 = vrot.slane %v18, %v26
  %v30 = vmul.f32 %v14, %v23
  %v31 = vmul.f32 %v15, %v27
  %v32 = vmul.f32 %v16, %v23
  %v33 = vmul.f32 %v17, %v27
  %v34 = vld [vmem:[%s2] sm:$0x3]
  %v36 = vlaneseq
  %v37 = vshrl.u32 %v36, 7
  %v38 = vsub.s32 0, %v37
  %v39 = vrot.slane %v34, %v38
  %v40 = vlaneseq
  %v41 = vshrl.u32 %v40, 7
  %v42 = vsub.s32 1, %v41
  %v43 = vrot.slane %v34, %v42
  %v46 = vadd.f32 %v30, %v39
  %v47 = vadd.f32 %v31, %v43
  %v48 = vadd.f32 %v32, %v39
  %v49 = vadd.f32 %v33, %v43
  %v50 = vmax.f32 %v46, 0.0
  %v51 = vmax.f32 %v47, 0.0
  %v52 = vmax.f32 %v48, 0.0
  %v53 = vmax.f32 %v49, 0.0
  %54 = vst [vmem:[%s3] sm:$0xff] %v50
  %55 = vst [vmem:[%s3 + $0x8] sm:$0xff] %v51
  %56 = vst [vmem:[%s3 + $0x10] sm:$0xff] %v52
  %57 = vst [vmem:[%s3 + $0x18] sm:$0xff] %v53
  // Predicated region
  $region14: #{generator_forward.12} parent=0 // pred_check
    _
  $region15: #{generator_forward.12} parent=0 // pred_check_branch
    %59 = sbr.rel (0) target = $region17
  $region16: #{generator_forward.12} parent=0 // pred_region
    _
  $region17: #{generator_forward.12} parent=0 // pred_fallthru
    _
  // Predicated region
  $region18: #{generator_forward.12} parent=0 // pred_check
    _
  $region19: #{generator_forward.12} parent=0 // pred_check_branch
    %61 = sbr.rel (0) target = $region21
  $region20: #{generator_forward.12} parent=0 // pred_region
    _
  $region21: #{generator_forward.12} parent=0 // pred_fallthru
    _

// kernel: generator_forward.13
$region0: #{generator_forward.13}
  #allocation0 [shape = 'u32[]', space=smem, size = 0x4, offset = 0x4, fixed_abs, tag = 'smem constant byte address 0x4 - core index']
  #allocation1 [shape = 'u32[144,128]{1,0:T(1,128)}', space=vmem, size = 0x12000, scoped, tag = 'internal scratch']
  #allocation2 [shape = 'f32[168,128]{1,0:T(8,128)}', space=vmem, size = 0x15000, scoped, tag = 'scratch operand']
  %s0 = inlined_call_operand.vmem [shape: bf16[168,128], index: 0, kind: input, shape index: {}]
  %s1 = inlined_call_operand.vmem [shape: bf16[128,128], index: 1, kind: input, shape index: {}]
  %s2 = inlined_call_operand.vmem [shape: f32[168,128], index: 2, kind: output, shape index: {}]
  %s3 = sld [smem:[#allocation0]]
  $region26: #{generator_forward.13} parent=0
    _
  %s5 = ssub.s32 1, %s3
  %s6 = scalar_select 0, %s5, %s3
  // Predicated region
  $region2: #{generator_forward.13} parent=0 // pred_check
    _
  $region3: #{generator_forward.13} parent=0 // pred_check_branch
    %8 = sbr.rel (0) target = $region5
  $region4: #{generator_forward.13} parent=0 // pred_region
    _
  $region5: #{generator_forward.13} parent=0 // pred_fallthru
    _
  // Predicated region
  $region6: #{generator_forward.13} parent=0 // pred_check
    _
  $region7: #{generator_forward.13} parent=0 // pred_check_branch
    %10 = sbr.rel (0) target = $region9
  $region8: #{generator_forward.13} parent=0 // pred_region
    _
  $region9: #{generator_forward.13} parent=0 // pred_fallthru
    _
  %p12 = scmp.eq.s32.totalorder 0, 0
  // Predicated region
  $region10: #{generator_forward.13} parent=0 // pred_check
    %p13 = pneg %p12
  $region11: #{generator_forward.13} parent=0 // pred_check_branch
    %15 = sbr.rel (%p13) target = $region13
  $region12: #{generator_forward.13} parent=0 // pred_region
    %16 = vst [vmem:[#allocation2] sm:$0xff] 0.0
    %17 = vst [vmem:[#allocation2 + $0x8] sm:$0xff] 0.0
    %18 = vst [vmem:[#allocation2 + $0x10] sm:$0xff] 0.0
    %19 = vst [vmem:[#allocation2 + $0x18] sm:$0xff] 0.0
    %20 = vst [vmem:[#allocation2 + $0x20] sm:$0xff] 0.0
    %21 = vst [vmem:[#allocation2 + $0x28] sm:$0xff] 0.0
    %22 = vst [vmem:[#allocation2 + $0x30] sm:$0xff] 0.0
    %23 = vst [vmem:[#allocation2 + $0x38] sm:$0xff] 0.0
    %24 = vst [vmem:[#allocation2 + $0x40] sm:$0xff] 0.0
    %25 = vst [vmem:[#allocation2 + $0x48] sm:$0xff] 0.0
    %26 = vst [vmem:[#allocation2 + $0x50] sm:$0xff] 0.0
    %27 = vst [vmem:[#allocation2 + $0x58] sm:$0xff] 0.0
    %28 = vst [vmem:[#allocation2 + $0x60] sm:$0xff] 0.0
    %29 = vst [vmem:[#allocation2 + $0x68] sm:$0xff] 0.0
    %30 = vst [vmem:[#allocation2 + $0x70] sm:$0xff] 0.0
    %31 = vst [vmem:[#allocation2 + $0x78] sm:$0xff] 0.0
    %32 = vst [vmem:[#allocation2 + $0x80] sm:$0xff] 0.0
    %33 = vst [vmem:[#allocation2 + $0x88] sm:$0xff] 0.0
    %34 = vst [vmem:[#allocation2 + $0x90] sm:$0xff] 0.0
    %35 = vst [vmem:[#allocation2 + $0x98] sm:$0xff] 0.0
    %36 = vst [vmem:[#allocation2 + $0xa0] sm:$0xff] 0.0
  $region13: #{generator_forward.13} parent=0 // pred_fallthru
    _
  %v37 = vld [vmem:[#allocation2] sm:$0xff]
  %v38 = vld [vmem:[#allocation2 + $0x8] sm:$0xff]
  %v39 = vld [vmem:[#allocation2 + $0x10] sm:$0xff]
  %v40 = vld [vmem:[#allocation2 + $0x18] sm:$0xff]
  %v41 = vld [vmem:[#allocation2 + $0x20] sm:$0xff]
  %v42 = vld [vmem:[#allocation2 + $0x28] sm:$0xff]
  %v43 = vld [vmem:[#allocation2 + $0x30] sm:$0xff]
  %v44 = vld [vmem:[#allocation2 + $0x38] sm:$0xff]
  %v45 = vld [vmem:[#allocation2 + $0x40] sm:$0xff]
  %v46 = vld [vmem:[#allocation2 + $0x48] sm:$0xff]
  %v47 = vld [vmem:[#allocation2 + $0x50] sm:$0xff]
  %v48 = vld [vmem:[#allocation2 + $0x58] sm:$0xff]
  %v49 = vld [vmem:[#allocation2 + $0x60] sm:$0xff]
  %v50 = vld [vmem:[#allocation2 + $0x68] sm:$0xff]
  %v51 = vld [vmem:[#allocation2 + $0x70] sm:$0xff]
  %v52 = vld [vmem:[#allocation2 + $0x78] sm:$0xff]
  %v53 = vld [vmem:[#allocation2 + $0x80] sm:$0xff]
  %v54 = vld [vmem:[#allocation2 + $0x88] sm:$0xff]
  %v55 = vld [vmem:[#allocation2 + $0x90] sm:$0xff]
  %v56 = vld [vmem:[#allocation2 + $0x98] sm:$0xff]
  %v57 = vld [vmem:[#allocation2 + $0xa0] sm:$0xff]
  %v58 = vld [vmem:[%s0] sm:$0xf]
  %v59 = vld [vmem:[%s0 + $0x4] sm:$0xf]
  %v60 = vld [vmem:[%s0 + $0x8] sm:$0xf]
  %v61 = vld [vmem:[%s0 + $0xc] sm:$0xf]
  %v62 = vld [vmem:[%s0 + $0x10] sm:$0xf]
  %v63 = vld [vmem:[%s0 + $0x14] sm:$0xf]
  %v64 = vld [vmem:[%s0 + $0x18] sm:$0xf]
  %v65 = vld [vmem:[%s0 + $0x1c] sm:$0xf]
  %v66 = vld [vmem:[%s0 + $0x20] sm:$0xf]
  %v67 = vld [vmem:[%s0 + $0x24] sm:$0xf]
  %v68 = vld [vmem:[%s0 + $0x28] sm:$0xf]
  %v69 = vld [vmem:[%s0 + $0x2c] sm:$0xf]
  %v70 = vld [vmem:[%s0 + $0x30] sm:$0xf]
  %v71 = vld [vmem:[%s0 + $0x34] sm:$0xf]
  %v72 = vld [vmem:[%s0 + $0x38] sm:$0xf]
  %v73 = vld [vmem:[%s0 + $0x3c] sm:$0xf]
  %v74 = vld [vmem:[%s0 + $0x40] sm:$0xf]
  %v75 = vld [vmem:[%s0 + $0x44] sm:$0xf]
  %v76 = vld [vmem:[%s0 + $0x48] sm:$0xf]
  %v77 = vld [vmem:[%s0 + $0x4c] sm:$0xf]
  %v78 = vld [vmem:[%s0 + $0x50] sm:$0xf]
  %v79 = vld [vmem:[%s1] sm:$0xf]
  %v80 = vld [vmem:[%s1 + $0x4] sm:$0xf]
  %v81 = vld [vmem:[%s1 + $0x8] sm:$0xf]
  %v82 = vld [vmem:[%s1 + $0xc] sm:$0xf]
  %v83 = vld [vmem:[%s1 + $0x10] sm:$0xf]
  %v84 = vld [vmem:[%s1 + $0x14] sm:$0xf]
  %v85 = vld [vmem:[%s1 + $0x18] sm:$0xf]
  %v86 = vld [vmem:[%s1 + $0x1c] sm:$0xf]
  %v87 = vld [vmem:[%s1 + $0x20] sm:$0xf]
  %v88 = vld [vmem:[%s1 + $0x24] sm:$0xf]
  %v89 = vld [vmem:[%s1 + $0x28] sm:$0xf]
  %v90 = vld [vmem:[%s1 + $0x2c] sm:$0xf]
  %v91 = vld [vmem:[%s1 + $0x30] sm:$0xf]
  %v92 = vld [vmem:[%s1 + $0x34] sm:$0xf]
  %v93 = vld [vmem:[%s1 + $0x38] sm:$0xf]
  %v94 = vld [vmem:[%s1 + $0x3c] sm:$0xf]
  %v116 = vunpack.c.l.b16 %v58
  %v117 = vunpack.c.l.b16 %v59
  %v118 = vunpack.c.l.b16 %v60
  %v119 = vunpack.c.l.b16 %v61
  %v120 = vunpack.c.l.b16 %v62
  %v121 = vunpack.c.l.b16 %v63
  %v122 = vunpack.c.l.b16 %v64
  %v123 = vunpack.c.l.b16 %v65
  %v124 = vunpack.c.l.b16 %v66
  %v125 = vunpack.c.l.b16 %v67
  %v126 = vunpack.c.l.b16 %v68
  %v127 = vunpack.c.l.b16 %v69
  %v128 = vunpack.c.l.b16 %v70
  %v129 = vunpack.c.l.b16 %v71
  %v130 = vunpack.c.l.b16 %v72
  %v131 = vunpack.c.l.b16 %v73
  %v132 = vunpack.c.l.b16 %v74
  %v133 = vunpack.c.l.b16 %v75
  %v134 = vunpack.c.l.b16 %v76
  %v135 = vunpack.c.l.b16 %v77
  %v136 = vunpack.c.l.b16 %v78
  %v137 = vpack.c.b16 %v117, %v116
  %v138 = vpack.c.b16 %v119, %v118
  %v139 = vpack.c.b16 %v121, %v120
  %v140 = vpack.c.b16 %v123, %v122
  %v141 = vpack.c.b16 %v125, %v124
  %v142 = vpack.c.b16 %v127, %v126
  %v143 = vpack.c.b16 %v129, %v128
  %v144 = vpack.c.b16 %v131, %v130
  %v145 = vpack.c.b16 %v133, %v132
  %v146 = vpack.c.b16 %v135, %v134
  %v147 = vpack.c.b16 %v136, %v136
  %v175 = vunpack.c.l.b16 %v79
  %v176 = vunpack.c.l.b16 %v80
  %v177 = vunpack.c.l.b16 %v81
  %v178 = vunpack.c.l.b16 %v82
  %v179 = vunpack.c.l.b16 %v83
  %v180 = vunpack.c.l.b16 %v84
  %v181 = vunpack.c.l.b16 %v85
  %v182 = vunpack.c.l.b16 %v86
  %v183 = vunpack.c.l.b16 %v87
  %v184 = vunpack.c.l.b16 %v88
  %v185 = vunpack.c.l.b16 %v89
  %v186 = vunpack.c.l.b16 %v90
  %v187 = vunpack.c.l.b16 %v91
  %v188 = vunpack.c.l.b16 %v92
  %v189 = vunpack.c.l.b16 %v93
  %v190 = vunpack.c.l.b16 %v94
  %v191 = vpack.c.b16 %v176, %v175
  %v192 = vpack.c.b16 %v178, %v177
  %v193 = vpack.c.b16 %v180, %v179
  %v194 = vpack.c.b16 %v182, %v181
  %v195 = vpack.c.b16 %v184, %v183
  %v196 = vpack.c.b16 %v186, %v185
  %v197 = vpack.c.b16 %v188, %v187
  %v198 = vpack.c.b16 %v190, %v189
  %207 = vmatprep.subr.bf16.mxu0 0
  %208 = vmatpush1.bf16.msra.mxu0 %v191
  %209 = vmatprep.subr.bf16.mxu0 0
  %210 = vmatpush1.bf16.msra.mxu0 %v192
  %211 = vmatprep.subr.bf16.mxu0 0
  %212 = vmatpush1.bf16.msra.mxu0 %v193
  %213 = vmatprep.subr.bf16.mxu0 0
  %214 = vmatpush1.bf16.msra.mxu0 %v194
  %215 = vmatprep.subr.bf16.mxu0 0
  %216 = vmatpush1.bf16.msra.mxu0 %v195
  %217 = vmatprep.subr.bf16.mxu0 0
  %218 = vmatpush1.bf16.msra.mxu0 %v196
  %219 = vmatprep.subr.bf16.mxu0 0
  %220 = vmatpush1.bf16.msra.mxu0 %v197
  %221 = vmatprep.subr.bf16.mxu0 0
  %222 = vmatpush1.bf16.msra.mxu0 %v198
  %223 = vmatprep.subr.bf16.mxu0 0
  %224 = vmatpush1.bf16.msra.mxu0 0
  %225 = vmatprep.subr.bf16.mxu0 0
  %226 = vmatpush1.bf16.msra.mxu0 0
  %227 = vmatprep.subr.bf16.mxu0 0
  %228 = vmatpush1.bf16.msra.mxu0 0
  %229 = vmatprep.subr.bf16.mxu0 0
  %230 = vmatpush1.bf16.msra.mxu0 0
  %231 = vmatprep.subr.bf16.mxu0 0
  %232 = vmatpush1.bf16.msra.mxu0 0
  %233 = vmatprep.subr.bf16.mxu0 0
  %234 = vmatpush1.bf16.msra.mxu0 0
  %235 = vmatprep.subr.bf16.mxu0 0
  %236 = vmatpush1.bf16.msra.mxu0 0
  %237 = vmatprep.subr.bf16.mxu0 0
  %238 = vmatpush1.bf16.msra.mxu0 0
  %239 = vmatprep.mubr.bf16.mxu0 0
  %240 = vmatmul.mubr.bf16.gmra.mrb[0].mxu0 %v137
  %v241 = vpop.f32.mrb[0].mxu0
  %v242 = vadd.f32 0.0, %v241
  %v243 = vpop.f32.mrb[0].mxu0
  %v244 = vpop.f32.mrb[0].mxu0
  %v245 = vadd.f32 0.0, %v244
  %v246 = vpop.f32.mrb[0].mxu0
  %247 = vmatprep.mubr.bf16.mxu0 0
  %248 = vmatmul.mubr.bf16.gmra.mrb[0].mxu0 %v138
  %v249 = vpop.f32.mrb[0].mxu0
  %v250 = vadd.f32 0.0, %v249
  %v251 = vpop.f32.mrb[0].mxu0
  %v252 = vpop.f32.mrb[0].mxu0
  %v253 = vadd.f32 0.0, %v252
  %v254 = vpop.f32.mrb[0].mxu0
  %255 = vmatprep.mubr.bf16.mxu0 0
  %256 = vmatmul.mubr.bf16.gmra.mrb[0].mxu0 %v139
  %v257 = vpop.f32.mrb[0].mxu0
  %v258 = vadd.f32 0.0, %v257
  %v259 = vpop.f32.mrb[0].mxu0
  %v260 = vpop.f32.mrb[0].mxu0
  %v261 = vadd.f32 0.0, %v260
  %v262 = vpop.f32.mrb[0].mxu0
  %263 = vmatprep.mubr.bf16.mxu0 0
  %264 = vmatmul.mubr.bf16.gmra.mrb[0].mxu0 %v140
  %v265 = vpop.f32.mrb[0].mxu0
  %v266 = vadd.f32 0.0, %v265
  %v267 = vpop.f32.mrb[0].mxu0
  %v268 = vpop.f32.mrb[0].mxu0
  %v269 = vadd.f32 0.0, %v268
  %v270 = vpop.f32.mrb[0].mxu0
  %271 = vmatprep.mubr.bf16.mxu0 0
  %272 = vmatmul.mubr.bf16.gmra.mrb[0].mxu0 %v141
  %v273 = vpop.f32.mrb[0].mxu0
  %v274 = vadd.f32 0.0, %v273
  %v275 = vpop.f32.mrb[0].mxu0
  %v276 = vpop.f32.mrb[0].mxu0
  %v277 = vadd.f32 0.0, %v276
  %v278 = vpop.f32.mrb[0].mxu0
  %279 = vmatprep.mubr.bf16.mxu0 0
  %280 = vmatmul.mubr.bf16.gmra.mrb[0].mxu0 %v142
  %v281 = vpop.f32.mrb[0].mxu0
  %v282 = vadd.f32 0.0, %v281
  %v283 = vpop.f32.mrb[0].mxu0
  %v284 = vpop.f32.mrb[0].mxu0
  %v285 = vadd.f32 0.0, %v284
  %v286 = vpop.f32.mrb[0].mxu0
  %287 = vmatprep.mubr.bf16.mxu0 0
  %288 = vmatmul.mubr.bf16.gmra.mrb[0].mxu0 %v143
  %v289 = vpop.f32.mrb[0].mxu0
  %v290 = vadd.f32 0.0, %v289
  %v291 = vpop.f32.mrb[0].mxu0
  %v292 = vpop.f32.mrb[0].mxu0
  %v293 = vadd.f32 0.0, %v292
  %v294 = vpop.f32.mrb[0].mxu0
  %295 = vmatprep.mubr.bf16.mxu0 0
  %296 = vmatmul.mubr.bf16.gmra.mrb[0].mxu0 %v144
  %v297 = vpop.f32.mrb[0].mxu0
  %v298 = vadd.f32 0.0, %v297
  %v299 = vpop.f32.mrb[0].mxu0
  %v300 = vpop.f32.mrb[0].mxu0
  %v301 = vadd.f32 0.0, %v300
  %v302 = vpop.f32.mrb[0].mxu0
  %303 = vmatprep.mubr.bf16.mxu0 0
  %304 = vmatmul.mubr.bf16.gmra.mrb[0].mxu0 %v145
  %v305 = vpop.f32.mrb[0].mxu0
  %v306 = vadd.f32 0.0, %v305
  %v307 = vpop.f32.mrb[0].mxu0
  %v308 = vpop.f32.mrb[0].mxu0
  %v309 = vadd.f32 0.0, %v308
  %v310 = vpop.f32.mrb[0].mxu0
  %311 = vmatprep.mubr.bf16.mxu0 0
  %312 = vmatmul.mubr.bf16.gmra.mrb[0].mxu0 %v146
  %v313 = vpop.f32.mrb[0].mxu0
  %v314 = vadd.f32 0.0, %v313
  %v315 = vpop.f32.mrb[0].mxu0
  %v316 = vpop.f32.mrb[0].mxu0
  %v317 = vadd.f32 0.0, %v316
  %v318 = vpop.f32.mrb[0].mxu0
  %319 = vmatprep.mubr.bf16.mxu0 0
  %320 = vmatmul.mubr.bf16.gmra.mrb[0].mxu0 %v147
  %v321 = vpop.f32.mrb[0].mxu0
  %v322 = vadd.f32 0.0, %v321
  %v323 = vpop.f32.mrb[0].mxu0
  %v324 = vpop.f32.mrb[0].mxu0
  %v325 = vpop.f32.mrb[0].mxu0
  %326 = vdwg.mxu0
  %v327 = vadd.f32 %v37, %v242
  %v328 = vadd.f32 %v38, %v245
  %v329 = vadd.f32 %v39, %v250
  %v330 = vadd.f32 %v40, %v253
  %v331 = vadd.f32 %v41, %v258
  %v332 = vadd.f32 %v42, %v261
  %v333 = vadd.f32 %v43, %v266
  %v334 = vadd.f32 %v44, %v269
  %v335 = vadd.f32 %v45, %v274
  %v336 = vadd.f32 %v46, %v277
  %v337 = vadd.f32 %v47, %v282
  %v338 = vadd.f32 %v48, %v285
  %v339 = vadd.f32 %v49, %v290
  %v340 = vadd.f32 %v50, %v293
  %v341 = vadd.f32 %v51, %v298
  %v342 = vadd.f32 %v52, %v301
  %v343 = vadd.f32 %v53, %v306
  %v344 = vadd.f32 %v54, %v309
  %v345 = vadd.f32 %v55, %v314
  %v346 = vadd.f32 %v56, %v317
  %v347 = vadd.f32 %v57, %v322
  %348 = vst [vmem:[#allocation2] sm:$0xff] %v327
  %349 = vst [vmem:[#allocation2 + $0x8] sm:$0xff] %v328
  %350 = vst [vmem:[#allocation2 + $0x10] sm:$0xff] %v329
  %351 = vst [vmem:[#allocation2 + $0x18] sm:$0xff] %v330
  %352 = vst [vmem:[#allocation2 + $0x20] sm:$0xff] %v331
  %353 = vst [vmem:[#allocation2 + $0x28] sm:$0xff] %v332
  %354 = vst [vmem:[#allocation2 + $0x30] sm:$0xff] %v333
  %355 = vst [vmem:[#allocation2 + $0x38] sm:$0xff] %v334
  %356 = vst [vmem:[#allocation2 + $0x40] sm:$0xff] %v335
  %357 = vst [vmem:[#allocation2 + $0x48] sm:$0xff] %v336
  %358 = vst [vmem:[#allocation2 + $0x50] sm:$0xff] %v337
  %359 = vst [vmem:[#allocation2 + $0x58] sm:$0xff] %v338
  %360 = vst [vmem:[#allocation2 + $0x60] sm:$0xff] %v339
  %361 = vst [vmem:[#allocation2 + $0x68] sm:$0xff] %v340
  %362 = vst [vmem:[#allocation2 + $0x70] sm:$0xff] %v341
  %363 = vst [vmem:[#allocation2 + $0x78] sm:$0xff] %v342
  %364 = vst [vmem:[#allocation2 + $0x80] sm:$0xff] %v343
  %365 = vst [vmem:[#allocation2 + $0x88] sm:$0xff] %v344
  %366 = vst [vmem:[#allocation2 + $0x90] sm:$0xff] %v345
  %367 = vst [vmem:[#allocation2 + $0x98] sm:$0xff] %v346
  %368 = vst [vmem:[#allocation2 + $0xa0] sm:$0xff] %v347
  // Predicated region
  $region14: #{generator_forward.13} parent=0 // pred_check
    %p369 = pneg %p12
  $region15: #{generator_forward.13} parent=0 // pred_check_branch
    %371 = sbr.rel (%p369) target = $region17
  $region16: #{generator_forward.13} parent=0 // pred_region
    %v372 = vld [vmem:[#allocation2] sm:$0xff]
    %v373 = vld [vmem:[#allocation2 + $0x8] sm:$0xff]
    %v374 = vld [vmem:[#allocation2 + $0x10] sm:$0xff]
    %v375 = vld [vmem:[#allocation2 + $0x18] sm:$0xff]
    %v376 = vld [vmem:[#allocation2 + $0x20] sm:$0xff]
    %v377 = vld [vmem:[#allocation2 + $0x28] sm:$0xff]
    %v378 = vld [vmem:[#allocation2 + $0x30] sm:$0xff]
    %v379 = vld [vmem:[#allocation2 + $0x38] sm:$0xff]
    %v380 = vld [vmem:[#allocation2 + $0x40] sm:$0xff]
    %v381 = vld [vmem:[#allocation2 + $0x48] sm:$0xff]
    %v382 = vld [vmem:[#allocation2 + $0x50] sm:$0xff]
    %v383 = vld [vmem:[#allocation2 + $0x58] sm:$0xff]
    %v384 = vld [vmem:[#allocation2 + $0x60] sm:$0xff]
    %v385 = vld [vmem:[#allocation2 + $0x68] sm:$0xff]
    %v386 = vld [vmem:[#allocation2 + $0x70] sm:$0xff]
    %v387 = vld [vmem:[#allocation2 + $0x78] sm:$0xff]
    %v388 = vld [vmem:[#allocation2 + $0x80] sm:$0xff]
    %v389 = vld [vmem:[#allocation2 + $0x88] sm:$0xff]
    %v390 = vld [vmem:[#allocation2 + $0x90] sm:$0xff]
    %v391 = vld [vmem:[#allocation2 + $0x98] sm:$0xff]
    %v392 = vld [vmem:[#allocation2 + $0xa0] sm:$0xff]
    %393 = vst [vmem:[%s2] sm:$0xff] %v372
    %394 = vst [vmem:[%s2 + $0x8] sm:$0xff] %v373
    %395 = vst [vmem:[%s2 + $0x10] sm:$0xff] %v374
    %396 = vst [vmem:[%s2 + $0x18] sm:$0xff] %v375
    %397 = vst [vmem:[%s2 + $0x20] sm:$0xff] %v376
    %398 = vst [vmem:[%s2 + $0x28] sm:$0xff] %v377
    %399 = vst [vmem:[%s2 + $0x30] sm:$0xff] %v378
    %400 = vst [vmem:[%s2 + $0x38] sm:$0xff] %v379
    %401 = vst [vmem:[%s2 + $0x40] sm:$0xff] %v380
    %402 = vst [vmem:[%s2 + $0x48] sm:$0xff] %v381
    %403 = vst [vmem:[%s2 + $0x50] sm:$0xff] %v382
    %404 = vst [vmem:[%s2 + $0x58] sm:$0xff] %v383
    %405 = vst [vmem:[%s2 + $0x60] sm:$0xff] %v384
    %406 = vst [vmem:[%s2 + $0x68] sm:$0xff] %v385
    %407 = vst [vmem:[%s2 + $0x70] sm:$0xff] %v386
    %408 = vst [vmem:[%s2 + $0x78] sm:$0xff] %v387
    %409 = vst [vmem:[%s2 + $0x80] sm:$0xff] %v388
    %410 = vst [vmem:[%s2 + $0x88] sm:$0xff] %v389
    %411 = vst [vmem:[%s2 + $0x90] sm:$0xff] %v390
    %412 = vst [vmem:[%s2 + $0x98] sm:$0xff] %v391
    %413 = vst [vmem:[%s2 + $0xa0] sm:$0xff] %v392
  $region17: #{generator_forward.13} parent=0 // pred_fallthru
    _
  // Predicated region
  $region18: #{generator_forward.13} parent=0 // pred_check
    _
  $region19: #{generator_forward.13} parent=0 // pred_check_branch
    %415 = sbr.rel (0) target = $region21
  $region20: #{generator_forward.13} parent=0 // pred_region
    _
  $region21: #{generator_forward.13} parent=0 // pred_fallthru
    _
  // Predicated region
  $region22: #{generator_forward.13} parent=0 // pred_check
    _
  $region23: #{generator_forward.13} parent=0 // pred_check_branch
    %417 = sbr.rel (0) target = $region25
  $region24: #{generator_forward.13} parent=0 // pred_region
    _
  $region25: #{generator_forward.13} parent=0 // pred_fallthru
    _

// kernel: tile.68
$region0: #{tile.68}
  #allocation0 [shape = 's32[1]{0}', space=sflag, size = 0x4, scoped, tag = 'scoped memory for tile.68']
  %s0 = inlined_call_operand.vmem [shape: f32[16], index: 0, kind: input, shape index: {}]
  %s1 = inlined_call_operand.vmem [shape: f32[16,16], index: 1, kind: output, shape index: {}]
  // Predicated region
  $region2: #{tile.68} parent=0 // pred_check
    _
  $region3: #{tile.68} parent=0 // pred_check_branch
    %3 = sbr.rel (0) target = $region5
  $region4: #{tile.68} parent=0 // pred_region
    _
  $region5: #{tile.68} parent=0 // pred_fallthru
    _
  %v4 = vld [vmem:[%s0] ss:$0 sm:$0xff]
  %5 = vst [vmem:[%s1] sm:$0xff] %v4
  %s6 = scalar_lea.vmem %s1, 8
  %7 = vst [vmem:[%s6] sm:$0xff] %v4

// kernel: tile.69
$region0: #{tile.69}
  %s0 = inlined_call_operand.vmem [shape: f32[16,16], index: 0, kind: input, shape index: {}]
  %s1 = inlined_call_operand.vmem [shape: f32[1,256], index: 1, kind: output, shape index: {}]
  $region1: #{tile.69} parent=0
    #allocation0 [shape = 'u8[8192]{0}', space=vmem, size = 0x2000, scoped, tag = 'scoped mem for output reshape']
    %s2 = smov 3
    %v3 = vld [vmem:[%s0] ss:$8 sm:%s2]
    %vm4 = vcmask 130048
    %5 = vst.msk [vmem:[#allocation0] ss:$8 sm:$0x3] %vm4, %v3
    %s6 = scalar_lea.vmem %s0, 7
    %s7 = smov 3
    %v8 = vld [vmem:[%s6] ss:$8 sm:%s7]
    %9 = vrot.lane.b32.xlu0 %v8, 112
    %v10 = vpop.permute.xlu0 %9
    %vm11 = vcmask 1048448
    %12 = vst.msk [vmem:[#allocation0] ss:$8 sm:$0x3] %vm11, %v10
    %s13 = scalar_lea.vmem %s0, 6
    %s14 = smov 3
    %v15 = vld [vmem:[%s13] ss:$8 sm:%s14]
    %16 = vrot.lane.b32.xlu0 %v15, 96
    %v17 = vpop.permute.xlu0 %16
    %vm18 = vcmask 917248
    %19 = vst.msk [vmem:[#allocation0] ss:$8 sm:$0x3] %vm18, %v17
    %s20 = scalar_lea.vmem %s0, 5
    %s21 = smov 3
    %v22 = vld [vmem:[%s20] ss:$8 sm:%s21]
    %23 = vrot.lane.b32.xlu0 %v22, 80
    %v24 = vpop.permute.xlu0 %23
    %vm25 = vcmask 786048
    %26 = vst.msk [vmem:[#allocation0] ss:$8 sm:$0x3] %vm25, %v24
    %s27 = scalar_lea.vmem %s0, 4
    %s28 = smov 3
    %v29 = vld [vmem:[%s27] ss:$8 sm:%s28]
    %30 = vrot.lane.b32.xlu0 %v29, 64
    %v31 = vpop.permute.xlu0 %30
    %vm32 = vcmask 654848
    %33 = vst.msk [vmem:[#allocation0] ss:$8 sm:$0x3] %vm32, %v31
    %s34 = scalar_lea.vmem %s0, 3
    %s35 = smov 3
    %v36 = vld [vmem:[%s34] ss:$8 sm:%s35]
    %37 = vrot.lane.b32.xlu0 %v36, 48
    %v38 = vpop.permute.xlu0 %37
    %vm39 = vcmask 523648
    %40 = vst.msk [vmem:[#allocation0] ss:$8 sm:$0x3] %vm39, %v38
    %s41 = scalar_lea.vmem %s0, 2
    %s42 = smov 3
    %v43 = vld [vmem:[%s41] ss:$8 sm:%s42]
    %44 = vrot.lane.b32.xlu0 %v43, 32
    %v45 = vpop.permute.xlu0 %44
    %vm46 = vcmask 392448
    %47 = vst.msk [vmem:[#allocation0] ss:$8 sm:$0x3] %vm46, %v45
    %s48 = scalar_lea.vmem %s0, 1
    %s49 = smov 3
    %v50 = vld [vmem:[%s48] ss:$8 sm:%s49]
    %51 = vrot.lane.b32.xlu0 %v50, 16
    %v52 = vpop.permute.xlu0 %51
    %vm53 = vcmask 261248
    %54 = vst.msk [vmem:[#allocation0] ss:$8 sm:$0x3] %vm53, %v52
    %s56 = sshllo.u32 0, 1
    %v58 = vld [vmem:[#allocation0] sm:%s56]
    %s59 = sshllo.u32 0, 1
    %60 = vst [vmem:[%s1] sm:%s59] %v58
    %s61 = scalar_lea.vmem [#allocation0], 8
    %v62 = vld [vmem:[%s61] sm:%s56]
    %s63 = sshllo.u32 0, 1
    %s64 = scalar_lea.vmem %s1, 1
    %65 = vst [vmem:[%s64] sm:%s63] %v62

// kernel: generator_forward.14
$region0: #{generator_forward.14}
  #allocation0 [shape = 'u32[]', space=smem, size = 0x4, offset = 0x4, fixed_abs, tag = 'smem constant byte address 0x4 - core index']
  #allocation1 [shape = 'u32[144,128]{1,0:T(1,128)}', space=vmem, size = 0x12000, scoped, tag = 'internal scratch']
  %s0 = inlined_call_operand.vmem [shape: f32[32,256], index: 0, kind: input, shape index: {}]
  %s1 = inlined_call_operand.vmem [shape: f32[1,256], index: 1, kind: input, shape index: {}]
  %s2 = inlined_call_operand.vmem [shape: f32[1,256], index: 2, kind: input, shape index: {}]
  %s3 = inlined_call_operand.vmem [shape: f32[32,256], index: 3, kind: output, shape index: {}]
  %s4 = sld [smem:[#allocation0]]
  $region22: #{generator_forward.14} parent=0
    _
  %s6 = ssub.s32 1, %s4
  %s7 = scalar_select 0, %s6, %s4
  // Predicated region
  $region2: #{generator_forward.14} parent=0 // pred_check
    _
  $region3: #{generator_forward.14} parent=0 // pred_check_branch
    %9 = sbr.rel (0) target = $region5
  $region4: #{generator_forward.14} parent=0 // pred_region
    _
  $region5: #{generator_forward.14} parent=0 // pred_fallthru
    _
  // Predicated region
  $region6: #{generator_forward.14} parent=0 // pred_check
    _
  $region7: #{generator_forward.14} parent=0 // pred_check_branch
    %11 = sbr.rel (0) target = $region9
  $region8: #{generator_forward.14} parent=0 // pred_region
    _
  $region9: #{generator_forward.14} parent=0 // pred_fallthru
    _
  // Predicated region
  $region10: #{generator_forward.14} parent=0 // pred_check
    _
  $region11: #{generator_forward.14} parent=0 // pred_check_branch
    %13 = sbr.rel (0) target = $region13
  $region12: #{generator_forward.14} parent=0 // pred_region
    _
  $region13: #{generator_forward.14} parent=0 // pred_fallthru
    _
  %v14 = vld [vmem:[%s0] sm:$0xff]
  %v15 = vld [vmem:[%s0 + $0x8] sm:$0xff]
  %v16 = vld [vmem:[%s0 + $0x10] sm:$0xff]
  %v17 = vld [vmem:[%s0 + $0x18] sm:$0xff]
  %v18 = vld [vmem:[%s0 + $0x20] sm:$0xff]
  %v19 = vld [vmem:[%s0 + $0x28] sm:$0xff]
  %v20 = vld [vmem:[%s0 + $0x30] sm:$0xff]
  %v21 = vld [vmem:[%s0 + $0x38] sm:$0xff]
  %v22 = vld [vmem:[%s1] sm:$0x3]
  %v24 = vlaneseq
  %v25 = vshrl.u32 %v24, 7
  %v26 = vsub.s32 0, %v25
  %v27 = vrot.slane %v22, %v26
  %v28 = vlaneseq
  %v29 = vshrl.u32 %v28, 7
  %v30 = vsub.s32 1, %v29
  %v31 = vrot.slane %v22, %v30
  %v34 = vmul.f32 %v14, %v27
  %v35 = vmul.f32 %v15, %v31
  %v36 = vmul.f32 %v16, %v27
  %v37 = vmul.f32 %v17, %v31
  %v38 = vmul.f32 %v18, %v27
  %v39 = vmul.f32 %v19, %v31
  %v40 = vmul.f32 %v20, %v27
  %v41 = vmul.f32 %v21, %v31
  %v42 = vld [vmem:[%s2] sm:$0x3]
  %v44 = vlaneseq
  %v45 = vshrl.u32 %v44, 7
  %v46 = vsub.s32 0, %v45
  %v47 = vrot.slane %v42, %v46
  %v48 = vlaneseq
  %v49 = vshrl.u32 %v48, 7
  %v50 = vsub.s32 1, %v49
  %v51 = vrot.slane %v42, %v50
  %v54 = vadd.f32 %v34, %v47
  %v55 = vadd.f32 %v35, %v51
  %v56 = vadd.f32 %v36, %v47
  %v57 = vadd.f32 %v37, %v51
  %v58 = vadd.f32 %v38, %v47
  %v59 = vadd.f32 %v39, %v51
  %v60 = vadd.f32 %v40, %v47
  %v61 = vadd.f32 %v41, %v51
  %v62 = vmax.f32 %v54, 0.0
  %v63 = vmax.f32 %v55, 0.0
  %v64 = vmax.f32 %v56, 0.0
  %v65 = vmax.f32 %v57, 0.0
  %v66 = vmax.f32 %v58, 0.0
  %v67 = vmax.f32 %v59, 0.0
  %v68 = vmax.f32 %v60, 0.0
  %v69 = vmax.f32 %v61, 0.0
  %70 = vst [vmem:[%s3] sm:$0xff] %v62
  %71 = vst [vmem:[%s3 + $0x8] sm:$0xff] %v63
  %72 = vst [vmem:[%s3 + $0x10] sm:$0xff] %v64
  %73 = vst [vmem:[%s3 + $0x18] sm:$0xff] %v65
  %74 = vst [vmem:[%s3 + $0x20] sm:$0xff] %v66
  %75 = vst [vmem:[%s3 + $0x28] sm:$0xff] %v67
  %76 = vst [vmem:[%s3 + $0x30] sm:$0xff] %v68
  %77 = vst [vmem:[%s3 + $0x38] sm:$0xff] %v69
  // Predicated region
  $region14: #{generator_forward.14} parent=0 // pred_check
    _
  $region15: #{generator_forward.14} parent=0 // pred_check_branch
    %79 = sbr.rel (0) target = $region17
  $region16: #{generator_forward.14} parent=0 // pred_region
    _
  $region17: #{generator_forward.14} parent=0 // pred_fallthru
    _
  // Predicated region
  $region18: #{generator_forward.14} parent=0 // pred_check
    _
  $region19: #{generator_forward.14} parent=0 // pred_check_branch
    %81 = sbr.rel (0) target = $region21
  $region20: #{generator_forward.14} parent=0 // pred_region
    _
  $region21: #{generator_forward.14} parent=0 // pred_fallthru
    _

// kernel: generator_forward.15
$region0: #{generator_forward.15}
  #allocation0 [shape = 'u32[]', space=smem, size = 0x4, offset = 0x4, fixed_abs, tag = 'smem constant byte address 0x4 - core index']
  #allocation1 [shape = 'u32[144,128]{1,0:T(1,128)}', space=vmem, size = 0x12000, scoped, tag = 'internal scratch']
  #allocation2 [shape = 'f32[512,128]{1,0:T(8,128)}', space=vmem, size = 0x40000, scoped, tag = 'scratch operand']
  %s0 = inlined_call_operand.vmem [shape: bf16[1024,64], index: 0, kind: input, shape index: {}]
  %s1 = inlined_call_operand.vmem [shape: bf16[64,128], index: 1, kind: input, shape index: {}]
  %s2 = inlined_call_operand.vmem [shape: f32[1024,128], index: 2, kind: output, shape index: {}]
  %s3 = sld [smem:[#allocation0]]
  $region49: #{generator_forward.15} parent=0
    _
  %s5 = ssub.s32 1, %s3
  %s6 = scalar_select 0, %s5, %s3
  loop: start=0, step=1, limit=4
  $region2: #{generator_forward.15} parent=0 // loop_pre_header
    _
  $region3: #{generator_forward.15} parent=0 // loop_header
    %s8 = sphi 0, %s12
    %p9 = scmp.ge.s32.totalorder %s8, 4
    %s15 = sphi 0, %s27
    %s16 = sphi 0, %s23
    %s17 = sphi 0, %s15
    %s18 = sphi 0, %s16
    %s19 = sphi 0, %s17
    %s20 = sphi 0, %s18
    %s32 = sphi 0, %s34
    %s35 = sphi 0, %s32
    %s36 = sphi 0, %s35
    %s52 = sphi 0, %s36
    %s58 = sphi 0, %s60
    %s61 = sphi 0, %s58
    %s62 = sphi 0, %s61
    %s78 = sphi 0, %s62
    %s84 = sphi 0, %s86
    %s87 = sphi 0, %s84
    %s88 = sphi 0, %s87
    %s104 = sphi 0, %s88
  $region4: #{generator_forward.15} parent=0 // loop_header_branch
    %11 = sbr.rel (%p9) target = $region8
  $region5: #{generator_forward.15} parent=0 // loop_body
    %s13 = ssub.s32 %s8, 1
    %s14 = ssub.s32 %s8, 2
    %s21 = sadd.s32 1, %s16
    %p22 = scmp.ge.s32.totalorder %s21, 1
    %s23 = scalar_select %p22, 0, %s21
    %s24 = sadd.s32 1, %s15
    %s25 = scalar_select %p22, %s24, %s15
    %p26 = scmp.ge.s32.totalorder %s25, 2
    %s27 = scalar_select %p26, 0, %s25
    %s28 = ssub.s32 %s15, %s27
    %s29 = ssub.s32 %s16, %s23
    %s30 = sor.u32 %s28, %s29
    %p31 = scmp.eq.s32.totalorder %s30, 0
    %s33 = sadd.s32 %s32, 1
    %s34 = scalar_select %p31, %s32, %s33
    %p37 = pneg %p31
    %p38 = scmp.eq.s32.totalorder %s8, 1
    %p39 = por %p37, %p38
    %p40 = scmp.ne.s32.totalorder %s32, %s35
    %p41 = scmp.eq.s32.totalorder %s8, 0
    %p42 = por %p40, %p41
    %p43 = scmp.ne.s32.totalorder %s32, %s35
    %p44 = scmp.eq.s32.totalorder %s13, 1
    %p45 = por %p43, %p44
    %p46 = scmp.ne.s32.totalorder %s35, %s36
    %p47 = scmp.eq.s32.totalorder %s13, 0
    %p48 = por %p46, %p47
    %p49 = scmp.ne.s32.totalorder %s35, %s36
    %p50 = scmp.eq.s32.totalorder %s14, 1
    %p51 = por %p49, %p50
    %p53 = scmp.ne.s32.totalorder %s36, %s52
    %p54 = scmp.eq.s32.totalorder %s14, 0
    %p55 = por %p53, %p54
    %s56 = ssub.s32 %s16, %s23
    %p57 = scmp.eq.s32.totalorder %s56, 0
    %s59 = sadd.s32 %s58, 1
    %s60 = scalar_select %p57, %s58, %s59
    %p63 = pneg %p57
    %p64 = scmp.eq.s32.totalorder %s8, 1
    %p65 = por %p63, %p64
    %p66 = scmp.ne.s32.totalorder %s58, %s61
    %p67 = scmp.eq.s32.totalorder %s8, 0
    %p68 = por %p66, %p67
    %p69 = scmp.ne.s32.totalorder %s58, %s61
    %p70 = scmp.eq.s32.totalorder %s13, 1
    %p71 = por %p69, %p70
    %p72 = scmp.ne.s32.totalorder %s61, %s62
    %p73 = scmp.eq.s32.totalorder %s13, 0
    %p74 = por %p72, %p73
    %p75 = scmp.ne.s32.totalorder %s61, %s62
    %p76 = scmp.eq.s32.totalorder %s14, 1
    %p77 = por %p75, %p76
    %p79 = scmp.ne.s32.totalorder %s62, %s78
    %p80 = scmp.eq.s32.totalorder %s14, 0
    %p81 = por %p79, %p80
    %s82 = ssub.s32 %s15, %s27
    %p83 = scmp.eq.s32.totalorder %s82, 0
    %s85 = sadd.s32 %s84, 1
    %s86 = scalar_select %p83, %s84, %s85
    %p89 = pneg %p83
    %p90 = scmp.eq.s32.totalorder %s8, 1
    %p91 = por %p89, %p90
    %p92 = scmp.ne.s32.totalorder %s84, %s87
    %p93 = scmp.eq.s32.totalorder %s8, 0
    %p94 = por %p92, %p93
    %p95 = scmp.ne.s32.totalorder %s84, %s87
    %p96 = scmp.eq.s32.totalorder %s13, 1
    %p97 = por %p95, %p96
    %p98 = scmp.ne.s32.totalorder %s87, %s88
    %p99 = scmp.eq.s32.totalorder %s13, 0
    %p100 = por %p98, %p99
    %p101 = scmp.ne.s32.totalorder %s87, %s88
    %p102 = scmp.eq.s32.totalorder %s14, 1
    %p103 = por %p101, %p102
    %p105 = scmp.ne.s32.totalorder %s88, %s104
    %p106 = scmp.eq.s32.totalorder %s14, 0
    %p107 = por %p105, %p106
    %p108 = scmp.le.s32.totalorder 1, %s8
    %p109 = scmp.lt.s32.totalorder %s8, 3
    %p110 = pnand %p108, %p109
    %p111 = pneg %p110
    // Predicated region
    $region9: #{generator_forward.15} parent=5 // pred_check
      _
    $region10: #{generator_forward.15} parent=5 // pred_check_branch
      %113 = sbr.rel (%p110) target = $region12
    $region11: #{generator_forward.15} parent=5 // pred_region
      %s114 = ssub.s32 %s8, 1
      // Predicated region
      $region13: #{generator_forward.15} parent=11 // pred_check
        %p115 = pneg %p74
      $region14: #{generator_forward.15} parent=11 // pred_check_branch
        %117 = sbr.rel (%p115) target = $region16
      $region15: #{generator_forward.15} parent=11 // pred_region
        %s118 = smul.u32 8, %s18
        %p119 = scmp.lt.s32.totalorder %s118, 7
        %s120 = scalar_select %p119, %s118, 7
        %s121 = smul.addr %s120, 4
        %s122 = scalar_lea.vmem %s1, %s121
        %s123 = smul.u32 8, %s18
      $region16: #{generator_forward.15} parent=11 // pred_fallthru
        _
    $region12: #{generator_forward.15} parent=5 // pred_fallthru
      _
    %p124 = scmp.lt.s32.totalorder %s8, 2
    // Predicated region
    $region17: #{generator_forward.15} parent=5 // pred_check
      %p125 = pneg %p124
    $region18: #{generator_forward.15} parent=5 // pred_check_branch
      %127 = sbr.rel (%p125) target = $region20
    $region19: #{generator_forward.15} parent=5 // pred_region
      // Predicated region
      $region21: #{generator_forward.15} parent=19 // pred_check
        %p128 = pneg %p42
      $region22: #{generator_forward.15} parent=19 // pred_check_branch
        %130 = sbr.rel (%p128) target = $region24
      $region23: #{generator_forward.15} parent=19 // pred_region
        %s131 = smul.u32 64, %s15
        %p132 = scmp.lt.s32.totalorder %s131, 127
        %s133 = scalar_select %p132, %s131, 127
        %p134 = scmp.lt.s32.totalorder %s16, 0
        %s135 = scalar_select %p134, %s16, 0
        %s136 = sadd.s32 %s135, %s133
        %s137 = smul.addr %s136, 4
        %s138 = scalar_lea.vmem %s0, %s137
        %s139 = smul.u32 64, %s15
      $region24: #{generator_forward.15} parent=19 // pred_fallthru
        _
    $region20: #{generator_forward.15} parent=5 // pred_fallthru
      _
    %p140 = scmp.le.s32.totalorder 1, %s8
    %p141 = scmp.lt.s32.totalorder %s8, 3
    %p142 = pnand %p140, %p141
    %p143 = pneg %p142
    // Predicated region
    $region25: #{generator_forward.15} parent=5 // pred_check
      _
    $region26: #{generator_forward.15} parent=5 // pred_check_branch
      %145 = sbr.rel (%p142) target = $region28
    $region27: #{generator_forward.15} parent=5 // pred_region
      %s146 = ssub.s32 %s8, 1
      %s147 = smul.u32 64, %s17
      %p148 = scmp.lt.s32.totalorder %s147, 127
      %s149 = scalar_select %p148, %s147, 127
      %p150 = scmp.lt.s32.totalorder %s18, 0
      %s151 = scalar_select %p150, %s18, 0
      %s152 = sadd.s32 %s151, %s149
      %s153 = smul.addr %s152, 4
      %s154 = scalar_lea.vmem %s0, %s153
      %p155 = pneg %p48
      %p156 = pneg %p45
      %s157 = smul.u32 8, %s18
      %p158 = scmp.lt.s32.totalorder %s157, 7
      %s159 = scalar_select %p158, %s157, 7
      %s160 = smul.addr %s159, 4
      %s161 = scalar_lea.vmem %s1, %s160
      %p162 = pneg %p74
      %p163 = pneg %p71
      %p164 = pneg %p100
      %p165 = pneg %p97
      %s166 = smul.u32 64, %s17
      %p167 = scmp.lt.s32.totalorder %s166, 127
      %s168 = scalar_select %p167, %s166, 127
      %s169 = smul.addr %s168, 8
      %s170 = scalar_lea.vmem %s2, %s169
      %s171 = smul.u32 64, %s17
      %p172 = scmp.lt.s32.totalorder %s171, 127
      %s173 = scalar_select %p172, %s171, 127
      %p174 = scmp.lt.s32.totalorder %s18, 0
      %s175 = scalar_select %p174, %s18, 0
      %s176 = sadd.s32 %s175, %s173
      %s177 = smul.addr %s176, 4
      %s178 = scalar_lea.vmem %s0, %s177
      %s179 = smul.u32 64, %s17
      %s180 = smul.u32 8, %s18
      %p181 = scmp.lt.s32.totalorder %s180, 7
      %s182 = scalar_select %p181, %s180, 7
      %s183 = smul.addr %s182, 4
      %s184 = scalar_lea.vmem %s1, %s183
      %s185 = smul.u32 8, %s18
      %s186 = smul.u32 64, %s17
      %p187 = scmp.lt.s32.totalorder %s186, 127
      %s188 = scalar_select %p187, %s186, 127
      %s189 = smul.addr %s188, 8
      %s190 = scalar_lea.vmem %s2, %s189
      %s191 = smul.u32 64, %s17
      %p193 = scmp.eq.s32.totalorder %s18, 0
      // Predicated region
      $region29: #{generator_forward.15} parent=27 // pred_check
        %p194 = pneg %p193
      $region30: #{generator_forward.15} parent=27 // pred_check_branch
        %196 = sbr.rel (%p194) target = $region32
      $region31: #{generator_forward.15} parent=27 // pred_region
        %197 = vst [vmem:[#allocation2] sm:$0xff] 0.0
        %198 = vst [vmem:[#allocation2 + $0x8] sm:$0xff] 0.0
        %199 = vst [vmem:[#allocation2 + $0x10] sm:$0xff] 0.0
        %200 = vst [vmem:[#allocation2 + $0x18] sm:$0xff] 0.0
        %201 = vst [vmem:[#allocation2 + $0x20] sm:$0xff] 0.0
        %202 = vst [vmem:[#allocation2 + $0x28] sm:$0xff] 0.0
        %203 = vst [vmem:[#allocation2 + $0x30] sm:$0xff] 0.0
        %204 = vst [vmem:[#allocation2 + $0x38] sm:$0xff] 0.0
        %205 = vst [vmem:[#allocation2 + $0x40] sm:$0xff] 0.0
        %206 = vst [vmem:[#allocation2 + $0x48] sm:$0xff] 0.0
        %207 = vst [vmem:[#allocation2 + $0x50] sm:$0xff] 0.0
        %208 = vst [vmem:[#allocation2 + $0x58] sm:$0xff] 0.0
        %209 = vst [vmem:[#allocation2 + $0x60] sm:$0xff] 0.0
        %210 = vst [vmem:[#allocation2 + $0x68] sm:$0xff] 0.0
        %211 = vst [vmem:[#allocation2 + $0x70] sm:$0xff] 0.0
        %212 = vst [vmem:[#allocation2 + $0x78] sm:$0xff] 0.0
        %213 = vst [vmem:[#allocation2 + $0x80] sm:$0xff] 0.0
        %214 = vst [vmem:[#allocation2 + $0x88] sm:$0xff] 0.0
        %215 = vst [vmem:[#allocation2 + $0x90] sm:$0xff] 0.0
        %216 = vst [vmem:[#allocation2 + $0x98] sm:$0xff] 0.0
        %217 = vst [vmem:[#allocation2 + $0xa0] sm:$0xff] 0.0
        %218 = vst [vmem:[#allocation2 + $0xa8] sm:$0xff] 0.0
        %219 = vst [vmem:[#allocation2 + $0xb0] sm:$0xff] 0.0
        %220 = vst [vmem:[#allocation2 + $0xb8] sm:$0xff] 0.0
        %221 = vst [vmem:[#allocation2 + $0xc0] sm:$0xff] 0.0
        %222 = vst [vmem:[#allocation2 + $0xc8] sm:$0xff] 0.0
        %223 = vst [vmem:[#allocation2 + $0xd0] sm:$0xff] 0.0
        %224 = vst [vmem:[#allocation2 + $0xd8] sm:$0xff] 0.0
        %225 = vst [vmem:[#allocation2 + $0xe0] sm:$0xff] 0.0
        %226 = vst [vmem:[#allocation2 + $0xe8] sm:$0xff] 0.0
        %227 = vst [vmem:[#allocation2 + $0xf0] sm:$0xff] 0.0
        %228 = vst [vmem:[#allocation2 + $0xf8] sm:$0xff] 0.0
        %229 = vst [vmem:[#allocation2 + $0x100] sm:$0xff] 0.0
        %230 = vst [vmem:[#allocation2 + $0x108] sm:$0xff] 0.0
        %231 = vst [vmem:[#allocation2 + $0x110] sm:$0xff] 0.0
        %232 = vst [vmem:[#allocation2 + $0x118] sm:$0xff] 0.0
        %233 = vst [vmem:[#allocation2 + $0x120] sm:$0xff] 0.0
        %234 = vst [vmem:[#allocation2 + $0x128] sm:$0xff] 0.0
        %235 = vst [vmem:[#allocation2 + $0x130] sm:$0xff] 0.0
        %236 = vst [vmem:[#allocation2 + $0x138] sm:$0xff] 0.0
        %237 = vst [vmem:[#allocation2 + $0x140] sm:$0xff] 0.0
        %238 = vst [vmem:[#allocation2 + $0x148] sm:$0xff] 0.0
        %239 = vst [vmem:[#allocation2 + $0x150] sm:$0xff] 0.0
        %240 = vst [vmem:[#allocation2 + $0x158] sm:$0xff] 0.0
        %241 = vst [vmem:[#allocation2 + $0x160] sm:$0xff] 0.0
        %242 = vst [vmem:[#allocation2 + $0x168] sm:$0xff] 0.0
        %243 = vst [vmem:[#allocation2 + $0x170] sm:$0xff] 0.0
        %244 = vst [vmem:[#allocation2 + $0x178] sm:$0xff] 0.0
        %245 = vst [vmem:[#allocation2 + $0x180] sm:$0xff] 0.0
        %246 = vst [vmem:[#allocation2 + $0x188] sm:$0xff] 0.0
        %247 = vst [vmem:[#allocation2 + $0x190] sm:$0xff] 0.0
        %248 = vst [vmem:[#allocation2 + $0x198] sm:$0xff] 0.0
        %249 = vst [vmem:[#allocation2 + $0x1a0] sm:$0xff] 0.0
        %250 = vst [vmem:[#allocation2 + $0x1a8] sm:$0xff] 0.0
        %251 = vst [vmem:[#allocation2 + $0x1b0] sm:$0xff] 0.0
        %252 = vst [vmem:[#allocation2 + $0x1b8] sm:$0xff] 0.0
        %253 = vst [vmem:[#allocation2 + $0x1c0] sm:$0xff] 0.0
        %254 = vst [vmem:[#allocation2 + $0x1c8] sm:$0xff] 0.0
        %255 = vst [vmem:[#allocation2 + $0x1d0] sm:$0xff] 0.0
        %256 = vst [vmem:[#allocation2 + $0x1d8] sm:$0xff] 0.0
        %257 = vst [vmem:[#allocation2 + $0x1e0] sm:$0xff] 0.0
        %258 = vst [vmem:[#allocation2 + $0x1e8] sm:$0xff] 0.0
        %259 = vst [vmem:[#allocation2 + $0x1f0] sm:$0xff] 0.0
        %260 = vst [vmem:[#allocation2 + $0x1f8] sm:$0xff] 0.0
      $region32: #{generator_forward.15} parent=27 // pred_fallthru
        _
      %v261 = vld [vmem:[#allocation2] sm:$0xff]
      %v262 = vld [vmem:[#allocation2 + $0x8] sm:$0xff]
      %v263 = vld [vmem:[#allocation2 + $0x10] sm:$0xff]
      %v264 = vld [vmem:[#allocation2 + $0x18] sm:$0xff]
      %v265 = vld [vmem:[#allocation2 + $0x20] sm:$0xff]
      %v266 = vld [vmem:[#allocation2 + $0x28] sm:$0xff]
      %v267 = vld [vmem:[#allocation2 + $0x30] sm:$0xff]
      %v268 = vld [vmem:[#allocation2 + $0x38] sm:$0xff]
      %v269 = vld [vmem:[#allocation2 + $0x40] sm:$0xff]
      %v270 = vld [vmem:[#allocation2 + $0x48] sm:$0xff]
      %v271 = vld [vmem:[#allocation2 + $0x50] sm:$0xff]
      %v272 = vld [vmem:[#allocation2 + $0x58] sm:$0xff]
      %v273 = vld [vmem:[#allocation2 + $0x60] sm:$0xff]
      %v274 = vld [vmem:[#allocation2 + $0x68] sm:$0xff]
      %v275 = vld [vmem:[#allocation2 + $0x70] sm:$0xff]
      %v276 = vld [vmem:[#allocation2 + $0x78] sm:$0xff]
      %v277 = vld [vmem:[#allocation2 + $0x80] sm:$0xff]
      %v278 = vld [vmem:[#allocation2 + $0x88] sm:$0xff]
      %v279 = vld [vmem:[#allocation2 + $0x90] sm:$0xff]
      %v280 = vld [vmem:[#allocation2 + $0x98] sm:$0xff]
      %v281 = vld [vmem:[#allocation2 + $0xa0] sm:$0xff]
      %v282 = vld [vmem:[#allocation2 + $0xa8] sm:$0xff]
      %v283 = vld [vmem:[#allocation2 + $0xb0] sm:$0xff]
      %v284 = vld [vmem:[#allocation2 + $0xb8] sm:$0xff]
      %v285 = vld [vmem:[#allocation2 + $0xc0] sm:$0xff]
      %v286 = vld [vmem:[#allocation2 + $0xc8] sm:$0xff]
      %v287 = vld [vmem:[#allocation2 + $0xd0] sm:$0xff]
      %v288 = vld [vmem:[#allocation2 + $0xd8] sm:$0xff]
      %v289 = vld [vmem:[#allocation2 + $0xe0] sm:$0xff]
      %v290 = vld [vmem:[#allocation2 + $0xe8] sm:$0xff]
      %v291 = vld [vmem:[#allocation2 + $0xf0] sm:$0xff]
      %v292 = vld [vmem:[#allocation2 + $0xf8] sm:$0xff]
      %v293 = vld [vmem:[#allocation2 + $0x100] sm:$0xff]
      %v294 = vld [vmem:[#allocation2 + $0x108] sm:$0xff]
      %v295 = vld [vmem:[#allocation2 + $0x110] sm:$0xff]
      %v296 = vld [vmem:[#allocation2 + $0x118] sm:$0xff]
      %v297 = vld [vmem:[#allocation2 + $0x120] sm:$0xff]
      %v298 = vld [vmem:[#allocation2 + $0x128] sm:$0xff]
      %v299 = vld [vmem:[#allocation2 + $0x130] sm:$0xff]
      %v300 = vld [vmem:[#allocation2 + $0x138] sm:$0xff]
      %v301 = vld [vmem:[#allocation2 + $0x140] sm:$0xff]
      %v302 = vld [vmem:[#allocation2 + $0x148] sm:$0xff]
      %v303 = vld [vmem:[#allocation2 + $0x150] sm:$0xff]
      %v304 = vld [vmem:[#allocation2 + $0x158] sm:$0xff]
      %v305 = vld [vmem:[#allocation2 + $0x160] sm:$0xff]
      %v306 = vld [vmem:[#allocation2 + $0x168] sm:$0xff]
      %v307 = vld [vmem:[#allocation2 + $0x170] sm:$0xff]
      %v308 = vld [vmem:[#allocation2 + $0x178] sm:$0xff]
      %v309 = vld [vmem:[#allocation2 + $0x180] sm:$0xff]
      %v310 = vld [vmem:[#allocation2 + $0x188] sm:$0xff]
      %v311 = vld [vmem:[#allocation2 + $0x190] sm:$0xff]
      %v312 = vld [vmem:[#allocation2 + $0x198] sm:$0xff]
      %v313 = vld [vmem:[#allocation2 + $0x1a0] sm:$0xff]
      %v314 = vld [vmem:[#allocation2 + $0x1a8] sm:$0xff]
      %v315 = vld [vmem:[#allocation2 + $0x1b0] sm:$0xff]
      %v316 = vld [vmem:[#allocation2 + $0x1b8] sm:$0xff]
      %v317 = vld [vmem:[#allocation2 + $0x1c0] sm:$0xff]
      %v318 = vld [vmem:[#allocation2 + $0x1c8] sm:$0xff]
      %v319 = vld [vmem:[#allocation2 + $0x1d0] sm:$0xff]
      %v320 = vld [vmem:[#allocation2 + $0x1d8] sm:$0xff]
      %v321 = vld [vmem:[#allocation2 + $0x1e0] sm:$0xff]
      %v322 = vld [vmem:[#allocation2 + $0x1e8] sm:$0xff]
      %v323 = vld [vmem:[#allocation2 + $0x1f0] sm:$0xff]
      %v324 = vld [vmem:[#allocation2 + $0x1f8] sm:$0xff]
      %v325 = vld [vmem:[%s178] sm:$0xf]
      %v326 = vld [vmem:[%s178 + $0x4] sm:$0xf]
      %v327 = vld [vmem:[%s178 + $0x8] sm:$0xf]
      %v328 = vld [vmem:[%s178 + $0xc] sm:$0xf]
      %v329 = vld [vmem:[%s178 + $0x10] sm:$0xf]
      %v330 = vld [vmem:[%s178 + $0x14] sm:$0xf]
      %v331 = vld [vmem:[%s178 + $0x18] sm:$0xf]
      %v332 = vld [vmem:[%s178 + $0x1c] sm:$0xf]
      %v333 = vld [vmem:[%s178 + $0x20] sm:$0xf]
      %v334 = vld [vmem:[%s178 + $0x24] sm:$0xf]
      %v335 = vld [vmem:[%s178 + $0x28] sm:$0xf]
      %v336 = vld [vmem:[%s178 + $0x2c] sm:$0xf]
      %v337 = vld [vmem:[%s178 + $0x30] sm:$0xf]
      %v338 = vld [vmem:[%s178 + $0x34] sm:$0xf]
      %v339 = vld [vmem:[%s178 + $0x38] sm:$0xf]
      %v340 = vld [vmem:[%s178 + $0x3c] sm:$0xf]
      %v341 = vld [vmem:[%s178 + $0x40] sm:$0xf]
      %v342 = vld [vmem:[%s178 + $0x44] sm:$0xf]
      %v343 = vld [vmem:[%s178 + $0x48] sm:$0xf]
      %v344 = vld [vmem:[%s178 + $0x4c] sm:$0xf]
      %v345 = vld [vmem:[%s178 + $0x50] sm:$0xf]
      %v346 = vld [vmem:[%s178 + $0x54] sm:$0xf]
      %v347 = vld [vmem:[%s178 + $0x58] sm:$0xf]
      %v348 = vld [vmem:[%s178 + $0x5c] sm:$0xf]
      %v349 = vld [vmem:[%s178 + $0x60] sm:$0xf]
      %v350 = vld [vmem:[%s178 + $0x64] sm:$0xf]
      %v351 = vld [vmem:[%s178 + $0x68] sm:$0xf]
      %v352 = vld [vmem:[%s178 + $0x6c] sm:$0xf]
      %v353 = vld [vmem:[%s178 + $0x70] sm:$0xf]
      %v354 = vld [vmem:[%s178 + $0x74] sm:$0xf]
      %v355 = vld [vmem:[%s178 + $0x78] sm:$0xf]
      %v356 = vld [vmem:[%s178 + $0x7c] sm:$0xf]
      %v357 = vld [vmem:[%s178 + $0x80] sm:$0xf]
      %v358 = vld [vmem:[%s178 + $0x84] sm:$0xf]
      %v359 = vld [vmem:[%s178 + $0x88] sm:$0xf]
      %v360 = vld [vmem:[%s178 + $0x8c] sm:$0xf]
      %v361 = vld [vmem:[%s178 + $0x90] sm:$0xf]
      %v362 = vld [vmem:[%s178 + $0x94] sm:$0xf]
      %v363 = vld [vmem:[%s178 + $0x98] sm:$0xf]
      %v364 = vld [vmem:[%s178 + $0x9c] sm:$0xf]
      %v365 = vld [vmem:[%s178 + $0xa0] sm:$0xf]
      %v366 = vld [vmem:[%s178 + $0xa4] sm:$0xf]
      %v367 = vld [vmem:[%s178 + $0xa8] sm:$0xf]
      %v368 = vld [vmem:[%s178 + $0xac] sm:$0xf]
      %v369 = vld [vmem:[%s178 + $0xb0] sm:$0xf]
      %v370 = vld [vmem:[%s178 + $0xb4] sm:$0xf]
      %v371 = vld [vmem:[%s178 + $0xb8] sm:$0xf]
      %v372 = vld [vmem:[%s178 + $0xbc] sm:$0xf]
      %v373 = vld [vmem:[%s178 + $0xc0] sm:$0xf]
      %v374 = vld [vmem:[%s178 + $0xc4] sm:$0xf]
      %v375 = vld [vmem:[%s178 + $0xc8] sm:$0xf]
      %v376 = vld [vmem:[%s178 + $0xcc] sm:$0xf]
      %v377 = vld [vmem:[%s178 + $0xd0] sm:$0xf]
      %v378 = vld [vmem:[%s178 + $0xd4] sm:$0xf]
      %v379 = vld [vmem:[%s178 + $0xd8] sm:$0xf]
      %v380 = vld [vmem:[%s178 + $0xdc] sm:$0xf]
      %v381 = vld [vmem:[%s178 + $0xe0] sm:$0xf]
      %v382 = vld [vmem:[%s178 + $0xe4] sm:$0xf]
      %v383 = vld [vmem:[%s178 + $0xe8] sm:$0xf]
      %v384 = vld [vmem:[%s178 + $0xec] sm:$0xf]
      %v385 = vld [vmem:[%s178 + $0xf0] sm:$0xf]
      %v386 = vld [vmem:[%s178 + $0xf4] sm:$0xf]
      %v387 = vld [vmem:[%s178 + $0xf8] sm:$0xf]
      %v388 = vld [vmem:[%s178 + $0xfc] sm:$0xf]
      %v389 = vld [vmem:[%s184] sm:$0xf]
      %v390 = vld [vmem:[%s184 + $0x4] sm:$0xf]
      %v391 = vld [vmem:[%s184 + $0x8] sm:$0xf]
      %v392 = vld [vmem:[%s184 + $0xc] sm:$0xf]
      %v393 = vld [vmem:[%s184 + $0x10] sm:$0xf]
      %v394 = vld [vmem:[%s184 + $0x14] sm:$0xf]
      %v395 = vld [vmem:[%s184 + $0x18] sm:$0xf]
      %v396 = vld [vmem:[%s184 + $0x1c] sm:$0xf]
      %v461 = vunpack.c.l.b16 %v325
      %v462 = vunpack.c.l.b16 %v326
      %v463 = vunpack.c.l.b16 %v327
      %v464 = vunpack.c.l.b16 %v328
      %v465 = vunpack.c.l.b16 %v329
      %v466 = vunpack.c.l.b16 %v330
      %v467 = vunpack.c.l.b16 %v331
      %v468 = vunpack.c.l.b16 %v332
      %v469 = vunpack.c.l.b16 %v333
      %v470 = vunpack.c.l.b16 %v334
      %v471 = vunpack.c.l.b16 %v335
      %v472 = vunpack.c.l.b16 %v336
      %v473 = vunpack.c.l.b16 %v337
      %v474 = vunpack.c.l.b16 %v338
      %v475 = vunpack.c.l.b16 %v339
      %v476 = vunpack.c.l.b16 %v340
      %v477 = vunpack.c.l.b16 %v341
      %v478 = vunpack.c.l.b16 %v342
      %v479 = vunpack.c.l.b16 %v343
      %v480 = vunpack.c.l.b16 %v344
      %v481 = vunpack.c.l.b16 %v345
      %v482 = vunpack.c.l.b16 %v346
      %v483 = vunpack.c.l.b16 %v347
      %v484 = vunpack.c.l.b16 %v348
      %v485 = vunpack.c.l.b16 %v349
      %v486 = vunpack.c.l.b16 %v350
      %v487 = vunpack.c.l.b16 %v351
      %v488 = vunpack.c.l.b16 %v352
      %v489 = vunpack.c.l.b16 %v353
      %v490 = vunpack.c.l.b16 %v354
      %v491 = vunpack.c.l.b16 %v355
      %v492 = vunpack.c.l.b16 %v356
      %v493 = vunpack.c.l.b16 %v357
      %v494 = vunpack.c.l.b16 %v358
      %v495 = vunpack.c.l.b16 %v359
      %v496 = vunpack.c.l.b16 %v360
      %v497 = vunpack.c.l.b16 %v361
      %v498 = vunpack.c.l.b16 %v362
      %v499 = vunpack.c.l.b16 %v363
      %v500 = vunpack.c.l.b16 %v364
      %v501 = vunpack.c.l.b16 %v365
      %v502 = vunpack.c.l.b16 %v366
      %v503 = vunpack.c.l.b16 %v367
      %v504 = vunpack.c.l.b16 %v368
      %v505 = vunpack.c.l.b16 %v369
      %v506 = vunpack.c.l.b16 %v370
      %v507 = vunpack.c.l.b16 %v371
      %v508 = vunpack.c.l.b16 %v372
      %v509 = vunpack.c.l.b16 %v373
      %v510 = vunpack.c.l.b16 %v374
      %v511 = vunpack.c.l.b16 %v375
      %v512 = vunpack.c.l.b16 %v376
      %v513 = vunpack.c.l.b16 %v377
      %v514 = vunpack.c.l.b16 %v378
      %v515 = vunpack.c.l.b16 %v379
      %v516 = vunpack.c.l.b16 %v380
      %v517 = vunpack.c.l.b16 %v381
      %v518 = vunpack.c.l.b16 %v382
      %v519 = vunpack.c.l.b16 %v383
      %v520 = vunpack.c.l.b16 %v384
      %v521 = vunpack.c.l.b16 %v385
      %v522 = vunpack.c.l.b16 %v386
      %v523 = vunpack.c.l.b16 %v387
      %v524 = vunpack.c.l.b16 %v388
      %v525 = vpack.c.b16 %v462, %v461
      %v526 = vpack.c.b16 %v464, %v463
      %v527 = vpack.c.b16 %v466, %v465
      %v528 = vpack.c.b16 %v468, %v467
      %v529 = vpack.c.b16 %v470, %v469
      %v530 = vpack.c.b16 %v472, %v471
      %v531 = vpack.c.b16 %v474, %v473
      %v532 = vpack.c.b16 %v476, %v475
      %v533 = vpack.c.b16 %v478, %v477
      %v534 = vpack.c.b16 %v480, %v479
      %v535 = vpack.c.b16 %v482, %v481
      %v536 = vpack.c.b16 %v484, %v483
      %v537 = vpack.c.b16 %v486, %v485
      %v538 = vpack.c.b16 %v488, %v487
      %v539 = vpack.c.b16 %v490, %v489
      %v540 = vpack.c.b16 %v492, %v491
      %v541 = vpack.c.b16 %v494, %v493
      %v542 = vpack.c.b16 %v496, %v495
      %v543 = vpack.c.b16 %v498, %v497
      %v544 = vpack.c.b16 %v500, %v499
      %v545 = vpack.c.b16 %v502, %v501
      %v546 = vpack.c.b16 %v504, %v503
      %v547 = vpack.c.b16 %v506, %v505
      %v548 = vpack.c.b16 %v508, %v507
      %v549 = vpack.c.b16 %v510, %v509
      %v550 = vpack.c.b16 %v512, %v511
      %v551 = vpack.c.b16 %v514, %v513
      %v552 = vpack.c.b16 %v516, %v515
      %v553 = vpack.c.b16 %v518, %v517
      %v554 = vpack.c.b16 %v520, %v519
      %v555 = vpack.c.b16 %v522, %v521
      %v556 = vpack.c.b16 %v524, %v523
      %v565 = vunpack.c.l.b16 %v389
      %v566 = vunpack.c.l.b16 %v390
      %v567 = vunpack.c.l.b16 %v391
      %v568 = vunpack.c.l.b16 %v392
      %v569 = vunpack.c.l.b16 %v393
      %v570 = vunpack.c.l.b16 %v394
      %v571 = vunpack.c.l.b16 %v395
      %v572 = vunpack.c.l.b16 %v396
      %v573 = vpack.c.b16 %v566, %v565
      %v574 = vpack.c.b16 %v568, %v567
      %v575 = vpack.c.b16 %v570, %v569
      %v576 = vpack.c.b16 %v572, %v571
      %vm581 = vcmask 523264
      %v583 = vsel %vm581, %v525, 0
      %v586 = vsel %vm581, %v526, 0
      %v589 = vsel %vm581, %v527, 0
      %v592 = vsel %vm581, %v528, 0
      %v595 = vsel %vm581, %v529, 0
      %v598 = vsel %vm581, %v530, 0
      %v601 = vsel %vm581, %v531, 0
      %v604 = vsel %vm581, %v532, 0
      %v607 = vsel %vm581, %v533, 0
      %v610 = vsel %vm581, %v534, 0
      %v613 = vsel %vm581, %v535, 0
      %v616 = vsel %vm581, %v536, 0
      %v619 = vsel %vm581, %v537, 0
      %v622 = vsel %vm581, %v538, 0
      %v625 = vsel %vm581, %v539, 0
      %v628 = vsel %vm581, %v540, 0
      %v631 = vsel %vm581, %v541, 0
      %v634 = vsel %vm581, %v542, 0
      %v637 = vsel %vm581, %v543, 0
      %v640 = vsel %vm581, %v544, 0
      %v643 = vsel %vm581, %v545, 0
      %v646 = vsel %vm581, %v546, 0
      %v649 = vsel %vm581, %v547, 0
      %v652 = vsel %vm581, %v548, 0
      %v655 = vsel %vm581, %v549, 0
      %v658 = vsel %vm581, %v550, 0
      %v661 = vsel %vm581, %v551, 0
      %v664 = vsel %vm581, %v552, 0
      %v667 = vsel %vm581, %v553, 0
      %v670 = vsel %vm581, %v554, 0
      %v673 = vsel %vm581, %v555, 0
      %v676 = vsel %vm581, %v556, 0
      %678 = vmatprep.subr.bf16.mxu0 0
      %679 = vmatpush1.bf16.msra.mxu0 %v573
      %680 = vmatprep.subr.bf16.mxu0 0
      %681 = vmatpush1.bf16.msra.mxu0 %v574
      %682 = vmatprep.subr.bf16.mxu0 0
      %683 = vmatpush1.bf16.msra.mxu0 %v575
      %684 = vmatprep.subr.bf16.mxu0 0
      %685 = vmatpush1.bf16.msra.mxu0 %v576
      %686 = vmatprep.subr.bf16.mxu0 0
      %687 = vmatpush1.bf16.msra.mxu0 0
      %688 = vmatprep.subr.bf16.mxu0 0
      %689 = vmatpush1.bf16.msra.mxu0 0
      %690 = vmatprep.subr.bf16.mxu0 0
      %691 = vmatpush1.bf16.msra.mxu0 0
      %692 = vmatprep.subr.bf16.mxu0 0
      %693 = vmatpush1.bf16.msra.mxu0 0
      %694 = vmatprep.subr.bf16.mxu0 0
      %695 = vmatpush1.bf16.msra.mxu0 0
      %696 = vmatprep.subr.bf16.mxu0 0
      %697 = vmatpush1.bf16.msra.mxu0 0
      %698 = vmatprep.subr.bf16.mxu0 0
      %699 = vmatpush1.bf16.msra.mxu0 0
      %700 = vmatprep.subr.bf16.mxu0 0
      %701 = vmatpush1.bf16.msra.mxu0 0
      %702 = vmatprep.subr.bf16.mxu0 0
      %703 = vmatpush1.bf16.msra.mxu0 0
      %704 = vmatprep.subr.bf16.mxu0 0
      %705 = vmatpush1.bf16.msra.mxu0 0
      %706 = vmatprep.subr.bf16.mxu0 0
      %707 = vmatpush1.bf16.msra.mxu0 0
      %708 = vmatprep.subr.bf16.mxu0 0
      %709 = vmatpush1.bf16.msra.mxu0 0
      %710 = vmatprep.mubr.bf16.mxu0 0
      %711 = vmatmul.mubr.bf16.gmra.mrb[0].mxu0 %v583
      %v712 = vpop.f32.mrb[0].mxu0
      %v713 = vadd.f32 0.0, %v712
      %v714 = vpop.f32.mrb[0].mxu0
      %v715 = vpop.f32.mrb[0].mxu0
      %v716 = vadd.f32 0.0, %v715
      %v717 = vpop.f32.mrb[0].mxu0
      %718 = vmatprep.mubr.bf16.mxu0 0
      %719 = vmatmul.mubr.bf16.gmra.mrb[0].mxu0 %v586
      %v720 = vpop.f32.mrb[0].mxu0
      %v721 = vadd.f32 0.0, %v720
      %v722 = vpop.f32.mrb[0].mxu0
      %v723 = vpop.f32.mrb[0].mxu0
      %v724 = vadd.f32 0.0, %v723
      %v725 = vpop.f32.mrb[0].mxu0
      %726 = vmatprep.mubr.bf16.mxu0 0
      %727 = vmatmul.mubr.bf16.gmra.mrb[0].mxu0 %v589
      %v728 = vpop.f32.mrb[0].mxu0
      %v729 = vadd.f32 0.0, %v728
      %v730 = vpop.f32.mrb[0].mxu0
      %v731 = vpop.f32.mrb[0].mxu0
      %v732 = vadd.f32 0.0, %v731
      %v733 = vpop.f32.mrb[0].mxu0
      %734 = vmatprep.mubr.bf16.mxu0 0
      %735 = vmatmul.mubr.bf16.gmra.mrb[0].mxu0 %v592
      %v736 = vpop.f32.mrb[0].mxu0
      %v737 = vadd.f32 0.0, %v736
      %v738 = vpop.f32.mrb[0].mxu0
      %v739 = vpop.f32.mrb[0].mxu0
      %v740 = vadd.f32 0.0, %v739
      %v741 = vpop.f32.mrb[0].mxu0
      %742 = vmatprep.mubr.bf16.mxu0 0
      %743 = vmatmul.mubr.bf16.gmra.mrb[0].mxu0 %v595
      %v744 = vpop.f32.mrb[0].mxu0
      %v745 = vadd.f32 0.0, %v744
      %v746 = vpop.f32.mrb[0].mxu0
      %v747 = vpop.f32.mrb[0].mxu0
      %v748 = vadd.f32 0.0, %v747
      %v749 = vpop.f32.mrb[0].mxu0
      %750 = vmatprep.mubr.bf16.mxu0 0
      %751 = vmatmul.mubr.bf16.gmra.mrb[0].mxu0 %v598
      %v752 = vpop.f32.mrb[0].mxu0
      %v753 = vadd.f32 0.0, %v752
      %v754 = vpop.f32.mrb[0].mxu0
      %v755 = vpop.f32.mrb[0].mxu0
      %v756 = vadd.f32 0.0, %v755
      %v757 = vpop.f32.mrb[0].mxu0
      %758 = vmatprep.mubr.bf16.mxu0 0
      %759 = vmatmul.mubr.bf16.gmra.mrb[0].mxu0 %v601
      %v760 = vpop.f32.mrb[0].mxu0
      %v761 = vadd.f32 0.0, %v760
      %v762 = vpop.f32.mrb[0].mxu0
      %v763 = vpop.f32.mrb[0].mxu0
      %v764 = vadd.f32 0.0, %v763
      %v765 = vpop.f32.mrb[0].mxu0
      %766 = vmatprep.mubr.bf16.mxu0 0
      %767 = vmatmul.mubr.bf16.gmra.mrb[0].mxu0 %v604
      %v768 = vpop.f32.mrb[0].mxu0
      %v769 = vadd.f32 0.0, %v768
      %v770 = vpop.f32.mrb[0].mxu0
      %v771 = vpop.f32.mrb[0].mxu0
      %v772 = vadd.f32 0.0, %v771
      %v773 = vpop.f32.mrb[0].mxu0
      %774 = vmatprep.mubr.bf16.mxu0 0
      %775 = vmatmul.mubr.bf16.gmra.mrb[0].mxu0 %v607
      %v776 = vpop.f32.mrb[0].mxu0
      %v777 = vadd.f32 0.0, %v776
      %v778 = vpop.f32.mrb[0].mxu0
      %v779 = vpop.f32.mrb[0].mxu0
      %v780 = vadd.f32 0.0, %v779
      %v781 = vpop.f32.mrb[0].mxu0
      %782 = vmatprep.mubr.bf16.mxu0 0
      %783 = vmatmul.mubr.bf16.gmra.mrb[0].mxu0 %v610
      %v784 = vpop.f32.mrb[0].mxu0
      %v785 = vadd.f32 0.0, %v784
      %v786 = vpop.f32.mrb[0].mxu0
      %v787 = vpop.f32.mrb[0].mxu0
      %v788 = vadd.f32 0.0, %v787
      %v789 = vpop.f32.mrb[0].mxu0
      %790 = vmatprep.mubr.bf16.mxu0 0
      %791 = vmatmul.mubr.bf16.gmra.mrb[0].mxu0 %v613
      %v792 = vpop.f32.mrb[0].mxu0
      %v793 = vadd.f32 0.0, %v792
      %v794 = vpop.f32.mrb[0].mxu0
      %v795 = vpop.f32.mrb[0].mxu0
      %v796 = vadd.f32 0.0, %v795
      %v797 = vpop.f32.mrb[0].mxu0
      %798 = vmatprep.mubr.bf16.mxu0 0
      %799 = vmatmul.mubr.bf16.gmra.mrb[0].mxu0 %v616
      %v800 = vpop.f32.mrb[0].mxu0
      %v801 = vadd.f32 0.0, %v800
      %v802 = vpop.f32.mrb[0].mxu0
      %v803 = vpop.f32.mrb[0].mxu0
      %v804 = vadd.f32 0.0, %v803
      %v805 = vpop.f32.mrb[0].mxu0
      %806 = vmatprep.mubr.bf16.mxu0 0
      %807 = vmatmul.mubr.bf16.gmra.mrb[0].mxu0 %v619
      %v808 = vpop.f32.mrb[0].mxu0
      %v809 = vadd.f32 0.0, %v808
      %v810 = vpop.f32.mrb[0].mxu0
      %v811 = vpop.f32.mrb[0].mxu0
      %v812 = vadd.f32 0.0, %v811
      %v813 = vpop.f32.mrb[0].mxu0
      %814 = vmatprep.mubr.bf16.mxu0 0
      %815 = vmatmul.mubr.bf16.gmra.mrb[0].mxu0 %v622
      %v816 = vpop.f32.mrb[0].mxu0
      %v817 = vadd.f32 0.0, %v816
      %v818 = vpop.f32.mrb[0].mxu0
      %v819 = vpop.f32.mrb[0].mxu0
      %v820 = vadd.f32 0.0, %v819
      %v821 = vpop.f32.mrb[0].mxu0
      %822 = vmatprep.mubr.bf16.mxu0 0
      %823 = vmatmul.mubr.bf16.gmra.mrb[0].mxu0 %v625
      %v824 = vpop.f32.mrb[0].mxu0
      %v825 = vadd.f32 0.0, %v824
      %v826 = vpop.f32.mrb[0].mxu0
      %v827 = vpop.f32.mrb[0].mxu0
      %v828 = vadd.f32 0.0, %v827
      %v829 = vpop.f32.mrb[0].mxu0
      %830 = vmatprep.mubr.bf16.mxu0 0
      %831 = vmatmul.mubr.bf16.gmra.mrb[0].mxu0 %v628
      %v832 = vpop.f32.mrb[0].mxu0
      %v833 = vadd.f32 0.0, %v832
      %v834 = vpop.f32.mrb[0].mxu0
      %v835 = vpop.f32.mrb[0].mxu0
      %v836 = vadd.f32 0.0, %v835
      %v837 = vpop.f32.mrb[0].mxu0
      %838 = vmatprep.mubr.bf16.mxu0 0
      %839 = vmatmul.mubr.bf16.gmra.mrb[0].mxu0 %v631
      %v840 = vpop.f32.mrb[0].mxu0
      %v841 = vadd.f32 0.0, %v840
      %v842 = vpop.f32.mrb[0].mxu0
      %v843 = vpop.f32.mrb[0].mxu0
      %v844 = vadd.f32 0.0, %v843
      %v845 = vpop.f32.mrb[0].mxu0
      %846 = vmatprep.mubr.bf16.mxu0 0
      %847 = vmatmul.mubr.bf16.gmra.mrb[0].mxu0 %v634
      %v848 = vpop.f32.mrb[0].mxu0
      %v849 = vadd.f32 0.0, %v848
      %v850 = vpop.f32.mrb[0].mxu0
      %v851 = vpop.f32.mrb[0].mxu0
      %v852 = vadd.f32 0.0, %v851
      %v853 = vpop.f32.mrb[0].mxu0
      %854 = vmatprep.mubr.bf16.mxu0 0
      %855 = vmatmul.mubr.bf16.gmra.mrb[0].mxu0 %v637
      %v856 = vpop.f32.mrb[0].mxu0
      %v857 = vadd.f32 0.0, %v856
      %v858 = vpop.f32.mrb[0].mxu0
      %v859 = vpop.f32.mrb[0].mxu0
      %v860 = vadd.f32 0.0, %v859
      %v861 = vpop.f32.mrb[0].mxu0
      %862 = vmatprep.mubr.bf16.mxu0 0
      %863 = vmatmul.mubr.bf16.gmra.mrb[0].mxu0 %v640
      %v864 = vpop.f32.mrb[0].mxu0
      %v865 = vadd.f32 0.0, %v864
      %v866 = vpop.f32.mrb[0].mxu0
      %v867 = vpop.f32.mrb[0].mxu0
      %v868 = vadd.f32 0.0, %v867
      %v869 = vpop.f32.mrb[0].mxu0
      %870 = vmatprep.mubr.bf16.mxu0 0
      %871 = vmatmul.mubr.bf16.gmra.mrb[0].mxu0 %v643
      %v872 = vpop.f32.mrb[0].mxu0
      %v873 = vadd.f32 0.0, %v872
      %v874 = vpop.f32.mrb[0].mxu0
      %v875 = vpop.f32.mrb[0].mxu0
      %v876 = vadd.f32 0.0, %v875
      %v877 = vpop.f32.mrb[0].mxu0
      %878 = vmatprep.mubr.bf16.mxu0 0
      %879 = vmatmul.mubr.bf16.gmra.mrb[0].mxu0 %v646
      %v880 = vpop.f32.mrb[0].mxu0
      %v881 = vadd.f32 0.0, %v880
      %v882 = vpop.f32.mrb[0].mxu0
      %v883 = vpop.f32.mrb[0].mxu0
      %v884 = vadd.f32 0.0, %v883
      %v885 = vpop.f32.mrb[0].mxu0
      %886 = vmatprep.mubr.bf16.mxu0 0
      %887 = vmatmul.mubr.bf16.gmra.mrb[0].mxu0 %v649
      %v888 = vpop.f32.mrb[0].mxu0
      %v889 = vadd.f32 0.0, %v888
      %v890 = vpop.f32.mrb[0].mxu0
      %v891 = vpop.f32.mrb[0].mxu0
      %v892 = vadd.f32 0.0, %v891
      %v893 = vpop.f32.mrb[0].mxu0
      %894 = vmatprep.mubr.bf16.mxu0 0
      %895 = vmatmul.mubr.bf16.gmra.mrb[0].mxu0 %v652
      %v896 = vpop.f32.mrb[0].mxu0
      %v897 = vadd.f32 0.0, %v896
      %v898 = vpop.f32.mrb[0].mxu0
      %v899 = vpop.f32.mrb[0].mxu0
      %v900 = vadd.f32 0.0, %v899
      %v901 = vpop.f32.mrb[0].mxu0
      %902 = vmatprep.mubr.bf16.mxu0 0
      %903 = vmatmul.mubr.bf16.gmra.mrb[0].mxu0 %v655
      %v904 = vpop.f32.mrb[0].mxu0
      %v905 = vadd.f32 0.0, %v904
      %v906 = vpop.f32.mrb[0].mxu0
      %v907 = vpop.f32.mrb[0].mxu0
      %v908 = vadd.f32 0.0, %v907
      %v909 = vpop.f32.mrb[0].mxu0
      %910 = vmatprep.mubr.bf16.mxu0 0
      %911 = vmatmul.mubr.bf16.gmra.mrb[0].mxu0 %v658
      %v912 = vpop.f32.mrb[0].mxu0
      %v913 = vadd.f32 0.0, %v912
      %v914 = vpop.f32.mrb[0].mxu0
      %v915 = vpop.f32.mrb[0].mxu0
      %v916 = vadd.f32 0.0, %v915
      %v917 = vpop.f32.mrb[0].mxu0
      %918 = vmatprep.mubr.bf16.mxu0 0
      %919 = vmatmul.mubr.bf16.gmra.mrb[0].mxu0 %v661
      %v920 = vpop.f32.mrb[0].mxu0
      %v921 = vadd.f32 0.0, %v920
      %v922 = vpop.f32.mrb[0].mxu0
      %v923 = vpop.f32.mrb[0].mxu0
      %v924 = vadd.f32 0.0, %v923
      %v925 = vpop.f32.mrb[0].mxu0
      %926 = vmatprep.mubr.bf16.mxu0 0
      %927 = vmatmul.mubr.bf16.gmra.mrb[0].mxu0 %v664
      %v928 = vpop.f32.mrb[0].mxu0
      %v929 = vadd.f32 0.0, %v928
      %v930 = vpop.f32.mrb[0].mxu0
      %v931 = vpop.f32.mrb[0].mxu0
      %v932 = vadd.f32 0.0, %v931
      %v933 = vpop.f32.mrb[0].mxu0
      %934 = vmatprep.mubr.bf16.mxu0 0
      %935 = vmatmul.mubr.bf16.gmra.mrb[0].mxu0 %v667
      %v936 = vpop.f32.mrb[0].mxu0
      %v937 = vadd.f32 0.0, %v936
      %v938 = vpop.f32.mrb[0].mxu0
      %v939 = vpop.f32.mrb[0].mxu0
      %v940 = vadd.f32 0.0, %v939
      %v941 = vpop.f32.mrb[0].mxu0
      %942 = vmatprep.mubr.bf16.mxu0 0
      %943 = vmatmul.mubr.bf16.gmra.mrb[0].mxu0 %v670
      %v944 = vpop.f32.mrb[0].mxu0
      %v945 = vadd.f32 0.0, %v944
      %v946 = vpop.f32.mrb[0].mxu0
      %v947 = vpop.f32.mrb[0].mxu0
      %v948 = vadd.f32 0.0, %v947
      %v949 = vpop.f32.mrb[0].mxu0
      %950 = vmatprep.mubr.bf16.mxu0 0
      %951 = vmatmul.mubr.bf16.gmra.mrb[0].mxu0 %v673
      %v952 = vpop.f32.mrb[0].mxu0
      %v953 = vadd.f32 0.0, %v952
      %v954 = vpop.f32.mrb[0].mxu0
      %v955 = vpop.f32.mrb[0].mxu0
      %v956 = vadd.f32 0.0, %v955
      %v957 = vpop.f32.mrb[0].mxu0
      %958 = vmatprep.mubr.bf16.mxu0 0
      %959 = vmatmul.mubr.bf16.gmra.mrb[0].mxu0 %v676
      %v960 = vpop.f32.mrb[0].mxu0
      %v961 = vadd.f32 0.0, %v960
      %v962 = vpop.f32.mrb[0].mxu0
      %v963 = vpop.f32.mrb[0].mxu0
      %v964 = vadd.f32 0.0, %v963
      %v965 = vpop.f32.mrb[0].mxu0
      %966 = vdwg.mxu0
      %v967 = vadd.f32 %v261, %v713
      %v968 = vadd.f32 %v262, %v716
      %v969 = vadd.f32 %v263, %v721
      %v970 = vadd.f32 %v264, %v724
      %v971 = vadd.f32 %v265, %v729
      %v972 = vadd.f32 %v266, %v732
      %v973 = vadd.f32 %v267, %v737
      %v974 = vadd.f32 %v268, %v740
      %v975 = vadd.f32 %v269, %v745
      %v976 = vadd.f32 %v270, %v748
      %v977 = vadd.f32 %v271, %v753
      %v978 = vadd.f32 %v272, %v756
      %v979 = vadd.f32 %v273, %v761
      %v980 = vadd.f32 %v274, %v764
      %v981 = vadd.f32 %v275, %v769
      %v982 = vadd.f32 %v276, %v772
      %v983 = vadd.f32 %v277, %v777
      %v984 = vadd.f32 %v278, %v780
      %v985 = vadd.f32 %v279, %v785
      %v986 = vadd.f32 %v280, %v788
      %v987 = vadd.f32 %v281, %v793
      %v988 = vadd.f32 %v282, %v796
      %v989 = vadd.f32 %v283, %v801
      %v990 = vadd.f32 %v284, %v804
      %v991 = vadd.f32 %v285, %v809
      %v992 = vadd.f32 %v286, %v812
      %v993 = vadd.f32 %v287, %v817
      %v994 = vadd.f32 %v288, %v820
      %v995 = vadd.f32 %v289, %v825
      %v996 = vadd.f32 %v290, %v828
      %v997 = vadd.f32 %v291, %v833
      %v998 = vadd.f32 %v292, %v836
      %v999 = vadd.f32 %v293, %v841
      %v1000 = vadd.f32 %v294, %v844
      %v1001 = vadd.f32 %v295, %v849
      %v1002 = vadd.f32 %v296, %v852
      %v1003 = vadd.f32 %v297, %v857
      %v1004 = vadd.f32 %v298, %v860
      %v1005 = vadd.f32 %v299, %v865
      %v1006 = vadd.f32 %v300, %v868
      %v1007 = vadd.f32 %v301, %v873
      %v1008 = vadd.f32 %v302, %v876
      %v1009 = vadd.f32 %v303, %v881
      %v1010 = vadd.f32 %v304, %v884
      %v1011 = vadd.f32 %v305, %v889
      %v1012 = vadd.f32 %v306, %v892
      %v1013 = vadd.f32 %v307, %v897
      %v1014 = vadd.f32 %v308, %v900
      %v1015 = vadd.f32 %v309, %v905
      %v1016 = vadd.f32 %v310, %v908
      %v1017 = vadd.f32 %v311, %v913
      %v1018 = vadd.f32 %v312, %v916
      %v1019 = vadd.f32 %v313, %v921
      %v1020 = vadd.f32 %v314, %v924
      %v1021 = vadd.f32 %v315, %v929
      %v1022 = vadd.f32 %v316, %v932
      %v1023 = vadd.f32 %v317, %v937
      %v1024 = vadd.f32 %v318, %v940
      %v1025 = vadd.f32 %v319, %v945
      %v1026 = vadd.f32 %v320, %v948
      %v1027 = vadd.f32 %v321, %v953
      %v1028 = vadd.f32 %v322, %v956
      %v1029 = vadd.f32 %v323, %v961
      %v1030 = vadd.f32 %v324, %v964
      %1031 = vst [vmem:[#allocation2] sm:$0xff] %v967
      %1032 = vst [vmem:[#allocation2 + $0x8] sm:$0xff] %v968
      %1033 = vst [vmem:[#allocation2 + $0x10] sm:$0xff] %v969
      %1034 = vst [vmem:[#allocation2 + $0x18] sm:$0xff] %v970
      %1035 = vst [vmem:[#allocation2 + $0x20] sm:$0xff] %v971
      %1036 = vst [vmem:[#allocation2 + $0x28] sm:$0xff] %v972
      %1037 = vst [vmem:[#allocation2 + $0x30] sm:$0xff] %v973
      %1038 = vst [vmem:[#allocation2 + $0x38] sm:$0xff] %v974
      %1039 = vst [vmem:[#allocation2 + $0x40] sm:$0xff] %v975
      %1040 = vst [vmem:[#allocation2 + $0x48] sm:$0xff] %v976
      %1041 = vst [vmem:[#allocation2 + $0x50] sm:$0xff] %v977
      %1042 = vst [vmem:[#allocation2 + $0x58] sm:$0xff] %v978
      %1043 = vst [vmem:[#allocation2 + $0x60] sm:$0xff] %v979
      %1044 = vst [vmem:[#allocation2 + $0x68] sm:$0xff] %v980
      %1045 = vst [vmem:[#allocation2 + $0x70] sm:$0xff] %v981
      %1046 = vst [vmem:[#allocation2 + $0x78] sm:$0xff] %v982
      %1047 = vst [vmem:[#allocation2 + $0x80] sm:$0xff] %v983
      %1048 = vst [vmem:[#allocation2 + $0x88] sm:$0xff] %v984
      %1049 = vst [vmem:[#allocation2 + $0x90] sm:$0xff] %v985
      %1050 = vst [vmem:[#allocation2 + $0x98] sm:$0xff] %v986
      %1051 = vst [vmem:[#allocation2 + $0xa0] sm:$0xff] %v987
      %1052 = vst [vmem:[#allocation2 + $0xa8] sm:$0xff] %v988
      %1053 = vst [vmem:[#allocation2 + $0xb0] sm:$0xff] %v989
      %1054 = vst [vmem:[#allocation2 + $0xb8] sm:$0xff] %v990
      %1055 = vst [vmem:[#allocation2 + $0xc0] sm:$0xff] %v991
      %1056 = vst [vmem:[#allocation2 + $0xc8] sm:$0xff] %v992
      %1057 = vst [vmem:[#allocation2 + $0xd0] sm:$0xff] %v993
      %1058 = vst [vmem:[#allocation2 + $0xd8] sm:$0xff] %v994
      %1059 = vst [vmem:[#allocation2 + $0xe0] sm:$0xff] %v995
      %1060 = vst [vmem:[#allocation2 + $0xe8] sm:$0xff] %v996
      %1061 = vst [vmem:[#allocation2 + $0xf0] sm:$0xff] %v997
      %1062 = vst [vmem:[#allocation2 + $0xf8] sm:$0xff] %v998
      %1063 = vst [vmem:[#allocation2 + $0x100] sm:$0xff] %v999
      %1064 = vst [vmem:[#allocation2 + $0x108] sm:$0xff] %v1000
      %1065 = vst [vmem:[#allocation2 + $0x110] sm:$0xff] %v1001
      %1066 = vst [vmem:[#allocation2 + $0x118] sm:$0xff] %v1002
      %1067 = vst [vmem:[#allocation2 + $0x120] sm:$0xff] %v1003
      %1068 = vst [vmem:[#allocation2 + $0x128] sm:$0xff] %v1004
      %1069 = vst [vmem:[#allocation2 + $0x130] sm:$0xff] %v1005
      %1070 = vst [vmem:[#allocation2 + $0x138] sm:$0xff] %v1006
      %1071 = vst [vmem:[#allocation2 + $0x140] sm:$0xff] %v1007
      %1072 = vst [vmem:[#allocation2 + $0x148] sm:$0xff] %v1008
      %1073 = vst [vmem:[#allocation2 + $0x150] sm:$0xff] %v1009
      %1074 = vst [vmem:[#allocation2 + $0x158] sm:$0xff] %v1010
      %1075 = vst [vmem:[#allocation2 + $0x160] sm:$0xff] %v1011
      %1076 = vst [vmem:[#allocation2 + $0x168] sm:$0xff] %v1012
      %1077 = vst [vmem:[#allocation2 + $0x170] sm:$0xff] %v1013
      %1078 = vst [vmem:[#allocation2 + $0x178] sm:$0xff] %v1014
      %1079 = vst [vmem:[#allocation2 + $0x180] sm:$0xff] %v1015
      %1080 = vst [vmem:[#allocation2 + $0x188] sm:$0xff] %v1016
      %1081 = vst [vmem:[#allocation2 + $0x190] sm:$0xff] %v1017
      %1082 = vst [vmem:[#allocation2 + $0x198] sm:$0xff] %v1018
      %1083 = vst [vmem:[#allocation2 + $0x1a0] sm:$0xff] %v1019
      %1084 = vst [vmem:[#allocation2 + $0x1a8] sm:$0xff] %v1020
      %1085 = vst [vmem:[#allocation2 + $0x1b0] sm:$0xff] %v1021
      %1086 = vst [vmem:[#allocation2 + $0x1b8] sm:$0xff] %v1022
      %1087 = vst [vmem:[#allocation2 + $0x1c0] sm:$0xff] %v1023
      %1088 = vst [vmem:[#allocation2 + $0x1c8] sm:$0xff] %v1024
      %1089 = vst [vmem:[#allocation2 + $0x1d0] sm:$0xff] %v1025
      %1090 = vst [vmem:[#allocation2 + $0x1d8] sm:$0xff] %v1026
      %1091 = vst [vmem:[#allocation2 + $0x1e0] sm:$0xff] %v1027
      %1092 = vst [vmem:[#allocation2 + $0x1e8] sm:$0xff] %v1028
      %1093 = vst [vmem:[#allocation2 + $0x1f0] sm:$0xff] %v1029
      %1094 = vst [vmem:[#allocation2 + $0x1f8] sm:$0xff] %v1030
      // Predicated region
      $region33: #{generator_forward.15} parent=27 // pred_check
        %p1095 = pneg %p193
      $region34: #{generator_forward.15} parent=27 // pred_check_branch
        %1097 = sbr.rel (%p1095) target = $region36
      $region35: #{generator_forward.15} parent=27 // pred_region
        %v1098 = vld [vmem:[#allocation2] sm:$0xff]
        %v1099 = vld [vmem:[#allocation2 + $0x8] sm:$0xff]
        %v1100 = vld [vmem:[#allocation2 + $0x10] sm:$0xff]
        %v1101 = vld [vmem:[#allocation2 + $0x18] sm:$0xff]
        %v1102 = vld [vmem:[#allocation2 + $0x20] sm:$0xff]
        %v1103 = vld [vmem:[#allocation2 + $0x28] sm:$0xff]
        %v1104 = vld [vmem:[#allocation2 + $0x30] sm:$0xff]
        %v1105 = vld [vmem:[#allocation2 + $0x38] sm:$0xff]
        %v1106 = vld [vmem:[#allocation2 + $0x40] sm:$0xff]
        %v1107 = vld [vmem:[#allocation2 + $0x48] sm:$0xff]
        %v1108 = vld [vmem:[#allocation2 + $0x50] sm:$0xff]
        %v1109 = vld [vmem:[#allocation2 + $0x58] sm:$0xff]
        %v1110 = vld [vmem:[#allocation2 + $0x60] sm:$0xff]
        %v1111 = vld [vmem:[#allocation2 + $0x68] sm:$0xff]
        %v1112 = vld [vmem:[#allocation2 + $0x70] sm:$0xff]
        %v1113 = vld [vmem:[#allocation2 + $0x78] sm:$0xff]
        %v1114 = vld [vmem:[#allocation2 + $0x80] sm:$0xff]
        %v1115 = vld [vmem:[#allocation2 + $0x88] sm:$0xff]
        %v1116 = vld [vmem:[#allocation2 + $0x90] sm:$0xff]
        %v1117 = vld [vmem:[#allocation2 + $0x98] sm:$0xff]
        %v1118 = vld [vmem:[#allocation2 + $0xa0] sm:$0xff]
        %v1119 = vld [vmem:[#allocation2 + $0xa8] sm:$0xff]
        %v1120 = vld [vmem:[#allocation2 + $0xb0] sm:$0xff]
        %v1121 = vld [vmem:[#allocation2 + $0xb8] sm:$0xff]
        %v1122 = vld [vmem:[#allocation2 + $0xc0] sm:$0xff]
        %v1123 = vld [vmem:[#allocation2 + $0xc8] sm:$0xff]
        %v1124 = vld [vmem:[#allocation2 + $0xd0] sm:$0xff]
        %v1125 = vld [vmem:[#allocation2 + $0xd8] sm:$0xff]
        %v1126 = vld [vmem:[#allocation2 + $0xe0] sm:$0xff]
        %v1127 = vld [vmem:[#allocation2 + $0xe8] sm:$0xff]
        %v1128 = vld [vmem:[#allocation2 + $0xf0] sm:$0xff]
        %v1129 = vld [vmem:[#allocation2 + $0xf8] sm:$0xff]
        %v1130 = vld [vmem:[#allocation2 + $0x100] sm:$0xff]
        %v1131 = vld [vmem:[#allocation2 + $0x108] sm:$0xff]
        %v1132 = vld [vmem:[#allocation2 + $0x110] sm:$0xff]
        %v1133 = vld [vmem:[#allocation2 + $0x118] sm:$0xff]
        %v1134 = vld [vmem:[#allocation2 + $0x120] sm:$0xff]
        %v1135 = vld [vmem:[#allocation2 + $0x128] sm:$0xff]
        %v1136 = vld [vmem:[#allocation2 + $0x130] sm:$0xff]
        %v1137 = vld [vmem:[#allocation2 + $0x138] sm:$0xff]
        %v1138 = vld [vmem:[#allocation2 + $0x140] sm:$0xff]
        %v1139 = vld [vmem:[#allocation2 + $0x148] sm:$0xff]
        %v1140 = vld [vmem:[#allocation2 + $0x150] sm:$0xff]
        %v1141 = vld [vmem:[#allocation2 + $0x158] sm:$0xff]
        %v1142 = vld [vmem:[#allocation2 + $0x160] sm:$0xff]
        %v1143 = vld [vmem:[#allocation2 + $0x168] sm:$0xff]
        %v1144 = vld [vmem:[#allocation2 + $0x170] sm:$0xff]
        %v1145 = vld [vmem:[#allocation2 + $0x178] sm:$0xff]
        %v1146 = vld [vmem:[#allocation2 + $0x180] sm:$0xff]
        %v1147 = vld [vmem:[#allocation2 + $0x188] sm:$0xff]
        %v1148 = vld [vmem:[#allocation2 + $0x190] sm:$0xff]
        %v1149 = vld [vmem:[#allocation2 + $0x198] sm:$0xff]
        %v1150 = vld [vmem:[#allocation2 + $0x1a0] sm:$0xff]
        %v1151 = vld [vmem:[#allocation2 + $0x1a8] sm:$0xff]
        %v1152 = vld [vmem:[#allocation2 + $0x1b0] sm:$0xff]
        %v1153 = vld [vmem:[#allocation2 + $0x1b8] sm:$0xff]
        %v1154 = vld [vmem:[#allocation2 + $0x1c0] sm:$0xff]
        %v1155 = vld [vmem:[#allocation2 + $0x1c8] sm:$0xff]
        %v1156 = vld [vmem:[#allocation2 + $0x1d0] sm:$0xff]
        %v1157 = vld [vmem:[#allocation2 + $0x1d8] sm:$0xff]
        %v1158 = vld [vmem:[#allocation2 + $0x1e0] sm:$0xff]
        %v1159 = vld [vmem:[#allocation2 + $0x1e8] sm:$0xff]
        %v1160 = vld [vmem:[#allocation2 + $0x1f0] sm:$0xff]
        %v1161 = vld [vmem:[#allocation2 + $0x1f8] sm:$0xff]
        %1162 = vst [vmem:[%s190] sm:$0xff] %v1098
        %1163 = vst [vmem:[%s190 + $0x8] sm:$0xff] %v1099
        %1164 = vst [vmem:[%s190 + $0x10] sm:$0xff] %v1100
        %1165 = vst [vmem:[%s190 + $0x18] sm:$0xff] %v1101
        %1166 = vst [vmem:[%s190 + $0x20] sm:$0xff] %v1102
        %1167 = vst [vmem:[%s190 + $0x28] sm:$0xff] %v1103
        %1168 = vst [vmem:[%s190 + $0x30] sm:$0xff] %v1104
        %1169 = vst [vmem:[%s190 + $0x38] sm:$0xff] %v1105
        %1170 = vst [vmem:[%s190 + $0x40] sm:$0xff] %v1106
        %1171 = vst [vmem:[%s190 + $0x48] sm:$0xff] %v1107
        %1172 = vst [vmem:[%s190 + $0x50] sm:$0xff] %v1108
        %1173 = vst [vmem:[%s190 + $0x58] sm:$0xff] %v1109
        %1174 = vst [vmem:[%s190 + $0x60] sm:$0xff] %v1110
        %1175 = vst [vmem:[%s190 + $0x68] sm:$0xff] %v1111
        %1176 = vst [vmem:[%s190 + $0x70] sm:$0xff] %v1112
        %1177 = vst [vmem:[%s190 + $0x78] sm:$0xff] %v1113
        %1178 = vst [vmem:[%s190 + $0x80] sm:$0xff] %v1114
        %1179 = vst [vmem:[%s190 + $0x88] sm:$0xff] %v1115
        %1180 = vst [vmem:[%s190 + $0x90] sm:$0xff] %v1116
        %1181 = vst [vmem:[%s190 + $0x98] sm:$0xff] %v1117
        %1182 = vst [vmem:[%s190 + $0xa0] sm:$0xff] %v1118
        %1183 = vst [vmem:[%s190 + $0xa8] sm:$0xff] %v1119
        %1184 = vst [vmem:[%s190 + $0xb0] sm:$0xff] %v1120
        %1185 = vst [vmem:[%s190 + $0xb8] sm:$0xff] %v1121
        %1186 = vst [vmem:[%s190 + $0xc0] sm:$0xff] %v1122
        %1187 = vst [vmem:[%s190 + $0xc8] sm:$0xff] %v1123
        %1188 = vst [vmem:[%s190 + $0xd0] sm:$0xff] %v1124
        %1189 = vst [vmem:[%s190 + $0xd8] sm:$0xff] %v1125
        %1190 = vst [vmem:[%s190 + $0xe0] sm:$0xff] %v1126
        %1191 = vst [vmem:[%s190 + $0xe8] sm:$0xff] %v1127
        %1192 = vst [vmem:[%s190 + $0xf0] sm:$0xff] %v1128
        %1193 = vst [vmem:[%s190 + $0xf8] sm:$0xff] %v1129
        %1194 = vst [vmem:[%s190 + $0x100] sm:$0xff] %v1130
        %1195 = vst [vmem:[%s190 + $0x108] sm:$0xff] %v1131
        %1196 = vst [vmem:[%s190 + $0x110] sm:$0xff] %v1132
        %1197 = vst [vmem:[%s190 + $0x118] sm:$0xff] %v1133
        %1198 = vst [vmem:[%s190 + $0x120] sm:$0xff] %v1134
        %1199 = vst [vmem:[%s190 + $0x128] sm:$0xff] %v1135
        %1200 = vst [vmem:[%s190 + $0x130] sm:$0xff] %v1136
        %1201 = vst [vmem:[%s190 + $0x138] sm:$0xff] %v1137
        %1202 = vst [vmem:[%s190 + $0x140] sm:$0xff] %v1138
        %1203 = vst [vmem:[%s190 + $0x148] sm:$0xff] %v1139
        %1204 = vst [vmem:[%s190 + $0x150] sm:$0xff] %v1140
        %1205 = vst [vmem:[%s190 + $0x158] sm:$0xff] %v1141
        %1206 = vst [vmem:[%s190 + $0x160] sm:$0xff] %v1142
        %1207 = vst [vmem:[%s190 + $0x168] sm:$0xff] %v1143
        %1208 = vst [vmem:[%s190 + $0x170] sm:$0xff] %v1144
        %1209 = vst [vmem:[%s190 + $0x178] sm:$0xff] %v1145
        %1210 = vst [vmem:[%s190 + $0x180] sm:$0xff] %v1146
        %1211 = vst [vmem:[%s190 + $0x188] sm:$0xff] %v1147
        %1212 = vst [vmem:[%s190 + $0x190] sm:$0xff] %v1148
        %1213 = vst [vmem:[%s190 + $0x198] sm:$0xff] %v1149
        %1214 = vst [vmem:[%s190 + $0x1a0] sm:$0xff] %v1150
        %1215 = vst [vmem:[%s190 + $0x1a8] sm:$0xff] %v1151
        %1216 = vst [vmem:[%s190 + $0x1b0] sm:$0xff] %v1152
        %1217 = vst [vmem:[%s190 + $0x1b8] sm:$0xff] %v1153
        %1218 = vst [vmem:[%s190 + $0x1c0] sm:$0xff] %v1154
        %1219 = vst [vmem:[%s190 + $0x1c8] sm:$0xff] %v1155
        %1220 = vst [vmem:[%s190 + $0x1d0] sm:$0xff] %v1156
        %1221 = vst [vmem:[%s190 + $0x1d8] sm:$0xff] %v1157
        %1222 = vst [vmem:[%s190 + $0x1e0] sm:$0xff] %v1158
        %1223 = vst [vmem:[%s190 + $0x1e8] sm:$0xff] %v1159
        %1224 = vst [vmem:[%s190 + $0x1f0] sm:$0xff] %v1160
        %1225 = vst [vmem:[%s190 + $0x1f8] sm:$0xff] %v1161
      $region36: #{generator_forward.15} parent=27 // pred_fallthru
        _
      %s1226 = smul.u32 64, %s17
      %p1227 = scmp.lt.s32.totalorder %s1226, 127
      %s1228 = scalar_select %p1227, %s1226, 127
      %s1229 = smul.addr %s1228, 8
      %s1230 = scalar_lea.vmem %s2, %s1229
      // Predicated region
      $region37: #{generator_forward.15} parent=27 // pred_check
        %p1231 = pneg %p97
      $region38: #{generator_forward.15} parent=27 // pred_check_branch
        %1233 = sbr.rel (%p1231) target = $region40
      $region39: #{generator_forward.15} parent=27 // pred_region
        %s1234 = smul.u32 64, %s17
      $region40: #{generator_forward.15} parent=27 // pred_fallthru
        _
    $region28: #{generator_forward.15} parent=5 // pred_fallthru
      _
    %p1235 = scmp.le.s32.totalorder 2, %s8
    // Predicated region
    $region41: #{generator_forward.15} parent=5 // pred_check
      %p1236 = pneg %p1235
    $region42: #{generator_forward.15} parent=5 // pred_check_branch
      %1238 = sbr.rel (%p1236) target = $region44
    $region43: #{generator_forward.15} parent=5 // pred_region
      %s1239 = ssub.s32 %s8, 2
      // Predicated region
      $region45: #{generator_forward.15} parent=43 // pred_check
        %p1240 = pneg %p103
      $region46: #{generator_forward.15} parent=43 // pred_check_branch
        %1242 = sbr.rel (%p1240) target = $region48
      $region47: #{generator_forward.15} parent=43 // pred_region
        %s1243 = smul.u32 64, %s19
        %p1244 = scmp.lt.s32.totalorder %s1243, 127
        %s1245 = scalar_select %p1244, %s1243, 127
        %s1246 = smul.addr %s1245, 8
        %s1247 = scalar_lea.vmem %s2, %s1246
      $region48: #{generator_forward.15} parent=43 // pred_fallthru
        _
    $region44: #{generator_forward.15} parent=5 // pred_fallthru
      _
  $region6: #{generator_forward.15} parent=0 // loop_footer
    %s12 = sadd.s32 1, %s8
  $region7: #{generator_forward.15} parent=0 // loop_footer_branch
    %7 = sbr.rel target = $region3
  $region8: #{generator_forward.15} parent=0 // loop_exit
    _

// kernel: tile.78
$region0: #{tile.78}
  #allocation0 [shape = 's32[1]{0}', space=sflag, size = 0x4, scoped, tag = 'scoped memory for tile.78']
  %s0 = inlined_call_operand.vmem [shape: f32[8], index: 0, kind: input, shape index: {}]
  %s1 = inlined_call_operand.vmem [shape: f32[32,8], index: 1, kind: output, shape index: {}]
  // Predicated region
  $region2: #{tile.78} parent=0 // pred_check
    _
  $region3: #{tile.78} parent=0 // pred_check_branch
    %3 = sbr.rel (0) target = $region5
  $region4: #{tile.78} parent=0 // pred_region
    _
  $region5: #{tile.78} parent=0 // pred_fallthru
    _
  %v4 = vld [vmem:[%s0] ss:$0 sm:$0xff]
  %5 = vst [vmem:[%s1] sm:$0xff] %v4
  %s6 = scalar_lea.vmem %s1, 8
  %7 = vst [vmem:[%s6] sm:$0xff] %v4
  %s8 = scalar_lea.vmem %s1, 16
  %9 = vst [vmem:[%s8] sm:$0xff] %v4
  %s10 = scalar_lea.vmem %s1, 24
  %11 = vst [vmem:[%s10] sm:$0xff] %v4

// kernel: tile.79
$region0: #{tile.79}
  %s0 = inlined_call_operand.vmem [shape: f32[32,8], index: 0, kind: input, shape index: {}]
  %s1 = inlined_call_operand.vmem [shape: f32[1,256], index: 1, kind: output, shape index: {}]
  $region1: #{tile.79} parent=0
    #allocation0 [shape = 'u8[8192]{0}', space=vmem, size = 0x2000, scoped, tag = 'scoped mem for output reshape']
    %s2 = smov 3
    %v3 = vld [vmem:[%s0] ss:$16 sm:%s2]
    %vm4 = vcmask 64512
    %5 = vst.msk [vmem:[#allocation0] ss:$8 sm:$0x3] %vm4, %v3
    %s6 = scalar_lea.vmem %s0, 15
    %s7 = smov 3
    %v8 = vld [vmem:[%s6] ss:$16 sm:%s7]
    %9 = vrot.lane.b32.xlu0 %v8, 120
    %v10 = vpop.permute.xlu0 %9
    %vm11 = vcmask 1048512
    %12 = vst.msk [vmem:[#allocation0] ss:$8 sm:$0x3] %vm11, %v10
    %s13 = scalar_lea.vmem %s0, 14
    %s14 = smov 3
    %v15 = vld [vmem:[%s13] ss:$16 sm:%s14]
    %16 = vrot.lane.b32.xlu0 %v15, 112
    %v17 = vpop.permute.xlu0 %16
    %vm18 = vcmask 982912
    %19 = vst.msk [vmem:[#allocation0] ss:$8 sm:$0x3] %vm18, %v17
    %s20 = scalar_lea.vmem %s0, 13
    %s21 = smov 3
    %v22 = vld [vmem:[%s20] ss:$16 sm:%s21]
    %23 = vrot.lane.b32.xlu0 %v22, 104
    %v24 = vpop.permute.xlu0 %23
    %vm25 = vcmask 917312
    %26 = vst.msk [vmem:[#allocation0] ss:$8 sm:$0x3] %vm25, %v24
    %s27 = scalar_lea.vmem %s0, 12
    %s28 = smov 3
    %v29 = vld [vmem:[%s27] ss:$16 sm:%s28]
    %30 = vrot.lane.b32.xlu0 %v29, 96
    %v31 = vpop.permute.xlu0 %30
    %vm32 = vcmask 851712
    %33 = vst.msk [vmem:[#allocation0] ss:$8 sm:$0x3] %vm32, %v31
    %s34 = scalar_lea.vmem %s0, 11
    %s35 = smov 3
    %v36 = vld [vmem:[%s34] ss:$16 sm:%s35]
    %37 = vrot.lane.b32.xlu0 %v36, 88
    %v38 = vpop.permute.xlu0 %37
    %vm39 = vcmask 786112
    %40 = vst.msk [vmem:[#allocation0] ss:$8 sm:$0x3] %vm39, %v38
    %s41 = scalar_lea.vmem %s0, 10
    %s42 = smov 3
    %v43 = vld [vmem:[%s41] ss:$16 sm:%s42]
    %44 = vrot.lane.b32.xlu0 %v43, 80
    %v45 = vpop.permute.xlu0 %44
    %vm46 = vcmask 720512
    %47 = vst.msk [vmem:[#allocation0] ss:$8 sm:$0x3] %vm46, %v45
    %s48 = scalar_lea.vmem %s0, 9
    %s49 = smov 3
    %v50 = vld [vmem:[%s48] ss:$16 sm:%s49]
    %51 = vrot.lane.b32.xlu0 %v50, 72
    %v52 = vpop.permute.xlu0 %51
    %vm53 = vcmask 654912
    %54 = vst.msk [vmem:[#allocation0] ss:$8 sm:$0x3] %vm53, %v52
    %s55 = scalar_lea.vmem %s0, 8
    %s56 = smov 3
    %v57 = vld [vmem:[%s55] ss:$16 sm:%s56]
    %58 = vrot.lane.b32.xlu0 %v57, 64
    %v59 = vpop.permute.xlu0 %58
    %vm60 = vcmask 589312
    %61 = vst.msk [vmem:[#allocation0] ss:$8 sm:$0x3] %vm60, %v59
    %s62 = scalar_lea.vmem %s0, 7
    %s63 = smov 3
    %v64 = vld [vmem:[%s62] ss:$16 sm:%s63]
    %65 = vrot.lane.b32.xlu0 %v64, 56
    %v66 = vpop.permute.xlu0 %65
    %vm67 = vcmask 523712
    %68 = vst.msk [vmem:[#allocation0] ss:$8 sm:$0x3] %vm67, %v66
    %s69 = scalar_lea.vmem %s0, 6
    %s70 = smov 3
    %v71 = vld [vmem:[%s69] ss:$16 sm:%s70]
    %72 = vrot.lane.b32.xlu0 %v71, 48
    %v73 = vpop.permute.xlu0 %72
    %vm74 = vcmask 458112
    %75 = vst.msk [vmem:[#allocation0] ss:$8 sm:$0x3] %vm74, %v73
    %s76 = scalar_lea.vmem %s0, 5
    %s77 = smov 3
    %v78 = vld [vmem:[%s76] ss:$16 sm:%s77]
    %79 = vrot.lane.b32.xlu0 %v78, 40
    %v80 = vpop.permute.xlu0 %79
    %vm81 = vcmask 392512
    %82 = vst.msk [vmem:[#allocation0] ss:$8 sm:$0x3] %vm81, %v80
    %s83 = scalar_lea.vmem %s0, 4
    %s84 = smov 3
    %v85 = vld [vmem:[%s83] ss:$16 sm:%s84]
    %86 = vrot.lane.b32.xlu0 %v85, 32
    %v87 = vpop.permute.xlu0 %86
    %vm88 = vcmask 326912
    %89 = vst.msk [vmem:[#allocation0] ss:$8 sm:$0x3] %vm88, %v87
    %s90 = scalar_lea.vmem %s0, 3
    %s91 = smov 3
    %v92 = vld [vmem:[%s90] ss:$16 sm:%s91]
    %93 = vrot.lane.b32.xlu0 %v92, 24
    %v94 = vpop.permute.xlu0 %93
    %vm95 = vcmask 261312
    %96 = vst.msk [vmem:[#allocation0] ss:$8 sm:$0x3] %vm95, %v94
    %s97 = scalar_lea.vmem %s0, 2
    %s98 = smov 3
    %v99 = vld [vmem:[%s97] ss:$16 sm:%s98]
    %100 = vrot.lane.b32.xlu0 %v99, 16
    %v101 = vpop.permute.xlu0 %100
    %vm102 = vcmask 195712
    %103 = vst.msk [vmem:[#allocation0] ss:$8 sm:$0x3] %vm102, %v101
    %s104 = scalar_lea.vmem %s0, 1
    %s105 = smov 3
    %v106 = vld [vmem:[%s104] ss:$16 sm:%s105]
    %107 = vrot.lane.b32.xlu0 %v106, 8
    %v108 = vpop.permute.xlu0 %107
    %vm109 = vcmask 130112
    %110 = vst.msk [vmem:[#allocation0] ss:$8 sm:$0x3] %vm109, %v108
    %s112 = sshllo.u32 0, 1
    %v114 = vld [vmem:[#allocation0] sm:%s112]
    %s115 = sshllo.u32 0, 1
    %116 = vst [vmem:[%s1] sm:%s115] %v114
    %s117 = scalar_lea.vmem [#allocation0], 8
    %v118 = vld [vmem:[%s117] sm:%s112]
    %s119 = sshllo.u32 0, 1
    %s120 = scalar_lea.vmem %s1, 1
    %121 = vst [vmem:[%s120] sm:%s119] %v118

// kernel: generator_forward.16
$region0: #{generator_forward.16}
  #allocation0 [shape = 'u32[]', space=smem, size = 0x4, offset = 0x4, fixed_abs, tag = 'smem constant byte address 0x4 - core index']
  #allocation1 [shape = 'u32[144,128]{1,0:T(1,128)}', space=vmem, size = 0x12000, scoped, tag = 'internal scratch']
  %s0 = inlined_call_operand.vmem [shape: f32[64,256], index: 0, kind: input, shape index: {}]
  %s1 = inlined_call_operand.vmem [shape: f32[1,256], index: 1, kind: input, shape index: {}]
  %s2 = inlined_call_operand.vmem [shape: f32[1,256], index: 2, kind: input, shape index: {}]
  %s3 = inlined_call_operand.vmem [shape: f32[64,256], index: 3, kind: output, shape index: {}]
  %s4 = sld [smem:[#allocation0]]
  $region22: #{generator_forward.16} parent=0
    _
  %s6 = ssub.s32 1, %s4
  %s7 = scalar_select 0, %s6, %s4
  // Predicated region
  $region2: #{generator_forward.16} parent=0 // pred_check
    _
  $region3: #{generator_forward.16} parent=0 // pred_check_branch
    %9 = sbr.rel (0) target = $region5
  $region4: #{generator_forward.16} parent=0 // pred_region
    _
  $region5: #{generator_forward.16} parent=0 // pred_fallthru
    _
  // Predicated region
  $region6: #{generator_forward.16} parent=0 // pred_check
    _
  $region7: #{generator_forward.16} parent=0 // pred_check_branch
    %11 = sbr.rel (0) target = $region9
  $region8: #{generator_forward.16} parent=0 // pred_region
    _
  $region9: #{generator_forward.16} parent=0 // pred_fallthru
    _
  // Predicated region
  $region10: #{generator_forward.16} parent=0 // pred_check
    _
  $region11: #{generator_forward.16} parent=0 // pred_check_branch
    %13 = sbr.rel (0) target = $region13
  $region12: #{generator_forward.16} parent=0 // pred_region
    _
  $region13: #{generator_forward.16} parent=0 // pred_fallthru
    _
  %v14 = vld [vmem:[%s0] sm:$0xff]
  %v15 = vld [vmem:[%s0 + $0x8] sm:$0xff]
  %v16 = vld [vmem:[%s0 + $0x10] sm:$0xff]
  %v17 = vld [vmem:[%s0 + $0x18] sm:$0xff]
  %v18 = vld [vmem:[%s0 + $0x20] sm:$0xff]
  %v19 = vld [vmem:[%s0 + $0x28] sm:$0xff]
  %v20 = vld [vmem:[%s0 + $0x30] sm:$0xff]
  %v21 = vld [vmem:[%s0 + $0x38] sm:$0xff]
  %v22 = vld [vmem:[%s0 + $0x40] sm:$0xff]
  %v23 = vld [vmem:[%s0 + $0x48] sm:$0xff]
  %v24 = vld [vmem:[%s0 + $0x50] sm:$0xff]
  %v25 = vld [vmem:[%s0 + $0x58] sm:$0xff]
  %v26 = vld [vmem:[%s0 + $0x60] sm:$0xff]
  %v27 = vld [vmem:[%s0 + $0x68] sm:$0xff]
  %v28 = vld [vmem:[%s0 + $0x70] sm:$0xff]
  %v29 = vld [vmem:[%s0 + $0x78] sm:$0xff]
  %v30 = vld [vmem:[%s1] sm:$0x3]
  %v32 = vlaneseq
  %v33 = vshrl.u32 %v32, 7
  %v34 = vsub.s32 0, %v33
  %v35 = vrot.slane %v30, %v34
  %v36 = vlaneseq
  %v37 = vshrl.u32 %v36, 7
  %v38 = vsub.s32 1, %v37
  %v39 = vrot.slane %v30, %v38
  %v42 = vmul.f32 %v14, %v35
  %v43 = vmul.f32 %v15, %v39
  %v44 = vmul.f32 %v16, %v35
  %v45 = vmul.f32 %v17, %v39
  %v46 = vmul.f32 %v18, %v35
  %v47 = vmul.f32 %v19, %v39
  %v48 = vmul.f32 %v20, %v35
  %v49 = vmul.f32 %v21, %v39
  %v50 = vmul.f32 %v22, %v35
  %v51 = vmul.f32 %v23, %v39
  %v52 = vmul.f32 %v24, %v35
  %v53 = vmul.f32 %v25, %v39
  %v54 = vmul.f32 %v26, %v35
  %v55 = vmul.f32 %v27, %v39
  %v56 = vmul.f32 %v28, %v35
  %v57 = vmul.f32 %v29, %v39
  %v58 = vld [vmem:[%s2] sm:$0x3]
  %v60 = vlaneseq
  %v61 = vshrl.u32 %v60, 7
  %v62 = vsub.s32 0, %v61
  %v63 = vrot.slane %v58, %v62
  %v64 = vlaneseq
  %v65 = vshrl.u32 %v64, 7
  %v66 = vsub.s32 1, %v65
  %v67 = vrot.slane %v58, %v66
  %v70 = vadd.f32 %v42, %v63
  %v71 = vadd.f32 %v43, %v67
  %v72 = vadd.f32 %v44, %v63
  %v73 = vadd.f32 %v45, %v67
  %v74 = vadd.f32 %v46, %v63
  %v75 = vadd.f32 %v47, %v67
  %v76 = vadd.f32 %v48, %v63
  %v77 = vadd.f32 %v49, %v67
  %v78 = vadd.f32 %v50, %v63
  %v79 = vadd.f32 %v51, %v67
  %v80 = vadd.f32 %v52, %v63
  %v81 = vadd.f32 %v53, %v67
  %v82 = vadd.f32 %v54, %v63
  %v83 = vadd.f32 %v55, %v67
  %v84 = vadd.f32 %v56, %v63
  %v85 = vadd.f32 %v57, %v67
  %v86 = vmax.f32 %v70, 0.0
  %v87 = vmax.f32 %v71, 0.0
  %v88 = vmax.f32 %v72, 0.0
  %v89 = vmax.f32 %v73, 0.0
  %v90 = vmax.f32 %v74, 0.0
  %v91 = vmax.f32 %v75, 0.0
  %v92 = vmax.f32 %v76, 0.0
  %v93 = vmax.f32 %v77, 0.0
  %v94 = vmax.f32 %v78, 0.0
  %v95 = vmax.f32 %v79, 0.0
  %v96 = vmax.f32 %v80, 0.0
  %v97 = vmax.f32 %v81, 0.0
  %v98 = vmax.f32 %v82, 0.0
  %v99 = vmax.f32 %v83, 0.0
  %v100 = vmax.f32 %v84, 0.0
  %v101 = vmax.f32 %v85, 0.0
  %102 = vst [vmem:[%s3] sm:$0xff] %v86
  %103 = vst [vmem:[%s3 + $0x8] sm:$0xff] %v87
  %104 = vst [vmem:[%s3 + $0x10] sm:$0xff] %v88
  %105 = vst [vmem:[%s3 + $0x18] sm:$0xff] %v89
  %106 = vst [vmem:[%s3 + $0x20] sm:$0xff] %v90
  %107 = vst [vmem:[%s3 + $0x28] sm:$0xff] %v91
  %108 = vst [vmem:[%s3 + $0x30] sm:$0xff] %v92
  %109 = vst [vmem:[%s3 + $0x38] sm:$0xff] %v93
  %110 = vst [vmem:[%s3 + $0x40] sm:$0xff] %v94
  %111 = vst [vmem:[%s3 + $0x48] sm:$0xff] %v95
  %112 = vst [vmem:[%s3 + $0x50] sm:$0xff] %v96
  %113 = vst [vmem:[%s3 + $0x58] sm:$0xff] %v97
  %114 = vst [vmem:[%s3 + $0x60] sm:$0xff] %v98
  %115 = vst [vmem:[%s3 + $0x68] sm:$0xff] %v99
  %116 = vst [vmem:[%s3 + $0x70] sm:$0xff] %v100
  %117 = vst [vmem:[%s3 + $0x78] sm:$0xff] %v101
  // Predicated region
  $region14: #{generator_forward.16} parent=0 // pred_check
    _
  $region15: #{generator_forward.16} parent=0 // pred_check_branch
    %119 = sbr.rel (0) target = $region17
  $region16: #{generator_forward.16} parent=0 // pred_region
    _
  $region17: #{generator_forward.16} parent=0 // pred_fallthru
    _
  // Predicated region
  $region18: #{generator_forward.16} parent=0 // pred_check
    _
  $region19: #{generator_forward.16} parent=0 // pred_check_branch
    %121 = sbr.rel (0) target = $region21
  $region20: #{generator_forward.16} parent=0 // pred_region
    _
  $region21: #{generator_forward.16} parent=0 // pred_fallthru
    _

// kernel: generator_forward.17
$region0: #{generator_forward.17}
  #allocation0 [shape = 'u32[]', space=smem, size = 0x4, offset = 0x4, fixed_abs, tag = 'smem constant byte address 0x4 - core index']
  #allocation1 [shape = 'u32[144,128]{1,0:T(1,128)}', space=vmem, size = 0x12000, scoped, tag = 'internal scratch']
  #allocation2 [shape = 'f32[512,128]{1,0:T(8,128)}', space=vmem, size = 0x40000, scoped, tag = 'scratch operand']
  %s0 = inlined_call_operand.vmem [shape: bf16[2560,32], index: 0, kind: input, shape index: {}]
  %s1 = inlined_call_operand.vmem [shape: bf16[32,128], index: 1, kind: input, shape index: {}]
  %s2 = inlined_call_operand.vmem [shape: f32[2560,128], index: 2, kind: output, shape index: {}]
  %s3 = sld [smem:[#allocation0]]
  $region49: #{generator_forward.17} parent=0
    _
  %s5 = ssub.s32 1, %s3
  %s6 = scalar_select 0, %s5, %s3
  loop: start=0, step=1, limit=7
  $region2: #{generator_forward.17} parent=0 // loop_pre_header
    _
  $region3: #{generator_forward.17} parent=0 // loop_header
    %s8 = sphi 0, %s12
    %p9 = scmp.ge.s32.totalorder %s8, 7
    %s15 = sphi 0, %s27
    %s16 = sphi 0, %s23
    %s17 = sphi 0, %s15
    %s18 = sphi 0, %s16
    %s19 = sphi 0, %s17
    %s20 = sphi 0, %s18
    %s32 = sphi 0, %s34
    %s35 = sphi 0, %s32
    %s36 = sphi 0, %s35
    %s52 = sphi 0, %s36
    %s58 = sphi 0, %s60
    %s61 = sphi 0, %s58
    %s62 = sphi 0, %s61
    %s78 = sphi 0, %s62
    %s84 = sphi 0, %s86
    %s87 = sphi 0, %s84
    %s88 = sphi 0, %s87
    %s104 = sphi 0, %s88
  $region4: #{generator_forward.17} parent=0 // loop_header_branch
    %11 = sbr.rel (%p9) target = $region8
  $region5: #{generator_forward.17} parent=0 // loop_body
    %s13 = ssub.s32 %s8, 1
    %s14 = ssub.s32 %s8, 2
    %s21 = sadd.s32 1, %s16
    %p22 = scmp.ge.s32.totalorder %s21, 1
    %s23 = scalar_select %p22, 0, %s21
    %s24 = sadd.s32 1, %s15
    %s25 = scalar_select %p22, %s24, %s15
    %p26 = scmp.ge.s32.totalorder %s25, 5
    %s27 = scalar_select %p26, 0, %s25
    %s28 = ssub.s32 %s15, %s27
    %s29 = ssub.s32 %s16, %s23
    %s30 = sor.u32 %s28, %s29
    %p31 = scmp.eq.s32.totalorder %s30, 0
    %s33 = sadd.s32 %s32, 1
    %s34 = scalar_select %p31, %s32, %s33
    %p37 = pneg %p31
    %p38 = scmp.eq.s32.totalorder %s8, 4
    %p39 = por %p37, %p38
    %p40 = scmp.ne.s32.totalorder %s32, %s35
    %p41 = scmp.eq.s32.totalorder %s8, 0
    %p42 = por %p40, %p41
    %p43 = scmp.ne.s32.totalorder %s32, %s35
    %p44 = scmp.eq.s32.totalorder %s13, 4
    %p45 = por %p43, %p44
    %p46 = scmp.ne.s32.totalorder %s35, %s36
    %p47 = scmp.eq.s32.totalorder %s13, 0
    %p48 = por %p46, %p47
    %p49 = scmp.ne.s32.totalorder %s35, %s36
    %p50 = scmp.eq.s32.totalorder %s14, 4
    %p51 = por %p49, %p50
    %p53 = scmp.ne.s32.totalorder %s36, %s52
    %p54 = scmp.eq.s32.totalorder %s14, 0
    %p55 = por %p53, %p54
    %s56 = ssub.s32 %s16, %s23
    %p57 = scmp.eq.s32.totalorder %s56, 0
    %s59 = sadd.s32 %s58, 1
    %s60 = scalar_select %p57, %s58, %s59
    %p63 = pneg %p57
    %p64 = scmp.eq.s32.totalorder %s8, 4
    %p65 = por %p63, %p64
    %p66 = scmp.ne.s32.totalorder %s58, %s61
    %p67 = scmp.eq.s32.totalorder %s8, 0
    %p68 = por %p66, %p67
    %p69 = scmp.ne.s32.totalorder %s58, %s61
    %p70 = scmp.eq.s32.totalorder %s13, 4
    %p71 = por %p69, %p70
    %p72 = scmp.ne.s32.totalorder %s61, %s62
    %p73 = scmp.eq.s32.totalorder %s13, 0
    %p74 = por %p72, %p73
    %p75 = scmp.ne.s32.totalorder %s61, %s62
    %p76 = scmp.eq.s32.totalorder %s14, 4
    %p77 = por %p75, %p76
    %p79 = scmp.ne.s32.totalorder %s62, %s78
    %p80 = scmp.eq.s32.totalorder %s14, 0
    %p81 = por %p79, %p80
    %s82 = ssub.s32 %s15, %s27
    %p83 = scmp.eq.s32.totalorder %s82, 0
    %s85 = sadd.s32 %s84, 1
    %s86 = scalar_select %p83, %s84, %s85
    %p89 = pneg %p83
    %p90 = scmp.eq.s32.totalorder %s8, 4
    %p91 = por %p89, %p90
    %p92 = scmp.ne.s32.totalorder %s84, %s87
    %p93 = scmp.eq.s32.totalorder %s8, 0
    %p94 = por %p92, %p93
    %p95 = scmp.ne.s32.totalorder %s84, %s87
    %p96 = scmp.eq.s32.totalorder %s13, 4
    %p97 = por %p95, %p96
    %p98 = scmp.ne.s32.totalorder %s87, %s88
    %p99 = scmp.eq.s32.totalorder %s13, 0
    %p100 = por %p98, %p99
    %p101 = scmp.ne.s32.totalorder %s87, %s88
    %p102 = scmp.eq.s32.totalorder %s14, 4
    %p103 = por %p101, %p102
    %p105 = scmp.ne.s32.totalorder %s88, %s104
    %p106 = scmp.eq.s32.totalorder %s14, 0
    %p107 = por %p105, %p106
    %p108 = scmp.le.s32.totalorder 1, %s8
    %p109 = scmp.lt.s32.totalorder %s8, 6
    %p110 = pnand %p108, %p109
    %p111 = pneg %p110
    // Predicated region
    $region9: #{generator_forward.17} parent=5 // pred_check
      _
    $region10: #{generator_forward.17} parent=5 // pred_check_branch
      %113 = sbr.rel (%p110) target = $region12
    $region11: #{generator_forward.17} parent=5 // pred_region
      %s114 = ssub.s32 %s8, 1
      // Predicated region
      $region13: #{generator_forward.17} parent=11 // pred_check
        %p115 = pneg %p74
      $region14: #{generator_forward.17} parent=11 // pred_check_branch
        %117 = sbr.rel (%p115) target = $region16
      $region15: #{generator_forward.17} parent=11 // pred_region
        %s118 = smul.u32 4, %s18
        %p119 = scmp.lt.s32.totalorder %s118, 3
        %s120 = scalar_select %p119, %s118, 3
        %s121 = smul.addr %s120, 4
        %s122 = scalar_lea.vmem %s1, %s121
        %s123 = smul.u32 4, %s18
      $region16: #{generator_forward.17} parent=11 // pred_fallthru
        _
    $region12: #{generator_forward.17} parent=5 // pred_fallthru
      _
    %p124 = scmp.lt.s32.totalorder %s8, 5
    // Predicated region
    $region17: #{generator_forward.17} parent=5 // pred_check
      %p125 = pneg %p124
    $region18: #{generator_forward.17} parent=5 // pred_check_branch
      %127 = sbr.rel (%p125) target = $region20
    $region19: #{generator_forward.17} parent=5 // pred_region
      // Predicated region
      $region21: #{generator_forward.17} parent=19 // pred_check
        %p128 = pneg %p42
      $region22: #{generator_forward.17} parent=19 // pred_check_branch
        %130 = sbr.rel (%p128) target = $region24
      $region23: #{generator_forward.17} parent=19 // pred_region
        %s131 = smul.u32 64, %s15
        %p132 = scmp.lt.s32.totalorder %s131, 319
        %s133 = scalar_select %p132, %s131, 319
        %p134 = scmp.lt.s32.totalorder %s16, 0
        %s135 = scalar_select %p134, %s16, 0
        %s136 = sadd.s32 %s135, %s133
        %s137 = smul.addr %s136, 4
        %s138 = scalar_lea.vmem %s0, %s137
        %s139 = smul.u32 64, %s15
      $region24: #{generator_forward.17} parent=19 // pred_fallthru
        _
    $region20: #{generator_forward.17} parent=5 // pred_fallthru
      _
    %p140 = scmp.le.s32.totalorder 1, %s8
    %p141 = scmp.lt.s32.totalorder %s8, 6
    %p142 = pnand %p140, %p141
    %p143 = pneg %p142
    // Predicated region
    $region25: #{generator_forward.17} parent=5 // pred_check
      _
    $region26: #{generator_forward.17} parent=5 // pred_check_branch
      %145 = sbr.rel (%p142) target = $region28
    $region27: #{generator_forward.17} parent=5 // pred_region
      %s146 = ssub.s32 %s8, 1
      %s147 = smul.u32 64, %s17
      %p148 = scmp.lt.s32.totalorder %s147, 319
      %s149 = scalar_select %p148, %s147, 319
      %p150 = scmp.lt.s32.totalorder %s18, 0
      %s151 = scalar_select %p150, %s18, 0
      %s152 = sadd.s32 %s151, %s149
      %s153 = smul.addr %s152, 4
      %s154 = scalar_lea.vmem %s0, %s153
      %p155 = pneg %p48
      %p156 = pneg %p45
      %s157 = smul.u32 4, %s18
      %p158 = scmp.lt.s32.totalorder %s157, 3
      %s159 = scalar_select %p158, %s157, 3
      %s160 = smul.addr %s159, 4
      %s161 = scalar_lea.vmem %s1, %s160
      %p162 = pneg %p74
      %p163 = pneg %p71
      %p164 = pneg %p100
      %p165 = pneg %p97
      %s166 = smul.u32 64, %s17
      %p167 = scmp.lt.s32.totalorder %s166, 319
      %s168 = scalar_select %p167, %s166, 319
      %s169 = smul.addr %s168, 8
      %s170 = scalar_lea.vmem %s2, %s169
      %s171 = smul.u32 64, %s17
      %p172 = scmp.lt.s32.totalorder %s171, 319
      %s173 = scalar_select %p172, %s171, 319
      %p174 = scmp.lt.s32.totalorder %s18, 0
      %s175 = scalar_select %p174, %s18, 0
      %s176 = sadd.s32 %s175, %s173
      %s177 = smul.addr %s176, 4
      %s178 = scalar_lea.vmem %s0, %s177
      %s179 = smul.u32 64, %s17
      %s180 = smul.u32 4, %s18
      %p181 = scmp.lt.s32.totalorder %s180, 3
      %s182 = scalar_select %p181, %s180, 3
      %s183 = smul.addr %s182, 4
      %s184 = scalar_lea.vmem %s1, %s183
      %s185 = smul.u32 4, %s18
      %s186 = smul.u32 64, %s17
      %p187 = scmp.lt.s32.totalorder %s186, 319
      %s188 = scalar_select %p187, %s186, 319
      %s189 = smul.addr %s188, 8
      %s190 = scalar_lea.vmem %s2, %s189
      %s191 = smul.u32 64, %s17
      %p193 = scmp.eq.s32.totalorder %s18, 0
      // Predicated region
      $region29: #{generator_forward.17} parent=27 // pred_check
        %p194 = pneg %p193
      $region30: #{generator_forward.17} parent=27 // pred_check_branch
        %196 = sbr.rel (%p194) target = $region32
      $region31: #{generator_forward.17} parent=27 // pred_region
        %197 = vst [vmem:[#allocation2] sm:$0xff] 0.0
        %198 = vst [vmem:[#allocation2 + $0x8] sm:$0xff] 0.0
        %199 = vst [vmem:[#allocation2 + $0x10] sm:$0xff] 0.0
        %200 = vst [vmem:[#allocation2 + $0x18] sm:$0xff] 0.0
        %201 = vst [vmem:[#allocation2 + $0x20] sm:$0xff] 0.0
        %202 = vst [vmem:[#allocation2 + $0x28] sm:$0xff] 0.0
        %203 = vst [vmem:[#allocation2 + $0x30] sm:$0xff] 0.0
        %204 = vst [vmem:[#allocation2 + $0x38] sm:$0xff] 0.0
        %205 = vst [vmem:[#allocation2 + $0x40] sm:$0xff] 0.0
        %206 = vst [vmem:[#allocation2 + $0x48] sm:$0xff] 0.0
        %207 = vst [vmem:[#allocation2 + $0x50] sm:$0xff] 0.0
        %208 = vst [vmem:[#allocation2 + $0x58] sm:$0xff] 0.0
        %209 = vst [vmem:[#allocation2 + $0x60] sm:$0xff] 0.0
        %210 = vst [vmem:[#allocation2 + $0x68] sm:$0xff] 0.0
        %211 = vst [vmem:[#allocation2 + $0x70] sm:$0xff] 0.0
        %212 = vst [vmem:[#allocation2 + $0x78] sm:$0xff] 0.0
        %213 = vst [vmem:[#allocation2 + $0x80] sm:$0xff] 0.0
        %214 = vst [vmem:[#allocation2 + $0x88] sm:$0xff] 0.0
        %215 = vst [vmem:[#allocation2 + $0x90] sm:$0xff] 0.0
        %216 = vst [vmem:[#allocation2 + $0x98] sm:$0xff] 0.0
        %217 = vst [vmem:[#allocation2 + $0xa0] sm:$0xff] 0.0
        %218 = vst [vmem:[#allocation2 + $0xa8] sm:$0xff] 0.0
        %219 = vst [vmem:[#allocation2 + $0xb0] sm:$0xff] 0.0
        %220 = vst [vmem:[#allocation2 + $0xb8] sm:$0xff] 0.0
        %221 = vst [vmem:[#allocation2 + $0xc0] sm:$0xff] 0.0
        %222 = vst [vmem:[#allocation2 + $0xc8] sm:$0xff] 0.0
        %223 = vst [vmem:[#allocation2 + $0xd0] sm:$0xff] 0.0
        %224 = vst [vmem:[#allocation2 + $0xd8] sm:$0xff] 0.0
        %225 = vst [vmem:[#allocation2 + $0xe0] sm:$0xff] 0.0
        %226 = vst [vmem:[#allocation2 + $0xe8] sm:$0xff] 0.0
        %227 = vst [vmem:[#allocation2 + $0xf0] sm:$0xff] 0.0
        %228 = vst [vmem:[#allocation2 + $0xf8] sm:$0xff] 0.0
        %229 = vst [vmem:[#allocation2 + $0x100] sm:$0xff] 0.0
        %230 = vst [vmem:[#allocation2 + $0x108] sm:$0xff] 0.0
        %231 = vst [vmem:[#allocation2 + $0x110] sm:$0xff] 0.0
        %232 = vst [vmem:[#allocation2 + $0x118] sm:$0xff] 0.0
        %233 = vst [vmem:[#allocation2 + $0x120] sm:$0xff] 0.0
        %234 = vst [vmem:[#allocation2 + $0x128] sm:$0xff] 0.0
        %235 = vst [vmem:[#allocation2 + $0x130] sm:$0xff] 0.0
        %236 = vst [vmem:[#allocation2 + $0x138] sm:$0xff] 0.0
        %237 = vst [vmem:[#allocation2 + $0x140] sm:$0xff] 0.0
        %238 = vst [vmem:[#allocation2 + $0x148] sm:$0xff] 0.0
        %239 = vst [vmem:[#allocation2 + $0x150] sm:$0xff] 0.0
        %240 = vst [vmem:[#allocation2 + $0x158] sm:$0xff] 0.0
        %241 = vst [vmem:[#allocation2 + $0x160] sm:$0xff] 0.0
        %242 = vst [vmem:[#allocation2 + $0x168] sm:$0xff] 0.0
        %243 = vst [vmem:[#allocation2 + $0x170] sm:$0xff] 0.0
        %244 = vst [vmem:[#allocation2 + $0x178] sm:$0xff] 0.0
        %245 = vst [vmem:[#allocation2 + $0x180] sm:$0xff] 0.0
        %246 = vst [vmem:[#allocation2 + $0x188] sm:$0xff] 0.0
        %247 = vst [vmem:[#allocation2 + $0x190] sm:$0xff] 0.0
        %248 = vst [vmem:[#allocation2 + $0x198] sm:$0xff] 0.0
        %249 = vst [vmem:[#allocation2 + $0x1a0] sm:$0xff] 0.0
        %250 = vst [vmem:[#allocation2 + $0x1a8] sm:$0xff] 0.0
        %251 = vst [vmem:[#allocation2 + $0x1b0] sm:$0xff] 0.0
        %252 = vst [vmem:[#allocation2 + $0x1b8] sm:$0xff] 0.0
        %253 = vst [vmem:[#allocation2 + $0x1c0] sm:$0xff] 0.0
        %254 = vst [vmem:[#allocation2 + $0x1c8] sm:$0xff] 0.0
        %255 = vst [vmem:[#allocation2 + $0x1d0] sm:$0xff] 0.0
        %256 = vst [vmem:[#allocation2 + $0x1d8] sm:$0xff] 0.0
        %257 = vst [vmem:[#allocation2 + $0x1e0] sm:$0xff] 0.0
        %258 = vst [vmem:[#allocation2 + $0x1e8] sm:$0xff] 0.0
        %259 = vst [vmem:[#allocation2 + $0x1f0] sm:$0xff] 0.0
        %260 = vst [vmem:[#allocation2 + $0x1f8] sm:$0xff] 0.0
      $region32: #{generator_forward.17} parent=27 // pred_fallthru
        _
      %v261 = vld [vmem:[#allocation2] sm:$0xff]
      %v262 = vld [vmem:[#allocation2 + $0x8] sm:$0xff]
      %v263 = vld [vmem:[#allocation2 + $0x10] sm:$0xff]
      %v264 = vld [vmem:[#allocation2 + $0x18] sm:$0xff]
      %v265 = vld [vmem:[#allocation2 + $0x20] sm:$0xff]
      %v266 = vld [vmem:[#allocation2 + $0x28] sm:$0xff]
      %v267 = vld [vmem:[#allocation2 + $0x30] sm:$0xff]
      %v268 = vld [vmem:[#allocation2 + $0x38] sm:$0xff]
      %v269 = vld [vmem:[#allocation2 + $0x40] sm:$0xff]
      %v270 = vld [vmem:[#allocation2 + $0x48] sm:$0xff]
      %v271 = vld [vmem:[#allocation2 + $0x50] sm:$0xff]
      %v272 = vld [vmem:[#allocation2 + $0x58] sm:$0xff]
      %v273 = vld [vmem:[#allocation2 + $0x60] sm:$0xff]
      %v274 = vld [vmem:[#allocation2 + $0x68] sm:$0xff]
      %v275 = vld [vmem:[#allocation2 + $0x70] sm:$0xff]
      %v276 = vld [vmem:[#allocation2 + $0x78] sm:$0xff]
      %v277 = vld [vmem:[#allocation2 + $0x80] sm:$0xff]
      %v278 = vld [vmem:[#allocation2 + $0x88] sm:$0xff]
      %v279 = vld [vmem:[#allocation2 + $0x90] sm:$0xff]
      %v280 = vld [vmem:[#allocation2 + $0x98] sm:$0xff]
      %v281 = vld [vmem:[#allocation2 + $0xa0] sm:$0xff]
      %v282 = vld [vmem:[#allocation2 + $0xa8] sm:$0xff]
      %v283 = vld [vmem:[#allocation2 + $0xb0] sm:$0xff]
      %v284 = vld [vmem:[#allocation2 + $0xb8] sm:$0xff]
      %v285 = vld [vmem:[#allocation2 + $0xc0] sm:$0xff]
      %v286 = vld [vmem:[#allocation2 + $0xc8] sm:$0xff]
      %v287 = vld [vmem:[#allocation2 + $0xd0] sm:$0xff]
      %v288 = vld [vmem:[#allocation2 + $0xd8] sm:$0xff]
      %v289 = vld [vmem:[#allocation2 + $0xe0] sm:$0xff]
      %v290 = vld [vmem:[#allocation2 + $0xe8] sm:$0xff]
      %v291 = vld [vmem:[#allocation2 + $0xf0] sm:$0xff]
      %v292 = vld [vmem:[#allocation2 + $0xf8] sm:$0xff]
      %v293 = vld [vmem:[#allocation2 + $0x100] sm:$0xff]
      %v294 = vld [vmem:[#allocation2 + $0x108] sm:$0xff]
      %v295 = vld [vmem:[#allocation2 + $0x110] sm:$0xff]
      %v296 = vld [vmem:[#allocation2 + $0x118] sm:$0xff]
      %v297 = vld [vmem:[#allocation2 + $0x120] sm:$0xff]
      %v298 = vld [vmem:[#allocation2 + $0x128] sm:$0xff]
      %v299 = vld [vmem:[#allocation2 + $0x130] sm:$0xff]
      %v300 = vld [vmem:[#allocation2 + $0x138] sm:$0xff]
      %v301 = vld [vmem:[#allocation2 + $0x140] sm:$0xff]
      %v302 = vld [vmem:[#allocation2 + $0x148] sm:$0xff]
      %v303 = vld [vmem:[#allocation2 + $0x150] sm:$0xff]
      %v304 = vld [vmem:[#allocation2 + $0x158] sm:$0xff]
      %v305 = vld [vmem:[#allocation2 + $0x160] sm:$0xff]
      %v306 = vld [vmem:[#allocation2 + $0x168] sm:$0xff]
      %v307 = vld [vmem:[#allocation2 + $0x170] sm:$0xff]
      %v308 = vld [vmem:[#allocation2 + $0x178] sm:$0xff]
      %v309 = vld [vmem:[#allocation2 + $0x180] sm:$0xff]
      %v310 = vld [vmem:[#allocation2 + $0x188] sm:$0xff]
      %v311 = vld [vmem:[#allocation2 + $0x190] sm:$0xff]
      %v312 = vld [vmem:[#allocation2 + $0x198] sm:$0xff]
      %v313 = vld [vmem:[#allocation2 + $0x1a0] sm:$0xff]
      %v314 = vld [vmem:[#allocation2 + $0x1a8] sm:$0xff]
      %v315 = vld [vmem:[#allocation2 + $0x1b0] sm:$0xff]
      %v316 = vld [vmem:[#allocation2 + $0x1b8] sm:$0xff]
      %v317 = vld [vmem:[#allocation2 + $0x1c0] sm:$0xff]
      %v318 = vld [vmem:[#allocation2 + $0x1c8] sm:$0xff]
      %v319 = vld [vmem:[#allocation2 + $0x1d0] sm:$0xff]
      %v320 = vld [vmem:[#allocation2 + $0x1d8] sm:$0xff]
      %v321 = vld [vmem:[#allocation2 + $0x1e0] sm:$0xff]
      %v322 = vld [vmem:[#allocation2 + $0x1e8] sm:$0xff]
      %v323 = vld [vmem:[#allocation2 + $0x1f0] sm:$0xff]
      %v324 = vld [vmem:[#allocation2 + $0x1f8] sm:$0xff]
      %v325 = vld [vmem:[%s178] sm:$0xf]
      %v326 = vld [vmem:[%s178 + $0x4] sm:$0xf]
      %v327 = vld [vmem:[%s178 + $0x8] sm:$0xf]
      %v328 = vld [vmem:[%s178 + $0xc] sm:$0xf]
      %v329 = vld [vmem:[%s178 + $0x10] sm:$0xf]
      %v330 = vld [vmem:[%s178 + $0x14] sm:$0xf]
      %v331 = vld [vmem:[%s178 + $0x18] sm:$0xf]
      %v332 = vld [vmem:[%s178 + $0x1c] sm:$0xf]
      %v333 = vld [vmem:[%s178 + $0x20] sm:$0xf]
      %v334 = vld [vmem:[%s178 + $0x24] sm:$0xf]
      %v335 = vld [vmem:[%s178 + $0x28] sm:$0xf]
      %v336 = vld [vmem:[%s178 + $0x2c] sm:$0xf]
      %v337 = vld [vmem:[%s178 + $0x30] sm:$0xf]
      %v338 = vld [vmem:[%s178 + $0x34] sm:$0xf]
      %v339 = vld [vmem:[%s178 + $0x38] sm:$0xf]
      %v340 = vld [vmem:[%s178 + $0x3c] sm:$0xf]
      %v341 = vld [vmem:[%s178 + $0x40] sm:$0xf]
      %v342 = vld [vmem:[%s178 + $0x44] sm:$0xf]
      %v343 = vld [vmem:[%s178 + $0x48] sm:$0xf]
      %v344 = vld [vmem:[%s178 + $0x4c] sm:$0xf]
      %v345 = vld [vmem:[%s178 + $0x50] sm:$0xf]
      %v346 = vld [vmem:[%s178 + $0x54] sm:$0xf]
      %v347 = vld [vmem:[%s178 + $0x58] sm:$0xf]
      %v348 = vld [vmem:[%s178 + $0x5c] sm:$0xf]
      %v349 = vld [vmem:[%s178 + $0x60] sm:$0xf]
      %v350 = vld [vmem:[%s178 + $0x64] sm:$0xf]
      %v351 = vld [vmem:[%s178 + $0x68] sm:$0xf]
      %v352 = vld [vmem:[%s178 + $0x6c] sm:$0xf]
      %v353 = vld [vmem:[%s178 + $0x70] sm:$0xf]
      %v354 = vld [vmem:[%s178 + $0x74] sm:$0xf]
      %v355 = vld [vmem:[%s178 + $0x78] sm:$0xf]
      %v356 = vld [vmem:[%s178 + $0x7c] sm:$0xf]
      %v357 = vld [vmem:[%s178 + $0x80] sm:$0xf]
      %v358 = vld [vmem:[%s178 + $0x84] sm:$0xf]
      %v359 = vld [vmem:[%s178 + $0x88] sm:$0xf]
      %v360 = vld [vmem:[%s178 + $0x8c] sm:$0xf]
      %v361 = vld [vmem:[%s178 + $0x90] sm:$0xf]
      %v362 = vld [vmem:[%s178 + $0x94] sm:$0xf]
      %v363 = vld [vmem:[%s178 + $0x98] sm:$0xf]
      %v364 = vld [vmem:[%s178 + $0x9c] sm:$0xf]
      %v365 = vld [vmem:[%s178 + $0xa0] sm:$0xf]
      %v366 = vld [vmem:[%s178 + $0xa4] sm:$0xf]
      %v367 = vld [vmem:[%s178 + $0xa8] sm:$0xf]
      %v368 = vld [vmem:[%s178 + $0xac] sm:$0xf]
      %v369 = vld [vmem:[%s178 + $0xb0] sm:$0xf]
      %v370 = vld [vmem:[%s178 + $0xb4] sm:$0xf]
      %v371 = vld [vmem:[%s178 + $0xb8] sm:$0xf]
      %v372 = vld [vmem:[%s178 + $0xbc] sm:$0xf]
      %v373 = vld [vmem:[%s178 + $0xc0] sm:$0xf]
      %v374 = vld [vmem:[%s178 + $0xc4] sm:$0xf]
      %v375 = vld [vmem:[%s178 + $0xc8] sm:$0xf]
      %v376 = vld [vmem:[%s178 + $0xcc] sm:$0xf]
      %v377 = vld [vmem:[%s178 + $0xd0] sm:$0xf]
      %v378 = vld [vmem:[%s178 + $0xd4] sm:$0xf]
      %v379 = vld [vmem:[%s178 + $0xd8] sm:$0xf]
      %v380 = vld [vmem:[%s178 + $0xdc] sm:$0xf]
      %v381 = vld [vmem:[%s178 + $0xe0] sm:$0xf]
      %v382 = vld [vmem:[%s178 + $0xe4] sm:$0xf]
      %v383 = vld [vmem:[%s178 + $0xe8] sm:$0xf]
      %v384 = vld [vmem:[%s178 + $0xec] sm:$0xf]
      %v385 = vld [vmem:[%s178 + $0xf0] sm:$0xf]
      %v386 = vld [vmem:[%s178 + $0xf4] sm:$0xf]
      %v387 = vld [vmem:[%s178 + $0xf8] sm:$0xf]
      %v388 = vld [vmem:[%s178 + $0xfc] sm:$0xf]
      %v389 = vld [vmem:[%s184] sm:$0xf]
      %v390 = vld [vmem:[%s184 + $0x4] sm:$0xf]
      %v391 = vld [vmem:[%s184 + $0x8] sm:$0xf]
      %v392 = vld [vmem:[%s184 + $0xc] sm:$0xf]
      %v457 = vunpack.c.l.b16 %v325
      %v458 = vunpack.c.l.b16 %v326
      %v459 = vunpack.c.l.b16 %v327
      %v460 = vunpack.c.l.b16 %v328
      %v461 = vunpack.c.l.b16 %v329
      %v462 = vunpack.c.l.b16 %v330
      %v463 = vunpack.c.l.b16 %v331
      %v464 = vunpack.c.l.b16 %v332
      %v465 = vunpack.c.l.b16 %v333
      %v466 = vunpack.c.l.b16 %v334
      %v467 = vunpack.c.l.b16 %v335
      %v468 = vunpack.c.l.b16 %v336
      %v469 = vunpack.c.l.b16 %v337
      %v470 = vunpack.c.l.b16 %v338
      %v471 = vunpack.c.l.b16 %v339
      %v472 = vunpack.c.l.b16 %v340
      %v473 = vunpack.c.l.b16 %v341
      %v474 = vunpack.c.l.b16 %v342
      %v475 = vunpack.c.l.b16 %v343
      %v476 = vunpack.c.l.b16 %v344
      %v477 = vunpack.c.l.b16 %v345
      %v478 = vunpack.c.l.b16 %v346
      %v479 = vunpack.c.l.b16 %v347
      %v480 = vunpack.c.l.b16 %v348
      %v481 = vunpack.c.l.b16 %v349
      %v482 = vunpack.c.l.b16 %v350
      %v483 = vunpack.c.l.b16 %v351
      %v484 = vunpack.c.l.b16 %v352
      %v485 = vunpack.c.l.b16 %v353
      %v486 = vunpack.c.l.b16 %v354
      %v487 = vunpack.c.l.b16 %v355
      %v488 = vunpack.c.l.b16 %v356
      %v489 = vunpack.c.l.b16 %v357
      %v490 = vunpack.c.l.b16 %v358
      %v491 = vunpack.c.l.b16 %v359
      %v492 = vunpack.c.l.b16 %v360
      %v493 = vunpack.c.l.b16 %v361
      %v494 = vunpack.c.l.b16 %v362
      %v495 = vunpack.c.l.b16 %v363
      %v496 = vunpack.c.l.b16 %v364
      %v497 = vunpack.c.l.b16 %v365
      %v498 = vunpack.c.l.b16 %v366
      %v499 = vunpack.c.l.b16 %v367
      %v500 = vunpack.c.l.b16 %v368
      %v501 = vunpack.c.l.b16 %v369
      %v502 = vunpack.c.l.b16 %v370
      %v503 = vunpack.c.l.b16 %v371
      %v504 = vunpack.c.l.b16 %v372
      %v505 = vunpack.c.l.b16 %v373
      %v506 = vunpack.c.l.b16 %v374
      %v507 = vunpack.c.l.b16 %v375
      %v508 = vunpack.c.l.b16 %v376
      %v509 = vunpack.c.l.b16 %v377
      %v510 = vunpack.c.l.b16 %v378
      %v511 = vunpack.c.l.b16 %v379
      %v512 = vunpack.c.l.b16 %v380
      %v513 = vunpack.c.l.b16 %v381
      %v514 = vunpack.c.l.b16 %v382
      %v515 = vunpack.c.l.b16 %v383
      %v516 = vunpack.c.l.b16 %v384
      %v517 = vunpack.c.l.b16 %v385
      %v518 = vunpack.c.l.b16 %v386
      %v519 = vunpack.c.l.b16 %v387
      %v520 = vunpack.c.l.b16 %v388
      %v521 = vpack.c.b16 %v458, %v457
      %v522 = vpack.c.b16 %v460, %v459
      %v523 = vpack.c.b16 %v462, %v461
      %v524 = vpack.c.b16 %v464, %v463
      %v525 = vpack.c.b16 %v466, %v465
      %v526 = vpack.c.b16 %v468, %v467
      %v527 = vpack.c.b16 %v470, %v469
      %v528 = vpack.c.b16 %v472, %v471
      %v529 = vpack.c.b16 %v474, %v473
      %v530 = vpack.c.b16 %v476, %v475
      %v531 = vpack.c.b16 %v478, %v477
      %v532 = vpack.c.b16 %v480, %v479
      %v533 = vpack.c.b16 %v482, %v481
      %v534 = vpack.c.b16 %v484, %v483
      %v535 = vpack.c.b16 %v486, %v485
      %v536 = vpack.c.b16 %v488, %v487
      %v537 = vpack.c.b16 %v490, %v489
      %v538 = vpack.c.b16 %v492, %v491
      %v539 = vpack.c.b16 %v494, %v493
      %v540 = vpack.c.b16 %v496, %v495
      %v541 = vpack.c.b16 %v498, %v497
      %v542 = vpack.c.b16 %v500, %v499
      %v543 = vpack.c.b16 %v502, %v501
      %v544 = vpack.c.b16 %v504, %v503
      %v545 = vpack.c.b16 %v506, %v505
      %v546 = vpack.c.b16 %v508, %v507
      %v547 = vpack.c.b16 %v510, %v509
      %v548 = vpack.c.b16 %v512, %v511
      %v549 = vpack.c.b16 %v514, %v513
      %v550 = vpack.c.b16 %v516, %v515
      %v551 = vpack.c.b16 %v518, %v517
      %v552 = vpack.c.b16 %v520, %v519
      %v557 = vunpack.c.l.b16 %v389
      %v558 = vunpack.c.l.b16 %v390
      %v559 = vunpack.c.l.b16 %v391
      %v560 = vunpack.c.l.b16 %v392
      %v561 = vpack.c.b16 %v558, %v557
      %v562 = vpack.c.b16 %v560, %v559
      %vm565 = vcmask 261120
      %v567 = vsel %vm565, %v521, 0
      %v570 = vsel %vm565, %v522, 0
      %v573 = vsel %vm565, %v523, 0
      %v576 = vsel %vm565, %v524, 0
      %v579 = vsel %vm565, %v525, 0
      %v582 = vsel %vm565, %v526, 0
      %v585 = vsel %vm565, %v527, 0
      %v588 = vsel %vm565, %v528, 0
      %v591 = vsel %vm565, %v529, 0
      %v594 = vsel %vm565, %v530, 0
      %v597 = vsel %vm565, %v531, 0
      %v600 = vsel %vm565, %v532, 0
      %v603 = vsel %vm565, %v533, 0
      %v606 = vsel %vm565, %v534, 0
      %v609 = vsel %vm565, %v535, 0
      %v612 = vsel %vm565, %v536, 0
      %v615 = vsel %vm565, %v537, 0
      %v618 = vsel %vm565, %v538, 0
      %v621 = vsel %vm565, %v539, 0
      %v624 = vsel %vm565, %v540, 0
      %v627 = vsel %vm565, %v541, 0
      %v630 = vsel %vm565, %v542, 0
      %v633 = vsel %vm565, %v543, 0
      %v636 = vsel %vm565, %v544, 0
      %v639 = vsel %vm565, %v545, 0
      %v642 = vsel %vm565, %v546, 0
      %v645 = vsel %vm565, %v547, 0
      %v648 = vsel %vm565, %v548, 0
      %v651 = vsel %vm565, %v549, 0
      %v654 = vsel %vm565, %v550, 0
      %v657 = vsel %vm565, %v551, 0
      %v660 = vsel %vm565, %v552, 0
      %662 = vmatprep.subr.bf16.mxu0 0
      %663 = vmatpush1.bf16.msra.mxu0 %v561
      %664 = vmatprep.subr.bf16.mxu0 0
      %665 = vmatpush1.bf16.msra.mxu0 %v562
      %666 = vmatprep.subr.bf16.mxu0 0
      %667 = vmatpush1.bf16.msra.mxu0 0
      %668 = vmatprep.subr.bf16.mxu0 0
      %669 = vmatpush1.bf16.msra.mxu0 0
      %670 = vmatprep.subr.bf16.mxu0 0
      %671 = vmatpush1.bf16.msra.mxu0 0
      %672 = vmatprep.subr.bf16.mxu0 0
      %673 = vmatpush1.bf16.msra.mxu0 0
      %674 = vmatprep.subr.bf16.mxu0 0
      %675 = vmatpush1.bf16.msra.mxu0 0
      %676 = vmatprep.subr.bf16.mxu0 0
      %677 = vmatpush1.bf16.msra.mxu0 0
      %678 = vmatprep.subr.bf16.mxu0 0
      %679 = vmatpush1.bf16.msra.mxu0 0
      %680 = vmatprep.subr.bf16.mxu0 0
      %681 = vmatpush1.bf16.msra.mxu0 0
      %682 = vmatprep.subr.bf16.mxu0 0
      %683 = vmatpush1.bf16.msra.mxu0 0
      %684 = vmatprep.subr.bf16.mxu0 0
      %685 = vmatpush1.bf16.msra.mxu0 0
      %686 = vmatprep.subr.bf16.mxu0 0
      %687 = vmatpush1.bf16.msra.mxu0 0
      %688 = vmatprep.subr.bf16.mxu0 0
      %689 = vmatpush1.bf16.msra.mxu0 0
      %690 = vmatprep.subr.bf16.mxu0 0
      %691 = vmatpush1.bf16.msra.mxu0 0
      %692 = vmatprep.subr.bf16.mxu0 0
      %693 = vmatpush1.bf16.msra.mxu0 0
      %694 = vmatprep.mubr.bf16.mxu0 0
      %695 = vmatmul.mubr.bf16.gmra.mrb[0].mxu0 %v567
      %v696 = vpop.f32.mrb[0].mxu0
      %v697 = vadd.f32 0.0, %v696
      %v698 = vpop.f32.mrb[0].mxu0
      %v699 = vpop.f32.mrb[0].mxu0
      %v700 = vadd.f32 0.0, %v699
      %v701 = vpop.f32.mrb[0].mxu0
      %702 = vmatprep.mubr.bf16.mxu0 0
      %703 = vmatmul.mubr.bf16.gmra.mrb[0].mxu0 %v570
      %v704 = vpop.f32.mrb[0].mxu0
      %v705 = vadd.f32 0.0, %v704
      %v706 = vpop.f32.mrb[0].mxu0
      %v707 = vpop.f32.mrb[0].mxu0
      %v708 = vadd.f32 0.0, %v707
      %v709 = vpop.f32.mrb[0].mxu0
      %710 = vmatprep.mubr.bf16.mxu0 0
      %711 = vmatmul.mubr.bf16.gmra.mrb[0].mxu0 %v573
      %v712 = vpop.f32.mrb[0].mxu0
      %v713 = vadd.f32 0.0, %v712
      %v714 = vpop.f32.mrb[0].mxu0
      %v715 = vpop.f32.mrb[0].mxu0
      %v716 = vadd.f32 0.0, %v715
      %v717 = vpop.f32.mrb[0].mxu0
      %718 = vmatprep.mubr.bf16.mxu0 0
      %719 = vmatmul.mubr.bf16.gmra.mrb[0].mxu0 %v576
      %v720 = vpop.f32.mrb[0].mxu0
      %v721 = vadd.f32 0.0, %v720
      %v722 = vpop.f32.mrb[0].mxu0
      %v723 = vpop.f32.mrb[0].mxu0
      %v724 = vadd.f32 0.0, %v723
      %v725 = vpop.f32.mrb[0].mxu0
      %726 = vmatprep.mubr.bf16.mxu0 0
      %727 = vmatmul.mubr.bf16.gmra.mrb[0].mxu0 %v579
      %v728 = vpop.f32.mrb[0].mxu0
      %v729 = vadd.f32 0.0, %v728
      %v730 = vpop.f32.mrb[0].mxu0
      %v731 = vpop.f32.mrb[0].mxu0
      %v732 = vadd.f32 0.0, %v731
      %v733 = vpop.f32.mrb[0].mxu0
      %734 = vmatprep.mubr.bf16.mxu0 0
      %735 = vmatmul.mubr.bf16.gmra.mrb[0].mxu0 %v582
      %v736 = vpop.f32.mrb[0].mxu0
      %v737 = vadd.f32 0.0, %v736
      %v738 = vpop.f32.mrb[0].mxu0
      %v739 = vpop.f32.mrb[0].mxu0
      %v740 = vadd.f32 0.0, %v739
      %v741 = vpop.f32.mrb[0].mxu0
      %742 = vmatprep.mubr.bf16.mxu0 0
      %743 = vmatmul.mubr.bf16.gmra.mrb[0].mxu0 %v585
      %v744 = vpop.f32.mrb[0].mxu0
      %v745 = vadd.f32 0.0, %v744
      %v746 = vpop.f32.mrb[0].mxu0
      %v747 = vpop.f32.mrb[0].mxu0
      %v748 = vadd.f32 0.0, %v747
      %v749 = vpop.f32.mrb[0].mxu0
      %750 = vmatprep.mubr.bf16.mxu0 0
      %751 = vmatmul.mubr.bf16.gmra.mrb[0].mxu0 %v588
      %v752 = vpop.f32.mrb[0].mxu0
      %v753 = vadd.f32 0.0, %v752
      %v754 = vpop.f32.mrb[0].mxu0
      %v755 = vpop.f32.mrb[0].mxu0
      %v756 = vadd.f32 0.0, %v755
      %v757 = vpop.f32.mrb[0].mxu0
      %758 = vmatprep.mubr.bf16.mxu0 0
      %759 = vmatmul.mubr.bf16.gmra.mrb[0].mxu0 %v591
      %v760 = vpop.f32.mrb[0].mxu0
      %v761 = vadd.f32 0.0, %v760
      %v762 = vpop.f32.mrb[0].mxu0
      %v763 = vpop.f32.mrb[0].mxu0
      %v764 = vadd.f32 0.0, %v763
      %v765 = vpop.f32.mrb[0].mxu0
      %766 = vmatprep.mubr.bf16.mxu0 0
      %767 = vmatmul.mubr.bf16.gmra.mrb[0].mxu0 %v594
      %v768 = vpop.f32.mrb[0].mxu0
      %v769 = vadd.f32 0.0, %v768
      %v770 = vpop.f32.mrb[0].mxu0
      %v771 = vpop.f32.mrb[0].mxu0
      %v772 = vadd.f32 0.0, %v771
      %v773 = vpop.f32.mrb[0].mxu0
      %774 = vmatprep.mubr.bf16.mxu0 0
      %775 = vmatmul.mubr.bf16.gmra.mrb[0].mxu0 %v597
      %v776 = vpop.f32.mrb[0].mxu0
      %v777 = vadd.f32 0.0, %v776
      %v778 = vpop.f32.mrb[0].mxu0
      %v779 = vpop.f32.mrb[0].mxu0
      %v780 = vadd.f32 0.0, %v779
      %v781 = vpop.f32.mrb[0].mxu0
      %782 = vmatprep.mubr.bf16.mxu0 0
      %783 = vmatmul.mubr.bf16.gmra.mrb[0].mxu0 %v600
      %v784 = vpop.f32.mrb[0].mxu0
      %v785 = vadd.f32 0.0, %v784
      %v786 = vpop.f32.mrb[0].mxu0
      %v787 = vpop.f32.mrb[0].mxu0
      %v788 = vadd.f32 0.0, %v787
      %v789 = vpop.f32.mrb[0].mxu0
      %790 = vmatprep.mubr.bf16.mxu0 0
      %791 = vmatmul.mubr.bf16.gmra.mrb[0].mxu0 %v603
      %v792 = vpop.f32.mrb[0].mxu0
      %v793 = vadd.f32 0.0, %v792
      %v794 = vpop.f32.mrb[0].mxu0
      %v795 = vpop.f32.mrb[0].mxu0
      %v796 = vadd.f32 0.0, %v795
      %v797 = vpop.f32.mrb[0].mxu0
      %798 = vmatprep.mubr.bf16.mxu0 0
      %799 = vmatmul.mubr.bf16.gmra.mrb[0].mxu0 %v606
      %v800 = vpop.f32.mrb[0].mxu0
      %v801 = vadd.f32 0.0, %v800
      %v802 = vpop.f32.mrb[0].mxu0
      %v803 = vpop.f32.mrb[0].mxu0
      %v804 = vadd.f32 0.0, %v803
      %v805 = vpop.f32.mrb[0].mxu0
      %806 = vmatprep.mubr.bf16.mxu0 0
      %807 = vmatmul.mubr.bf16.gmra.mrb[0].mxu0 %v609
      %v808 = vpop.f32.mrb[0].mxu0
      %v809 = vadd.f32 0.0, %v808
      %v810 = vpop.f32.mrb[0].mxu0
      %v811 = vpop.f32.mrb[0].mxu0
      %v812 = vadd.f32 0.0, %v811
      %v813 = vpop.f32.mrb[0].mxu0
      %814 = vmatprep.mubr.bf16.mxu0 0
      %815 = vmatmul.mubr.bf16.gmra.mrb[0].mxu0 %v612
      %v816 = vpop.f32.mrb[0].mxu0
      %v817 = vadd.f32 0.0, %v816
      %v818 = vpop.f32.mrb[0].mxu0
      %v819 = vpop.f32.mrb[0].mxu0
      %v820 = vadd.f32 0.0, %v819
      %v821 = vpop.f32.mrb[0].mxu0
      %822 = vmatprep.mubr.bf16.mxu0 0
      %823 = vmatmul.mubr.bf16.gmra.mrb[0].mxu0 %v615
      %v824 = vpop.f32.mrb[0].mxu0
      %v825 = vadd.f32 0.0, %v824
      %v826 = vpop.f32.mrb[0].mxu0
      %v827 = vpop.f32.mrb[0].mxu0
      %v828 = vadd.f32 0.0, %v827
      %v829 = vpop.f32.mrb[0].mxu0
      %830 = vmatprep.mubr.bf16.mxu0 0
      %831 = vmatmul.mubr.bf16.gmra.mrb[0].mxu0 %v618
      %v832 = vpop.f32.mrb[0].mxu0
      %v833 = vadd.f32 0.0, %v832
      %v834 = vpop.f32.mrb[0].mxu0
      %v835 = vpop.f32.mrb[0].mxu0
      %v836 = vadd.f32 0.0, %v835
      %v837 = vpop.f32.mrb[0].mxu0
      %838 = vmatprep.mubr.bf16.mxu0 0
      %839 = vmatmul.mubr.bf16.gmra.mrb[0].mxu0 %v621
      %v840 = vpop.f32.mrb[0].mxu0
      %v841 = vadd.f32 0.0, %v840
      %v842 = vpop.f32.mrb[0].mxu0
      %v843 = vpop.f32.mrb[0].mxu0
      %v844 = vadd.f32 0.0, %v843
      %v845 = vpop.f32.mrb[0].mxu0
      %846 = vmatprep.mubr.bf16.mxu0 0
      %847 = vmatmul.mubr.bf16.gmra.mrb[0].mxu0 %v624
      %v848 = vpop.f32.mrb[0].mxu0
      %v849 = vadd.f32 0.0, %v848
      %v850 = vpop.f32.mrb[0].mxu0
      %v851 = vpop.f32.mrb[0].mxu0
      %v852 = vadd.f32 0.0, %v851
      %v853 = vpop.f32.mrb[0].mxu0
      %854 = vmatprep.mubr.bf16.mxu0 0
      %855 = vmatmul.mubr.bf16.gmra.mrb[0].mxu0 %v627
      %v856 = vpop.f32.mrb[0].mxu0
      %v857 = vadd.f32 0.0, %v856
      %v858 = vpop.f32.mrb[0].mxu0
      %v859 = vpop.f32.mrb[0].mxu0
      %v860 = vadd.f32 0.0, %v859
      %v861 = vpop.f32.mrb[0].mxu0
      %862 = vmatprep.mubr.bf16.mxu0 0
      %863 = vmatmul.mubr.bf16.gmra.mrb[0].mxu0 %v630
      %v864 = vpop.f32.mrb[0].mxu0
      %v865 = vadd.f32 0.0, %v864
      %v866 = vpop.f32.mrb[0].mxu0
      %v867 = vpop.f32.mrb[0].mxu0
      %v868 = vadd.f32 0.0, %v867
      %v869 = vpop.f32.mrb[0].mxu0
      %870 = vmatprep.mubr.bf16.mxu0 0
      %871 = vmatmul.mubr.bf16.gmra.mrb[0].mxu0 %v633
      %v872 = vpop.f32.mrb[0].mxu0
      %v873 = vadd.f32 0.0, %v872
      %v874 = vpop.f32.mrb[0].mxu0
      %v875 = vpop.f32.mrb[0].mxu0
      %v876 = vadd.f32 0.0, %v875
      %v877 = vpop.f32.mrb[0].mxu0
      %878 = vmatprep.mubr.bf16.mxu0 0
      %879 = vmatmul.mubr.bf16.gmra.mrb[0].mxu0 %v636
      %v880 = vpop.f32.mrb[0].mxu0
      %v881 = vadd.f32 0.0, %v880
      %v882 = vpop.f32.mrb[0].mxu0
      %v883 = vpop.f32.mrb[0].mxu0
      %v884 = vadd.f32 0.0, %v883
      %v885 = vpop.f32.mrb[0].mxu0
      %886 = vmatprep.mubr.bf16.mxu0 0
      %887 = vmatmul.mubr.bf16.gmra.mrb[0].mxu0 %v639
      %v888 = vpop.f32.mrb[0].mxu0
      %v889 = vadd.f32 0.0, %v888
      %v890 = vpop.f32.mrb[0].mxu0
      %v891 = vpop.f32.mrb[0].mxu0
      %v892 = vadd.f32 0.0, %v891
      %v893 = vpop.f32.mrb[0].mxu0
      %894 = vmatprep.mubr.bf16.mxu0 0
      %895 = vmatmul.mubr.bf16.gmra.mrb[0].mxu0 %v642
      %v896 = vpop.f32.mrb[0].mxu0
      %v897 = vadd.f32 0.0, %v896
      %v898 = vpop.f32.mrb[0].mxu0
      %v899 = vpop.f32.mrb[0].mxu0
      %v900 = vadd.f32 0.0, %v899
      %v901 = vpop.f32.mrb[0].mxu0
      %902 = vmatprep.mubr.bf16.mxu0 0
      %903 = vmatmul.mubr.bf16.gmra.mrb[0].mxu0 %v645
      %v904 = vpop.f32.mrb[0].mxu0
      %v905 = vadd.f32 0.0, %v904
      %v906 = vpop.f32.mrb[0].mxu0
      %v907 = vpop.f32.mrb[0].mxu0
      %v908 = vadd.f32 0.0, %v907
      %v909 = vpop.f32.mrb[0].mxu0
      %910 = vmatprep.mubr.bf16.mxu0 0
      %911 = vmatmul.mubr.bf16.gmra.mrb[0].mxu0 %v648
      %v912 = vpop.f32.mrb[0].mxu0
      %v913 = vadd.f32 0.0, %v912
      %v914 = vpop.f32.mrb[0].mxu0
      %v915 = vpop.f32.mrb[0].mxu0
      %v916 = vadd.f32 0.0, %v915
      %v917 = vpop.f32.mrb[0].mxu0
      %918 = vmatprep.mubr.bf16.mxu0 0
      %919 = vmatmul.mubr.bf16.gmra.mrb[0].mxu0 %v651
      %v920 = vpop.f32.mrb[0].mxu0
      %v921 = vadd.f32 0.0, %v920
      %v922 = vpop.f32.mrb[0].mxu0
      %v923 = vpop.f32.mrb[0].mxu0
      %v924 = vadd.f32 0.0, %v923
      %v925 = vpop.f32.mrb[0].mxu0
      %926 = vmatprep.mubr.bf16.mxu0 0
      %927 = vmatmul.mubr.bf16.gmra.mrb[0].mxu0 %v654
      %v928 = vpop.f32.mrb[0].mxu0
      %v929 = vadd.f32 0.0, %v928
      %v930 = vpop.f32.mrb[0].mxu0
      %v931 = vpop.f32.mrb[0].mxu0
      %v932 = vadd.f32 0.0, %v931
      %v933 = vpop.f32.mrb[0].mxu0
      %934 = vmatprep.mubr.bf16.mxu0 0
      %935 = vmatmul.mubr.bf16.gmra.mrb[0].mxu0 %v657
      %v936 = vpop.f32.mrb[0].mxu0
      %v937 = vadd.f32 0.0, %v936
      %v938 = vpop.f32.mrb[0].mxu0
      %v939 = vpop.f32.mrb[0].mxu0
      %v940 = vadd.f32 0.0, %v939
      %v941 = vpop.f32.mrb[0].mxu0
      %942 = vmatprep.mubr.bf16.mxu0 0
      %943 = vmatmul.mubr.bf16.gmra.mrb[0].mxu0 %v660
      %v944 = vpop.f32.mrb[0].mxu0
      %v945 = vadd.f32 0.0, %v944
      %v946 = vpop.f32.mrb[0].mxu0
      %v947 = vpop.f32.mrb[0].mxu0
      %v948 = vadd.f32 0.0, %v947
      %v949 = vpop.f32.mrb[0].mxu0
      %950 = vdwg.mxu0
      %v951 = vadd.f32 %v261, %v697
      %v952 = vadd.f32 %v262, %v700
      %v953 = vadd.f32 %v263, %v705
      %v954 = vadd.f32 %v264, %v708
      %v955 = vadd.f32 %v265, %v713
      %v956 = vadd.f32 %v266, %v716
      %v957 = vadd.f32 %v267, %v721
      %v958 = vadd.f32 %v268, %v724
      %v959 = vadd.f32 %v269, %v729
      %v960 = vadd.f32 %v270, %v732
      %v961 = vadd.f32 %v271, %v737
      %v962 = vadd.f32 %v272, %v740
      %v963 = vadd.f32 %v273, %v745
      %v964 = vadd.f32 %v274, %v748
      %v965 = vadd.f32 %v275, %v753
      %v966 = vadd.f32 %v276, %v756
      %v967 = vadd.f32 %v277, %v761
      %v968 = vadd.f32 %v278, %v764
      %v969 = vadd.f32 %v279, %v769
      %v970 = vadd.f32 %v280, %v772
      %v971 = vadd.f32 %v281, %v777
      %v972 = vadd.f32 %v282, %v780
      %v973 = vadd.f32 %v283, %v785
      %v974 = vadd.f32 %v284, %v788
      %v975 = vadd.f32 %v285, %v793
      %v976 = vadd.f32 %v286, %v796
      %v977 = vadd.f32 %v287, %v801
      %v978 = vadd.f32 %v288, %v804
      %v979 = vadd.f32 %v289, %v809
      %v980 = vadd.f32 %v290, %v812
      %v981 = vadd.f32 %v291, %v817
      %v982 = vadd.f32 %v292, %v820
      %v983 = vadd.f32 %v293, %v825
      %v984 = vadd.f32 %v294, %v828
      %v985 = vadd.f32 %v295, %v833
      %v986 = vadd.f32 %v296, %v836
      %v987 = vadd.f32 %v297, %v841
      %v988 = vadd.f32 %v298, %v844
      %v989 = vadd.f32 %v299, %v849
      %v990 = vadd.f32 %v300, %v852
      %v991 = vadd.f32 %v301, %v857
      %v992 = vadd.f32 %v302, %v860
      %v993 = vadd.f32 %v303, %v865
      %v994 = vadd.f32 %v304, %v868
      %v995 = vadd.f32 %v305, %v873
      %v996 = vadd.f32 %v306, %v876
      %v997 = vadd.f32 %v307, %v881
      %v998 = vadd.f32 %v308, %v884
      %v999 = vadd.f32 %v309, %v889
      %v1000 = vadd.f32 %v310, %v892
      %v1001 = vadd.f32 %v311, %v897
      %v1002 = vadd.f32 %v312, %v900
      %v1003 = vadd.f32 %v313, %v905
      %v1004 = vadd.f32 %v314, %v908
      %v1005 = vadd.f32 %v315, %v913
      %v1006 = vadd.f32 %v316, %v916
      %v1007 = vadd.f32 %v317, %v921
      %v1008 = vadd.f32 %v318, %v924
      %v1009 = vadd.f32 %v319, %v929
      %v1010 = vadd.f32 %v320, %v932
      %v1011 = vadd.f32 %v321, %v937
      %v1012 = vadd.f32 %v322, %v940
      %v1013 = vadd.f32 %v323, %v945
      %v1014 = vadd.f32 %v324, %v948
      %1015 = vst [vmem:[#allocation2] sm:$0xff] %v951
      %1016 = vst [vmem:[#allocation2 + $0x8] sm:$0xff] %v952
      %1017 = vst [vmem:[#allocation2 + $0x10] sm:$0xff] %v953
      %1018 = vst [vmem:[#allocation2 + $0x18] sm:$0xff] %v954
      %1019 = vst [vmem:[#allocation2 + $0x20] sm:$0xff] %v955
      %1020 = vst [vmem:[#allocation2 + $0x28] sm:$0xff] %v956
      %1021 = vst [vmem:[#allocation2 + $0x30] sm:$0xff] %v957
      %1022 = vst [vmem:[#allocation2 + $0x38] sm:$0xff] %v958
      %1023 = vst [vmem:[#allocation2 + $0x40] sm:$0xff] %v959
      %1024 = vst [vmem:[#allocation2 + $0x48] sm:$0xff] %v960
      %1025 = vst [vmem:[#allocation2 + $0x50] sm:$0xff] %v961
      %1026 = vst [vmem:[#allocation2 + $0x58] sm:$0xff] %v962
      %1027 = vst [vmem:[#allocation2 + $0x60] sm:$0xff] %v963
      %1028 = vst [vmem:[#allocation2 + $0x68] sm:$0xff] %v964
      %1029 = vst [vmem:[#allocation2 + $0x70] sm:$0xff] %v965
      %1030 = vst [vmem:[#allocation2 + $0x78] sm:$0xff] %v966
      %1031 = vst [vmem:[#allocation2 + $0x80] sm:$0xff] %v967
      %1032 = vst [vmem:[#allocation2 + $0x88] sm:$0xff] %v968
      %1033 = vst [vmem:[#allocation2 + $0x90] sm:$0xff] %v969
      %1034 = vst [vmem:[#allocation2 + $0x98] sm:$0xff] %v970
      %1035 = vst [vmem:[#allocation2 + $0xa0] sm:$0xff] %v971
      %1036 = vst [vmem:[#allocation2 + $0xa8] sm:$0xff] %v972
      %1037 = vst [vmem:[#allocation2 + $0xb0] sm:$0xff] %v973
      %1038 = vst [vmem:[#allocation2 + $0xb8] sm:$0xff] %v974
      %1039 = vst [vmem:[#allocation2 + $0xc0] sm:$0xff] %v975
      %1040 = vst [vmem:[#allocation2 + $0xc8] sm:$0xff] %v976
      %1041 = vst [vmem:[#allocation2 + $0xd0] sm:$0xff] %v977
      %1042 = vst [vmem:[#allocation2 + $0xd8] sm:$0xff] %v978
      %1043 = vst [vmem:[#allocation2 + $0xe0] sm:$0xff] %v979
      %1044 = vst [vmem:[#allocation2 + $0xe8] sm:$0xff] %v980
      %1045 = vst [vmem:[#allocation2 + $0xf0] sm:$0xff] %v981
      %1046 = vst [vmem:[#allocation2 + $0xf8] sm:$0xff] %v982
      %1047 = vst [vmem:[#allocation2 + $0x100] sm:$0xff] %v983
      %1048 = vst [vmem:[#allocation2 + $0x108] sm:$0xff] %v984
      %1049 = vst [vmem:[#allocation2 + $0x110] sm:$0xff] %v985
      %1050 = vst [vmem:[#allocation2 + $0x118] sm:$0xff] %v986
      %1051 = vst [vmem:[#allocation2 + $0x120] sm:$0xff] %v987
      %1052 = vst [vmem:[#allocation2 + $0x128] sm:$0xff] %v988
      %1053 = vst [vmem:[#allocation2 + $0x130] sm:$0xff] %v989
      %1054 = vst [vmem:[#allocation2 + $0x138] sm:$0xff] %v990
      %1055 = vst [vmem:[#allocation2 + $0x140] sm:$0xff] %v991
      %1056 = vst [vmem:[#allocation2 + $0x148] sm:$0xff] %v992
      %1057 = vst [vmem:[#allocation2 + $0x150] sm:$0xff] %v993
      %1058 = vst [vmem:[#allocation2 + $0x158] sm:$0xff] %v994
      %1059 = vst [vmem:[#allocation2 + $0x160] sm:$0xff] %v995
      %1060 = vst [vmem:[#allocation2 + $0x168] sm:$0xff] %v996
      %1061 = vst [vmem:[#allocation2 + $0x170] sm:$0xff] %v997
      %1062 = vst [vmem:[#allocation2 + $0x178] sm:$0xff] %v998
      %1063 = vst [vmem:[#allocation2 + $0x180] sm:$0xff] %v999
      %1064 = vst [vmem:[#allocation2 + $0x188] sm:$0xff] %v1000
      %1065 = vst [vmem:[#allocation2 + $0x190] sm:$0xff] %v1001
      %1066 = vst [vmem:[#allocation2 + $0x198] sm:$0xff] %v1002
      %1067 = vst [vmem:[#allocation2 + $0x1a0] sm:$0xff] %v1003
      %1068 = vst [vmem:[#allocation2 + $0x1a8] sm:$0xff] %v1004
      %1069 = vst [vmem:[#allocation2 + $0x1b0] sm:$0xff] %v1005
      %1070 = vst [vmem:[#allocation2 + $0x1b8] sm:$0xff] %v1006
      %1071 = vst [vmem:[#allocation2 + $0x1c0] sm:$0xff] %v1007
      %1072 = vst [vmem:[#allocation2 + $0x1c8] sm:$0xff] %v1008
      %1073 = vst [vmem:[#allocation2 + $0x1d0] sm:$0xff] %v1009
      %1074 = vst [vmem:[#allocation2 + $0x1d8] sm:$0xff] %v1010
      %1075 = vst [vmem:[#allocation2 + $0x1e0] sm:$0xff] %v1011
      %1076 = vst [vmem:[#allocation2 + $0x1e8] sm:$0xff] %v1012
      %1077 = vst [vmem:[#allocation2 + $0x1f0] sm:$0xff] %v1013
      %1078 = vst [vmem:[#allocation2 + $0x1f8] sm:$0xff] %v1014
      // Predicated region
      $region33: #{generator_forward.17} parent=27 // pred_check
        %p1079 = pneg %p193
      $region34: #{generator_forward.17} parent=27 // pred_check_branch
        %1081 = sbr.rel (%p1079) target = $region36
      $region35: #{generator_forward.17} parent=27 // pred_region
        %v1082 = vld [vmem:[#allocation2] sm:$0xff]
        %v1083 = vld [vmem:[#allocation2 + $0x8] sm:$0xff]
        %v1084 = vld [vmem:[#allocation2 + $0x10] sm:$0xff]
        %v1085 = vld [vmem:[#allocation2 + $0x18] sm:$0xff]
        %v1086 = vld [vmem:[#allocation2 + $0x20] sm:$0xff]
        %v1087 = vld [vmem:[#allocation2 + $0x28] sm:$0xff]
        %v1088 = vld [vmem:[#allocation2 + $0x30] sm:$0xff]
        %v1089 = vld [vmem:[#allocation2 + $0x38] sm:$0xff]
        %v1090 = vld [vmem:[#allocation2 + $0x40] sm:$0xff]
        %v1091 = vld [vmem:[#allocation2 + $0x48] sm:$0xff]
        %v1092 = vld [vmem:[#allocation2 + $0x50] sm:$0xff]
        %v1093 = vld [vmem:[#allocation2 + $0x58] sm:$0xff]
        %v1094 = vld [vmem:[#allocation2 + $0x60] sm:$0xff]
        %v1095 = vld [vmem:[#allocation2 + $0x68] sm:$0xff]
        %v1096 = vld [vmem:[#allocation2 + $0x70] sm:$0xff]
        %v1097 = vld [vmem:[#allocation2 + $0x78] sm:$0xff]
        %v1098 = vld [vmem:[#allocation2 + $0x80] sm:$0xff]
        %v1099 = vld [vmem:[#allocation2 + $0x88] sm:$0xff]
        %v1100 = vld [vmem:[#allocation2 + $0x90] sm:$0xff]
        %v1101 = vld [vmem:[#allocation2 + $0x98] sm:$0xff]
        %v1102 = vld [vmem:[#allocation2 + $0xa0] sm:$0xff]
        %v1103 = vld [vmem:[#allocation2 + $0xa8] sm:$0xff]
        %v1104 = vld [vmem:[#allocation2 + $0xb0] sm:$0xff]
        %v1105 = vld [vmem:[#allocation2 + $0xb8] sm:$0xff]
        %v1106 = vld [vmem:[#allocation2 + $0xc0] sm:$0xff]
        %v1107 = vld [vmem:[#allocation2 + $0xc8] sm:$0xff]
        %v1108 = vld [vmem:[#allocation2 + $0xd0] sm:$0xff]
        %v1109 = vld [vmem:[#allocation2 + $0xd8] sm:$0xff]
        %v1110 = vld [vmem:[#allocation2 + $0xe0] sm:$0xff]
        %v1111 = vld [vmem:[#allocation2 + $0xe8] sm:$0xff]
        %v1112 = vld [vmem:[#allocation2 + $0xf0] sm:$0xff]
        %v1113 = vld [vmem:[#allocation2 + $0xf8] sm:$0xff]
        %v1114 = vld [vmem:[#allocation2 + $0x100] sm:$0xff]
        %v1115 = vld [vmem:[#allocation2 + $0x108] sm:$0xff]
        %v1116 = vld [vmem:[#allocation2 + $0x110] sm:$0xff]
        %v1117 = vld [vmem:[#allocation2 + $0x118] sm:$0xff]
        %v1118 = vld [vmem:[#allocation2 + $0x120] sm:$0xff]
        %v1119 = vld [vmem:[#allocation2 + $0x128] sm:$0xff]
        %v1120 = vld [vmem:[#allocation2 + $0x130] sm:$0xff]
        %v1121 = vld [vmem:[#allocation2 + $0x138] sm:$0xff]
        %v1122 = vld [vmem:[#allocation2 + $0x140] sm:$0xff]
        %v1123 = vld [vmem:[#allocation2 + $0x148] sm:$0xff]
        %v1124 = vld [vmem:[#allocation2 + $0x150] sm:$0xff]
        %v1125 = vld [vmem:[#allocation2 + $0x158] sm:$0xff]
        %v1126 = vld [vmem:[#allocation2 + $0x160] sm:$0xff]
        %v1127 = vld [vmem:[#allocation2 + $0x168] sm:$0xff]
        %v1128 = vld [vmem:[#allocation2 + $0x170] sm:$0xff]
        %v1129 = vld [vmem:[#allocation2 + $0x178] sm:$0xff]
        %v1130 = vld [vmem:[#allocation2 + $0x180] sm:$0xff]
        %v1131 = vld [vmem:[#allocation2 + $0x188] sm:$0xff]
        %v1132 = vld [vmem:[#allocation2 + $0x190] sm:$0xff]
        %v1133 = vld [vmem:[#allocation2 + $0x198] sm:$0xff]
        %v1134 = vld [vmem:[#allocation2 + $0x1a0] sm:$0xff]
        %v1135 = vld [vmem:[#allocation2 + $0x1a8] sm:$0xff]
        %v1136 = vld [vmem:[#allocation2 + $0x1b0] sm:$0xff]
        %v1137 = vld [vmem:[#allocation2 + $0x1b8] sm:$0xff]
        %v1138 = vld [vmem:[#allocation2 + $0x1c0] sm:$0xff]
        %v1139 = vld [vmem:[#allocation2 + $0x1c8] sm:$0xff]
        %v1140 = vld [vmem:[#allocation2 + $0x1d0] sm:$0xff]
        %v1141 = vld [vmem:[#allocation2 + $0x1d8] sm:$0xff]
        %v1142 = vld [vmem:[#allocation2 + $0x1e0] sm:$0xff]
        %v1143 = vld [vmem:[#allocation2 + $0x1e8] sm:$0xff]
        %v1144 = vld [vmem:[#allocation2 + $0x1f0] sm:$0xff]
        %v1145 = vld [vmem:[#allocation2 + $0x1f8] sm:$0xff]
        %v1146 = vtanh.pop %v1082
        %v1147 = vtanh.pop %v1083
        %v1148 = vtanh.pop %v1084
        %v1149 = vtanh.pop %v1085
        %v1150 = vtanh.pop %v1086
        %v1151 = vtanh.pop %v1087
        %v1152 = vtanh.pop %v1088
        %v1153 = vtanh.pop %v1089
        %v1154 = vtanh.pop %v1090
        %v1155 = vtanh.pop %v1091
        %v1156 = vtanh.pop %v1092
        %v1157 = vtanh.pop %v1093
        %v1158 = vtanh.pop %v1094
        %v1159 = vtanh.pop %v1095
        %v1160 = vtanh.pop %v1096
        %v1161 = vtanh.pop %v1097
        %v1162 = vtanh.pop %v1098
        %v1163 = vtanh.pop %v1099
        %v1164 = vtanh.pop %v1100
        %v1165 = vtanh.pop %v1101
        %v1166 = vtanh.pop %v1102
        %v1167 = vtanh.pop %v1103
        %v1168 = vtanh.pop %v1104
        %v1169 = vtanh.pop %v1105
        %v1170 = vtanh.pop %v1106
        %v1171 = vtanh.pop %v1107
        %v1172 = vtanh.pop %v1108
        %v1173 = vtanh.pop %v1109
        %v1174 = vtanh.pop %v1110
        %v1175 = vtanh.pop %v1111
        %v1176 = vtanh.pop %v1112
        %v1177 = vtanh.pop %v1113
        %v1178 = vtanh.pop %v1114
        %v1179 = vtanh.pop %v1115
        %v1180 = vtanh.pop %v1116
        %v1181 = vtanh.pop %v1117
        %v1182 = vtanh.pop %v1118
        %v1183 = vtanh.pop %v1119
        %v1184 = vtanh.pop %v1120
        %v1185 = vtanh.pop %v1121
        %v1186 = vtanh.pop %v1122
        %v1187 = vtanh.pop %v1123
        %v1188 = vtanh.pop %v1124
        %v1189 = vtanh.pop %v1125
        %v1190 = vtanh.pop %v1126
        %v1191 = vtanh.pop %v1127
        %v1192 = vtanh.pop %v1128
        %v1193 = vtanh.pop %v1129
        %v1194 = vtanh.pop %v1130
        %v1195 = vtanh.pop %v1131
        %v1196 = vtanh.pop %v1132
        %v1197 = vtanh.pop %v1133
        %v1198 = vtanh.pop %v1134
        %v1199 = vtanh.pop %v1135
        %v1200 = vtanh.pop %v1136
        %v1201 = vtanh.pop %v1137
        %v1202 = vtanh.pop %v1138
        %v1203 = vtanh.pop %v1139
        %v1204 = vtanh.pop %v1140
        %v1205 = vtanh.pop %v1141
        %v1206 = vtanh.pop %v1142
        %v1207 = vtanh.pop %v1143
        %v1208 = vtanh.pop %v1144
        %v1209 = vtanh.pop %v1145
        %1210 = vst [vmem:[%s190] sm:$0xff] %v1146
        %1211 = vst [vmem:[%s190 + $0x8] sm:$0xff] %v1147
        %1212 = vst [vmem:[%s190 + $0x10] sm:$0xff] %v1148
        %1213 = vst [vmem:[%s190 + $0x18] sm:$0xff] %v1149
        %1214 = vst [vmem:[%s190 + $0x20] sm:$0xff] %v1150
        %1215 = vst [vmem:[%s190 + $0x28] sm:$0xff] %v1151
        %1216 = vst [vmem:[%s190 + $0x30] sm:$0xff] %v1152
        %1217 = vst [vmem:[%s190 + $0x38] sm:$0xff] %v1153
        %1218 = vst [vmem:[%s190 + $0x40] sm:$0xff] %v1154
        %1219 = vst [vmem:[%s190 + $0x48] sm:$0xff] %v1155
        %1220 = vst [vmem:[%s190 + $0x50] sm:$0xff] %v1156
        %1221 = vst [vmem:[%s190 + $0x58] sm:$0xff] %v1157
        %1222 = vst [vmem:[%s190 + $0x60] sm:$0xff] %v1158
        %1223 = vst [vmem:[%s190 + $0x68] sm:$0xff] %v1159
        %1224 = vst [vmem:[%s190 + $0x70] sm:$0xff] %v1160
        %1225 = vst [vmem:[%s190 + $0x78] sm:$0xff] %v1161
        %1226 = vst [vmem:[%s190 + $0x80] sm:$0xff] %v1162
        %1227 = vst [vmem:[%s190 + $0x88] sm:$0xff] %v1163
        %1228 = vst [vmem:[%s190 + $0x90] sm:$0xff] %v1164
        %1229 = vst [vmem:[%s190 + $0x98] sm:$0xff] %v1165
        %1230 = vst [vmem:[%s190 + $0xa0] sm:$0xff] %v1166
        %1231 = vst [vmem:[%s190 + $0xa8] sm:$0xff] %v1167
        %1232 = vst [vmem:[%s190 + $0xb0] sm:$0xff] %v1168
        %1233 = vst [vmem:[%s190 + $0xb8] sm:$0xff] %v1169
        %1234 = vst [vmem:[%s190 + $0xc0] sm:$0xff] %v1170
        %1235 = vst [vmem:[%s190 + $0xc8] sm:$0xff] %v1171
        %1236 = vst [vmem:[%s190 + $0xd0] sm:$0xff] %v1172
        %1237 = vst [vmem:[%s190 + $0xd8] sm:$0xff] %v1173
        %1238 = vst [vmem:[%s190 + $0xe0] sm:$0xff] %v1174
        %1239 = vst [vmem:[%s190 + $0xe8] sm:$0xff] %v1175
        %1240 = vst [vmem:[%s190 + $0xf0] sm:$0xff] %v1176
        %1241 = vst [vmem:[%s190 + $0xf8] sm:$0xff] %v1177
        %1242 = vst [vmem:[%s190 + $0x100] sm:$0xff] %v1178
        %1243 = vst [vmem:[%s190 + $0x108] sm:$0xff] %v1179
        %1244 = vst [vmem:[%s190 + $0x110] sm:$0xff] %v1180
        %1245 = vst [vmem:[%s190 + $0x118] sm:$0xff] %v1181
        %1246 = vst [vmem:[%s190 + $0x120] sm:$0xff] %v1182
        %1247 = vst [vmem:[%s190 + $0x128] sm:$0xff] %v1183
        %1248 = vst [vmem:[%s190 + $0x130] sm:$0xff] %v1184
        %1249 = vst [vmem:[%s190 + $0x138] sm:$0xff] %v1185
        %1250 = vst [vmem:[%s190 + $0x140] sm:$0xff] %v1186
        %1251 = vst [vmem:[%s190 + $0x148] sm:$0xff] %v1187
        %1252 = vst [vmem:[%s190 + $0x150] sm:$0xff] %v1188
        %1253 = vst [vmem:[%s190 + $0x158] sm:$0xff] %v1189
        %1254 = vst [vmem:[%s190 + $0x160] sm:$0xff] %v1190
        %1255 = vst [vmem:[%s190 + $0x168] sm:$0xff] %v1191
        %1256 = vst [vmem:[%s190 + $0x170] sm:$0xff] %v1192
        %1257 = vst [vmem:[%s190 + $0x178] sm:$0xff] %v1193
        %1258 = vst [vmem:[%s190 + $0x180] sm:$0xff] %v1194
        %1259 = vst [vmem:[%s190 + $0x188] sm:$0xff] %v1195
        %1260 = vst [vmem:[%s190 + $0x190] sm:$0xff] %v1196
        %1261 = vst [vmem:[%s190 + $0x198] sm:$0xff] %v1197
        %1262 = vst [vmem:[%s190 + $0x1a0] sm:$0xff] %v1198
        %1263 = vst [vmem:[%s190 + $0x1a8] sm:$0xff] %v1199
        %1264 = vst [vmem:[%s190 + $0x1b0] sm:$0xff] %v1200
        %1265 = vst [vmem:[%s190 + $0x1b8] sm:$0xff] %v1201
        %1266 = vst [vmem:[%s190 + $0x1c0] sm:$0xff] %v1202
        %1267 = vst [vmem:[%s190 + $0x1c8] sm:$0xff] %v1203
        %1268 = vst [vmem:[%s190 + $0x1d0] sm:$0xff] %v1204
        %1269 = vst [vmem:[%s190 + $0x1d8] sm:$0xff] %v1205
        %1270 = vst [vmem:[%s190 + $0x1e0] sm:$0xff] %v1206
        %1271 = vst [vmem:[%s190 + $0x1e8] sm:$0xff] %v1207
        %1272 = vst [vmem:[%s190 + $0x1f0] sm:$0xff] %v1208
        %1273 = vst [vmem:[%s190 + $0x1f8] sm:$0xff] %v1209
      $region36: #{generator_forward.17} parent=27 // pred_fallthru
        _
      %s1274 = smul.u32 64, %s17
      %p1275 = scmp.lt.s32.totalorder %s1274, 319
      %s1276 = scalar_select %p1275, %s1274, 319
      %s1277 = smul.addr %s1276, 8
      %s1278 = scalar_lea.vmem %s2, %s1277
      // Predicated region
      $region37: #{generator_forward.17} parent=27 // pred_check
        %p1279 = pneg %p97
      $region38: #{generator_forward.17} parent=27 // pred_check_branch
        %1281 = sbr.rel (%p1279) target = $region40
      $region39: #{generator_forward.17} parent=27 // pred_region
        %s1282 = smul.u32 64, %s17
      $region40: #{generator_forward.17} parent=27 // pred_fallthru
        _
    $region28: #{generator_forward.17} parent=5 // pred_fallthru
      _
    %p1283 = scmp.le.s32.totalorder 2, %s8
    // Predicated region
    $region41: #{generator_forward.17} parent=5 // pred_check
      %p1284 = pneg %p1283
    $region42: #{generator_forward.17} parent=5 // pred_check_branch
      %1286 = sbr.rel (%p1284) target = $region44
    $region43: #{generator_forward.17} parent=5 // pred_region
      %s1287 = ssub.s32 %s8, 2
      // Predicated region
      $region45: #{generator_forward.17} parent=43 // pred_check
        %p1288 = pneg %p103
      $region46: #{generator_forward.17} parent=43 // pred_check_branch
        %1290 = sbr.rel (%p1288) target = $region48
      $region47: #{generator_forward.17} parent=43 // pred_region
        %s1291 = smul.u32 64, %s19
        %p1292 = scmp.lt.s32.totalorder %s1291, 319
        %s1293 = scalar_select %p1292, %s1291, 319
        %s1294 = smul.addr %s1293, 8
        %s1295 = scalar_lea.vmem %s2, %s1294
      $region48: #{generator_forward.17} parent=43 // pred_fallthru
        _
    $region44: #{generator_forward.17} parent=5 // pred_fallthru
      _
  $region6: #{generator_forward.17} parent=0 // loop_footer
    %s12 = sadd.s32 1, %s8
  $region7: #{generator_forward.17} parent=0 // loop_footer_branch
    %7 = sbr.rel target = $region3
  $region8: #{generator_forward.17} parent=0 // loop_exit
    _

</llo_original>
